<compile_context>
chip_gen: v5e
topology: v5e:2x2
jax: 0.10.0
libtpu: 0.0.40
codegen_flags: <defaults>
</compile_context>

<pallas_src>
import jax
import jax.numpy as jnp
from jax.experimental import pallas as pl
from jax.experimental.pallas import tpu as pltpu


def _round_up(n, m):
    return ((n + m - 1) // m) * m


try:  # only used to cap vmem_limit_bytes; fall back to a conservative value
    _VMEM_CAP = int(pltpu.get_tpu_info().vmem_capacity_bytes)
except Exception:  # pragma: no cover
    _VMEM_CAP = 64 << 20


# ----------------------------- kernel 1: 2-layer GRU recurrence -----------------------------
def _gru_recurrence_kernel(x_ref, h0_ref,
                           wih0_ref, whh0_ref, b0_ref, bhn0_ref,
                           wih1_ref, whh1_ref, b1_ref, bhn1_ref,
                           o1_ref,
                           gi_scr, seq_scr):
    """Runs both GRU layers over the whole (time-major) sequence.

    x_ref   : [T*Bp, Dp]  bf16  embedded inputs, row = t*Bp + b
    h0_ref  : [Bp, Dp]    f32   shared initial hidden state
    wih*_ref: [Dp, 3Dp]   bf16  input->gate weights (transposed, per-gate padded), gates (r,z,n)
    whh*_ref: [Dp, 3Dp]   bf16  hidden->gate weights (transposed, per-gate padded)
    b*_ref  : [1, 3Dp]    f32   bih+bhh folded for r,z; bih only for the n gate
    bhn*_ref: [1, Dp]     f32   bhh n-gate slice (scaled by r inside the cell)
    o1_ref  : [Bp, T, Dp] bf16  layer-2 hidden states, emitted BATCH-FIRST
    gi_scr  : [T*Bp, 3Dp] f32   precomputed input gates (reused by both layers)
    seq_scr : [T*Bp, Dp]  f32   layer-0 outputs (GI-1 input), then layer-1 outputs
    """
    Bp, T, Dp = o1_ref.shape

    def run_layer(x2d_bf16, wih_ref, b_ref, whh_ref, bhn_ref):
        # One big MXU call for every timestep's input->gate contribution (+ folded biases),
        # instead of T tiny matmuls on the serial path.
        gi_scr[...] = (jnp.dot(x2d_bf16, wih_ref[...],
                               preferred_element_type=jnp.float32) + b_ref[...])
        # Hoisted loads: read recurrent weights/biases once, close over the values.
        whh = whh_ref[...]
        bhn = bhn_ref[...]

        def step(t, h):                                # h: [Bp, Dp] f32 carry
            row = pl.multiple_of(t * Bp, 8)
            gi = gi_scr[pl.ds(row, Bp), :]             # [Bp, 3Dp]
            gh = jnp.dot(h.astype(jnp.bfloat16), whh,
                         preferred_element_type=jnp.float32)
            r = jax.nn.sigmoid(gi[:, :Dp] + gh[:, :Dp])
            z = jax.nn.sigmoid(gi[:, Dp:2 * Dp] + gh[:, Dp:2 * Dp])
            n = jnp.tanh(gi[:, 2 * Dp:] + r * (gh[:, 2 * Dp:] + bhn))
            h_new = (1.0 - z) * n + z * h              # f32 gate math, f32 carry
            seq_scr[pl.ds(row, Bp), :] = h_new
            return h_new

        jax.lax.fori_loop(0, T, step, h0_ref[...], unroll=True)

    # Layer 0: inputs are the embedded tokens.
    run_layer(x_ref[...], wih0_ref, b0_ref, whh0_ref, bhn0_ref)
    # Layer 1: inputs are layer-0 outputs.  GI-1 is computed from seq_scr *before* the
    # layer-1 loop starts overwriting it, so the same scratch serves both roles.
    x1 = seq_scr[...].astype(jnp.bfloat16)
    run_layer(x1, wih1_ref, b1_ref, whh1_ref, bhn1_ref)

    # Emit the layer-1 hidden states batch-first so the (much larger) logits never need a
    # [T,B,V] -> [B,T,V] HBM transpose downstream.  Static strided reads, contiguous stores.
    for b in range(Bp):
        o1_ref[b] = seq_scr[pl.ds(b, T, stride=Bp), :].astype(o1_ref.dtype)


# --------------------------- kernel 2: tied-embedding projection ---------------------------
def _tied_projection_kernel(h_ref, et_ref, o_ref):
    """One (rows, vocab) tile of logits = hidden @ embedding.T (lane-dense output)."""
    o_ref[...] = jnp.dot(h_ref[...], et_ref[...],
                         preferred_element_type=jnp.float32)
    # TODO(synk): for very large D, add a K grid axis with an f32 accumulator scratch.


@jax.jit
def lstm_decoder_forward(h, targets, params):
    """Equivalent of LSTMDecoder.forward(h, targets, embedded=False) -> logits [B, T, V]."""
    wte = params["wte"].astype(jnp.float32)                 # [V, D]
    V, D = wte.shape
    B, T = targets.shape

    Bp = _round_up(max(B, 8), 8)                            # sublane-friendly batch
    Dp = _round_up(D, 128)                                  # lane-friendly feature dim
    Vp = _round_up(V, 128)                                  # lane-friendly vocab dim

    # ---------------- parameter prep (zero padding keeps the GRU math exact) ----------------
    wte_dp = jnp.pad(wte, ((0, 0), (0, Dp - D)))            # [V, Dp]
    et = jnp.pad(wte_dp.T, ((0, 0), (0, Vp - V))).astype(jnp.bfloat16)   # [Dp, Vp]

    def prep_layer(wih, whh, bih, bhh):
        def pad_mat(w):      # [3D, D] (PyTorch) -> [Dp, 3Dp], transposed + per-gate padded
            wt = w.astype(jnp.float32).T
            gs = [jnp.pad(wt[:, g * D:(g + 1) * D], ((0, Dp - D), (0, Dp - D)))
                  for g in range(3)]
            return jnp.concatenate(gs, axis=1)

        def pad_vec(v):      # [3D] -> [3Dp], per-gate padded
            gs = [jnp.pad(v.astype(jnp.float32)[g * D:(g + 1) * D], (0, Dp - D))
                  for g in range(3)]
            return jnp.concatenate(gs)

        wih_p = pad_mat(wih).astype(jnp.bfloat16)
        whh_p = pad_mat(whh).astype(jnp.bfloat16)
        bih_p, bhh_p = pad_vec(bih), pad_vec(bhh)
        # Fold bih+bhh for the r/z gates (they simply add); b_hn stays separate (scaled by r).
        b_comb = jnp.concatenate([bih_p[:2 * Dp] + bhh_p[:2 * Dp],
                                  bih_p[2 * Dp:]]).reshape(1, 3 * Dp)
        b_hn = bhh_p[2 * Dp:].reshape(1, Dp)
        return wih_p, whh_p, b_comb, b_hn

    wih0, whh0, b0, bhn0 = prep_layer(params["wih0"], params["whh0"],
                                      params["bih0"], params["bhh0"])
    wih1, whh1, b1, bhn1 = prep_layer(params["wih1"], params["whh1"],
                                      params["bih1"], params["bhh1"])

    # Embedding lookup straight into time-major rows (row = t*Bp + b); no [B,T,D] transpose
    # of the embedded tensor (only the tiny int target matrix is transposed).
    x_tm = jnp.take(wte_dp, targets.T, axis=0)              # [T, B, Dp]
    x_tm = jnp.pad(x_tm, ((0, 0), (0, Bp - B), (0, 0)))
    x2d = x_tm.reshape(T * Bp, Dp).astype(jnp.bfloat16)
    h0 = jnp.pad(h.astype(jnp.float32), ((0, Bp - B), (0, Dp - D)))   # [Bp, Dp]

    # --------------------------------- kernel 1: recurrence ---------------------------------
    vmem = pl.BlockSpec(memory_space=pltpu.MemorySpace.VMEM)
    args1 = (x2d, h0, wih0, whh0, b0, bhn0, wih1, whh1, b1, bhn1)
    k1_bytes = sum(int(a.size) * a.dtype.itemsize for a in args1)
    k1_bytes += Bp * T * Dp * 2                             # o1 output (bf16)
    k1_bytes += T * Bp * 3 * Dp * 4 + T * Bp * Dp * 4       # f32 scratches
    o1 = pl.pallas_call(
        _gru_recurrence_kernel,
        out_shape=jax.ShapeDtypeStruct((Bp, T, Dp), jnp.bfloat16),
        in_specs=[vmem] * len(args1),
        out_specs=vmem,
        scratch_shapes=[pltpu.VMEM((T * Bp, 3 * Dp), jnp.float32),
                        pltpu.VMEM((T * Bp, Dp), jnp.float32)],
        compiler_params=pltpu.CompilerParams(
            vmem_limit_bytes=min(max(2 * k1_bytes + (8 << 20), 32 << 20),
                                 int(_VMEM_CAP * 0.9))),
    )(*args1)

    # --------------------- kernel 2: logits = hidden @ wte.T, tiled over (rows, V) ----------
    R = Bp * T
    h2d = o1.reshape(R, Dp)                                 # batch-first rows: b*T + t
    tr = min(R, 256)
    while R % tr:
        tr -= 8
    tv = min(Vp, 512)
    while Vp % tv:
        tv -= 128
    k2_bytes = 2 * (tr * Dp * 2 + Dp * tv * 2 + tr * tv * 4)
    logits = pl.pallas_call(
        _tied_projection_kernel,
        out_shape=jax.ShapeDtypeStruct((R, Vp), jnp.float32),
        grid=(R // tr, Vp // tv),
        in_specs=[pl.BlockSpec((tr, Dp), lambda i, j: (i, 0)),
                  pl.BlockSpec((Dp, tv), lambda i, j: (0, j))],
        out_specs=pl.BlockSpec((tr, tv), lambda i, j: (i, j)),
        compiler_params=pltpu.CompilerParams(
            dimension_semantics=("parallel", "parallel"),
            vmem_limit_bytes=min(max(k2_bytes + (8 << 20), 32 << 20),
                                 int(_VMEM_CAP * 0.9))),
    )(h2d, et)

    # Output is already batch-first [Bp, T, Vp]; just strip the padding.
    return logits.reshape(Bp, T, Vp)[:B, :, :V]


# ------------------------------ pure-JAX reference (checking) ------------------------------
def _gru_layer_ref(x_tm, h0, wih, whh, bih, bhh):
    D = h0.shape[1]
    hp = jax.lax.Precision.HIGHEST

    def step(h, x_t):
        gi = jnp.dot(x_t, wih.T, precision=hp) + bih
        gh = jnp.dot(h, whh.T, precision=hp) + bhh
        r = jax.nn.sigmoid(gi[:, :D] + gh[:, :D])
        z = jax.nn.sigmoid(gi[:, D:2 * D] + gh[:, D:2 * D])
        n = jnp.tanh(gi[:, 2 * D:] + r * gh[:, 2 * D:])
        h_new = (1.0 - z) * n + z * h
        return h_new, h_new

    _, ys = jax.lax.scan(step, h0, x_tm)
    return ys


def lstm_decoder_reference(h, targets, params):
    wte = params["wte"]
    x_tm = jnp.transpose(jnp.take(wte, targets, axis=0), (1, 0, 2))
    o0 = _gru_layer_ref(x_tm, h, params["wih0"], params["whh0"],
                        params["bih0"], params["bhh0"])
    o1 = _gru_layer_ref(o0, h, params["wih1"], params["whh1"],
                        params["bih1"], params["bhh1"])
    logits = jnp.dot(o1, wte.T, precision=jax.lax.Precision.HIGHEST)
    return jnp.transpose(logits, (1, 0, 2))


# -------------------------------------------- main --------------------------------------------
if __name__ == "__main__":
    B, T, D, V = 2, 8, 32, 64

    key = jax.random.PRNGKey(0)
    ks = jax.random.split(key, 12)
    k = 1.0 / jnp.sqrt(D)  # PyTorch GRU init range

    params = {
        # nn.Embedding default init: N(0, 1)
        "wte": jax.random.normal(ks[0], (V, D), jnp.float32),
        # GRU layer 0 (PyTorch shapes: [3D, D] / [3D])
        "wih0": jax.random.uniform(ks[1], (3 * D, D), jnp.float32, -k, k),
        "whh0": jax.random.uniform(ks[2], (3 * D, D), jnp.float32, -k, k),
        "bih0": jax.random.uniform(ks[3], (3 * D,), jnp.float32, -k, k),
        "bhh0": jax.random.uniform(ks[4], (3 * D,), jnp.float32, -k, k),
        # GRU layer 1
        "wih1": jax.random.uniform(ks[5], (3 * D, D), jnp.float32, -k, k),
        "whh1": jax.random.uniform(ks[6], (3 * D, D), jnp.float32, -k, k),
        "bih1": jax.random.uniform(ks[7], (3 * D,), jnp.float32, -k, k),
        "bhh1": jax.random.uniform(ks[8], (3 * D,), jnp.float32, -k, k),
    }

    h = jax.random.normal(ks[9], (B, D), jnp.float32)
    targets = jax.random.randint(ks[10], (B, T), 0, V, jnp.int32)

    logits = lstm_decoder_forward(h, targets, params)
    logits = jax.block_until_ready(logits)
    assert logits.shape == (B, T, V), logits.shape

    ref = lstm_decoder_reference(h, targets, params)
    # bf16 MXU operands (f32 accumulation) -> tolerance scaled to the logit dynamic range.
    err = float(jnp.max(jnp.abs(logits - ref)))
    scale = float(jnp.max(jnp.abs(ref)))
    assert err <= 5e-2 * scale + 5e-2, (err, scale)

    print("KERNEL_OK")
</pallas_src>

<mosaic_0001>
module attributes {stable_mosaic.version = 11 : i64} {
  func.func @_gru_recurrence_kernel(%arg0: memref<64x128xbf16, #tpu.memory_space<vmem>>, %arg1: memref<8x128xf32, #tpu.memory_space<vmem>>, %arg2: memref<128x384xbf16, #tpu.memory_space<vmem>>, %arg3: memref<128x384xbf16, #tpu.memory_space<vmem>>, %arg4: memref<1x384xf32, #tpu.memory_space<vmem>>, %arg5: memref<1x128xf32, #tpu.memory_space<vmem>>, %arg6: memref<128x384xbf16, #tpu.memory_space<vmem>>, %arg7: memref<128x384xbf16, #tpu.memory_space<vmem>>, %arg8: memref<1x384xf32, #tpu.memory_space<vmem>>, %arg9: memref<1x128xf32, #tpu.memory_space<vmem>>, %arg10: memref<8x8x128xbf16, #tpu.memory_space<vmem>>, %arg11: memref<64x384xf32, #tpu.memory_space<vmem>>, %arg12: memref<64x128xf32, #tpu.memory_space<vmem>>) attributes {dimension_semantics = [], scalar_prefetch = 0 : i64, scratch_operands = 2 : i64, tpu.core_type = #tpu.core_type<tc>} {
    %c0 = arith.constant 0 : index
    %c0_0 = arith.constant 0 : index
    %0 = vector.load %arg0[%c0, %c0_0] : memref<64x128xbf16, #tpu.memory_space<vmem>>, vector<64x128xbf16>
    %c0_1 = arith.constant 0 : index
    %c0_2 = arith.constant 0 : index
    %1 = vector.load %arg2[%c0_1, %c0_2] : memref<128x384xbf16, #tpu.memory_space<vmem>>, vector<128x384xbf16>
    %cst = arith.constant dense<0.000000e+00> : vector<64x384xf32>
    %2 = tpu.matmul %0, %1, %cst {dimension_numbers = #tpu.dot_dimension_numbers<[1], [0], [0], [1], [0, 0, 1, 1], [], []>} : vector<64x128xbf16>, vector<128x384xbf16>, vector<64x384xf32> -> vector<64x384xf32>
    %c0_3 = arith.constant 0 : index
    %c0_4 = arith.constant 0 : index
    %3 = vector.load %arg4[%c0_3, %c0_4] : memref<1x384xf32, #tpu.memory_space<vmem>>, vector<1x384xf32>
    %4 = vector.broadcast %3 : vector<1x384xf32> to vector<64x384xf32>
    %5 = arith.addf %2, %4 : vector<64x384xf32>
    %c0_5 = arith.constant 0 : index
    %c0_6 = arith.constant 0 : index
    %6 = vector.load %arg11[%c0_5, %c0_6] : memref<64x384xf32, #tpu.memory_space<vmem>>, vector<64x384xf32>
    tpu.vector_store %arg11[%c0_5, %c0_6], %5 {strides = array<i32>} : memref<64x384xf32, #tpu.memory_space<vmem>>, vector<64x384xf32>,
    %c0_7 = arith.constant 0 : index
    %c0_8 = arith.constant 0 : index
    %7 = vector.load %arg3[%c0_7, %c0_8] : memref<128x384xbf16, #tpu.memory_space<vmem>>, vector<128x384xbf16>
    %c0_9 = arith.constant 0 : index
    %c0_10 = arith.constant 0 : index
    %8 = vector.load %arg5[%c0_9, %c0_10] : memref<1x128xf32, #tpu.memory_space<vmem>>, vector<1x128xf32>
    %c0_11 = arith.constant 0 : index
    %c0_12 = arith.constant 0 : index
    %9 = vector.load %arg1[%c0_11, %c0_12] : memref<8x128xf32, #tpu.memory_space<vmem>>, vector<8x128xf32>
    %c0_i32 = arith.constant 0 : i32
    %c8_i32 = arith.constant 8 : i32
    %10 = arith.muli %c0_i32, %c8_i32 : i32
    %11 = tpu.assume_multiple %10, 8 : i32
    %12 = arith.index_cast %11 : i32 to index
    %c0_13 = arith.constant 0 : index
    %13 = vector.load %arg11[%12, %c0_13] : memref<64x384xf32, #tpu.memory_space<vmem>>, vector<8x384xf32>
    %14 = arith.truncf %9 : vector<8x128xf32> to vector<8x128xbf16>
    %cst_14 = arith.constant dense<0.000000e+00> : vector<8x384xf32>
    %15 = tpu.matmul %14, %7, %cst_14 {dimension_numbers = #tpu.dot_dimension_numbers<[1], [0], [0], [1], [0, 0, 1, 1], [], []>} : vector<8x128xbf16>, vector<128x384xbf16>, vector<8x384xf32> -> vector<8x384xf32>
    %16 = vector.extract_strided_slice %13 {offsets = [0, 0], sizes = [8, 128], strides = [1, 1]} : vector<8x384xf32> to vector<8x128xf32>
    %17 = vector.extract_strided_slice %15 {offsets = [0, 0], sizes = [8, 128], strides = [1, 1]} : vector<8x384xf32> to vector<8x128xf32>
    %18 = arith.addf %16, %17 : vector<8x128xf32>
    %19 = arith.negf %18 : vector<8x128xf32>
    %20 = math.exp %19 : vector<8x128xf32>
    %cst_15 = arith.constant 1.000000e+00 : f32
    %21 = vector.broadcast %cst_15 : f32 to vector<8x128xf32>
    %22 = arith.addf %21, %20 : vector<8x128xf32>
    %23 = arith.divf %21, %22 : vector<8x128xf32>
    %24 = vector.extract_strided_slice %13 {offsets = [0, 128], sizes = [8, 128], strides = [1, 1]} : vector<8x384xf32> to vector<8x128xf32>
    %25 = vector.extract_strided_slice %15 {offsets = [0, 128], sizes = [8, 128], strides = [1, 1]} : vector<8x384xf32> to vector<8x128xf32>
    %26 = arith.addf %24, %25 : vector<8x128xf32>
    %27 = arith.negf %26 : vector<8x128xf32>
    %28 = math.exp %27 : vector<8x128xf32>
    %cst_16 = arith.constant 1.000000e+00 : f32
    %29 = vector.broadcast %cst_16 : f32 to vector<8x128xf32>
    %30 = arith.addf %29, %28 : vector<8x128xf32>
    %31 = arith.divf %29, %30 : vector<8x128xf32>
    %32 = vector.extract_strided_slice %13 {offsets = [0, 256], sizes = [8, 128], strides = [1, 1]} : vector<8x384xf32> to vector<8x128xf32>
    %33 = vector.extract_strided_slice %15 {offsets = [0, 256], sizes = [8, 128], strides = [1, 1]} : vector<8x384xf32> to vector<8x128xf32>
    %34 = vector.broadcast %8 : vector<1x128xf32> to vector<8x128xf32>
    %35 = arith.addf %33, %34 : vector<8x128xf32>
    %36 = arith.mulf %23, %35 : vector<8x128xf32>
    %37 = arith.addf %32, %36 : vector<8x128xf32>
    %38 = math.tanh %37 : vector<8x128xf32>
    %cst_17 = arith.constant 1.000000e+00 : f32
    %39 = vector.broadcast %cst_17 : f32 to vector<8x128xf32>
    %40 = arith.subf %39, %31 : vector<8x128xf32>
    %41 = arith.mulf %40, %38 : vector<8x128xf32>
    %42 = arith.mulf %31, %9 : vector<8x128xf32>
    %43 = arith.addf %41, %42 : vector<8x128xf32>
    %44 = arith.index_cast %11 : i32 to index
    %c0_18 = arith.constant 0 : index
    %45 = vector.load %arg12[%44, %c0_18] : memref<64x128xf32, #tpu.memory_space<vmem>>, vector<8x128xf32>
    tpu.vector_store %arg12[%44, %c0_18], %43 {strides = array<i32>} : memref<64x128xf32, #tpu.memory_space<vmem>>, vector<8x128xf32>,
    %c1_i32 = arith.constant 1 : i32
    %c8_i32_19 = arith.constant 8 : i32
    %46 = arith.muli %c1_i32, %c8_i32_19 : i32
    %47 = tpu.assume_multiple %46, 8 : i32
    %48 = arith.index_cast %47 : i32 to index
    %c0_20 = arith.constant 0 : index
    %49 = vector.load %arg11[%48, %c0_20] : memref<64x384xf32, #tpu.memory_space<vmem>>, vector<8x384xf32>
    %50 = arith.truncf %43 : vector<8x128xf32> to vector<8x128xbf16>
    %cst_21 = arith.constant dense<0.000000e+00> : vector<8x384xf32>
    %51 = tpu.matmul %50, %7, %cst_21 {dimension_numbers = #tpu.dot_dimension_numbers<[1], [0], [0], [1], [0, 0, 1, 1], [], []>} : vector<8x128xbf16>, vector<128x384xbf16>, vector<8x384xf32> -> vector<8x384xf32>
    %52 = vector.extract_strided_slice %49 {offsets = [0, 0], sizes = [8, 128], strides = [1, 1]} : vector<8x384xf32> to vector<8x128xf32>
    %53 = vector.extract_strided_slice %51 {offsets = [0, 0], sizes = [8, 128], strides = [1, 1]} : vector<8x384xf32> to vector<8x128xf32>
    %54 = arith.addf %52, %53 : vector<8x128xf32>
    %55 = arith.negf %54 : vector<8x128xf32>
    %56 = math.exp %55 : vector<8x128xf32>
    %cst_22 = arith.constant 1.000000e+00 : f32
    %57 = vector.broadcast %cst_22 : f32 to vector<8x128xf32>
    %58 = arith.addf %57, %56 : vector<8x128xf32>
    %59 = arith.divf %57, %58 : vector<8x128xf32>
    %60 = vector.extract_strided_slice %49 {offsets = [0, 128], sizes = [8, 128], strides = [1, 1]} : vector<8x384xf32> to vector<8x128xf32>
    %61 = vector.extract_strided_slice %51 {offsets = [0, 128], sizes = [8, 128], strides = [1, 1]} : vector<8x384xf32> to vector<8x128xf32>
    %62 = arith.addf %60, %61 : vector<8x128xf32>
    %63 = arith.negf %62 : vector<8x128xf32>
    %64 = math.exp %63 : vector<8x128xf32>
    %cst_23 = arith.constant 1.000000e+00 : f32
    %65 = vector.broadcast %cst_23 : f32 to vector<8x128xf32>
    %66 = arith.addf %65, %64 : vector<8x128xf32>
    %67 = arith.divf %65, %66 : vector<8x128xf32>
    %68 = vector.extract_strided_slice %49 {offsets = [0, 256], sizes = [8, 128], strides = [1, 1]} : vector<8x384xf32> to vector<8x128xf32>
    %69 = vector.extract_strided_slice %51 {offsets = [0, 256], sizes = [8, 128], strides = [1, 1]} : vector<8x384xf32> to vector<8x128xf32>
    %70 = vector.broadcast %8 : vector<1x128xf32> to vector<8x128xf32>
    %71 = arith.addf %69, %70 : vector<8x128xf32>
    %72 = arith.mulf %59, %71 : vector<8x128xf32>
    %73 = arith.addf %68, %72 : vector<8x128xf32>
    %74 = math.tanh %73 : vector<8x128xf32>
    %cst_24 = arith.constant 1.000000e+00 : f32
    %75 = vector.broadcast %cst_24 : f32 to vector<8x128xf32>
    %76 = arith.subf %75, %67 : vector<8x128xf32>
    %77 = arith.mulf %76, %74 : vector<8x128xf32>
    %78 = arith.mulf %67, %43 : vector<8x128xf32>
    %79 = arith.addf %77, %78 : vector<8x128xf32>
    %80 = arith.index_cast %47 : i32 to index
    %c0_25 = arith.constant 0 : index
    %81 = vector.load %arg12[%80, %c0_25] : memref<64x128xf32, #tpu.memory_space<vmem>>, vector<8x128xf32>
    tpu.vector_store %arg12[%80, %c0_25], %79 {strides = array<i32>} : memref<64x128xf32, #tpu.memory_space<vmem>>, vector<8x128xf32>,
    %c2_i32 = arith.constant 2 : i32
    %c8_i32_26 = arith.constant 8 : i32
    %82 = arith.muli %c2_i32, %c8_i32_26 : i32
    %83 = tpu.assume_multiple %82, 8 : i32
    %84 = arith.index_cast %83 : i32 to index
    %c0_27 = arith.constant 0 : index
    %85 = vector.load %arg11[%84, %c0_27] : memref<64x384xf32, #tpu.memory_space<vmem>>, vector<8x384xf32>
    %86 = arith.truncf %79 : vector<8x128xf32> to vector<8x128xbf16>
    %cst_28 = arith.constant dense<0.000000e+00> : vector<8x384xf32>
    %87 = tpu.matmul %86, %7, %cst_28 {dimension_numbers = #tpu.dot_dimension_numbers<[1], [0], [0], [1], [0, 0, 1, 1], [], []>} : vector<8x128xbf16>, vector<128x384xbf16>, vector<8x384xf32> -> vector<8x384xf32>
    %88 = vector.extract_strided_slice %85 {offsets = [0, 0], sizes = [8, 128], strides = [1, 1]} : vector<8x384xf32> to vector<8x128xf32>
    %89 = vector.extract_strided_slice %87 {offsets = [0, 0], sizes = [8, 128], strides = [1, 1]} : vector<8x384xf32> to vector<8x128xf32>
    %90 = arith.addf %88, %89 : vector<8x128xf32>
    %91 = arith.negf %90 : vector<8x128xf32>
    %92 = math.exp %91 : vector<8x128xf32>
    %cst_29 = arith.constant 1.000000e+00 : f32
    %93 = vector.broadcast %cst_29 : f32 to vector<8x128xf32>
    %94 = arith.addf %93, %92 : vector<8x128xf32>
    %95 = arith.divf %93, %94 : vector<8x128xf32>
    %96 = vector.extract_strided_slice %85 {offsets = [0, 128], sizes = [8, 128], strides = [1, 1]} : vector<8x384xf32> to vector<8x128xf32>
    %97 = vector.extract_strided_slice %87 {offsets = [0, 128], sizes = [8, 128], strides = [1, 1]} : vector<8x384xf32> to vector<8x128xf32>
    %98 = arith.addf %96, %97 : vector<8x128xf32>
    %99 = arith.negf %98 : vector<8x128xf32>
    %100 = math.exp %99 : vector<8x128xf32>
    %cst_30 = arith.constant 1.000000e+00 : f32
    %101 = vector.broadcast %cst_30 : f32 to vector<8x128xf32>
    %102 = arith.addf %101, %100 : vector<8x128xf32>
    %103 = arith.divf %101, %102 : vector<8x128xf32>
    %104 = vector.extract_strided_slice %85 {offsets = [0, 256], sizes = [8, 128], strides = [1, 1]} : vector<8x384xf32> to vector<8x128xf32>
    %105 = vector.extract_strided_slice %87 {offsets = [0, 256], sizes = [8, 128], strides = [1, 1]} : vector<8x384xf32> to vector<8x128xf32>
    %106 = vector.broadcast %8 : vector<1x128xf32> to vector<8x128xf32>
    %107 = arith.addf %105, %106 : vector<8x128xf32>
    %108 = arith.mulf %95, %107 : vector<8x128xf32>
    %109 = arith.addf %104, %108 : vector<8x128xf32>
    %110 = math.tanh %109 : vector<8x128xf32>
    %cst_31 = arith.constant 1.000000e+00 : f32
    %111 = vector.broadcast %cst_31 : f32 to vector<8x128xf32>
    %112 = arith.subf %111, %103 : vector<8x128xf32>
    %113 = arith.mulf %112, %110 : vector<8x128xf32>
    %114 = arith.mulf %103, %79 : vector<8x128xf32>
    %115 = arith.addf %113, %114 : vector<8x128xf32>
    %116 = arith.index_cast %83 : i32 to index
    %c0_32 = arith.constant 0 : index
    %117 = vector.load %arg12[%116, %c0_32] : memref<64x128xf32, #tpu.memory_space<vmem>>, vector<8x128xf32>
    tpu.vector_store %arg12[%116, %c0_32], %115 {strides = array<i32>} : memref<64x128xf32, #tpu.memory_space<vmem>>, vector<8x128xf32>,
    %c3_i32 = arith.constant 3 : i32
    %c8_i32_33 = arith.constant 8 : i32
    %118 = arith.muli %c3_i32, %c8_i32_33 : i32
    %119 = tpu.assume_multiple %118, 8 : i32
    %120 = arith.index_cast %119 : i32 to index
    %c0_34 = arith.constant 0 : index
    %121 = vector.load %arg11[%120, %c0_34] : memref<64x384xf32, #tpu.memory_space<vmem>>, vector<8x384xf32>
    %122 = arith.truncf %115 : vector<8x128xf32> to vector<8x128xbf16>
    %cst_35 = arith.constant dense<0.000000e+00> : vector<8x384xf32>
    %123 = tpu.matmul %122, %7, %cst_35 {dimension_numbers = #tpu.dot_dimension_numbers<[1], [0], [0], [1], [0, 0, 1, 1], [], []>} : vector<8x128xbf16>, vector<128x384xbf16>, vector<8x384xf32> -> vector<8x384xf32>
    %124 = vector.extract_strided_slice %121 {offsets = [0, 0], sizes = [8, 128], strides = [1, 1]} : vector<8x384xf32> to vector<8x128xf32>
    %125 = vector.extract_strided_slice %123 {offsets = [0, 0], sizes = [8, 128], strides = [1, 1]} : vector<8x384xf32> to vector<8x128xf32>
    %126 = arith.addf %124, %125 : vector<8x128xf32>
    %127 = arith.negf %126 : vector<8x128xf32>
    %128 = math.exp %127 : vector<8x128xf32>
    %cst_36 = arith.constant 1.000000e+00 : f32
    %129 = vector.broadcast %cst_36 : f32 to vector<8x128xf32>
    %130 = arith.addf %129, %128 : vector<8x128xf32>
    %131 = arith.divf %129, %130 : vector<8x128xf32>
    %132 = vector.extract_strided_slice %121 {offsets = [0, 128], sizes = [8, 128], strides = [1, 1]} : vector<8x384xf32> to vector<8x128xf32>
    %133 = vector.extract_strided_slice %123 {offsets = [0, 128], sizes = [8, 128], strides = [1, 1]} : vector<8x384xf32> to vector<8x128xf32>
    %134 = arith.addf %132, %133 : vector<8x128xf32>
    %135 = arith.negf %134 : vector<8x128xf32>
    %136 = math.exp %135 : vector<8x128xf32>
    %cst_37 = arith.constant 1.000000e+00 : f32
    %137 = vector.broadcast %cst_37 : f32 to vector<8x128xf32>
    %138 = arith.addf %137, %136 : vector<8x128xf32>
    %139 = arith.divf %137, %138 : vector<8x128xf32>
    %140 = vector.extract_strided_slice %121 {offsets = [0, 256], sizes = [8, 128], strides = [1, 1]} : vector<8x384xf32> to vector<8x128xf32>
    %141 = vector.extract_strided_slice %123 {offsets = [0, 256], sizes = [8, 128], strides = [1, 1]} : vector<8x384xf32> to vector<8x128xf32>
    %142 = vector.broadcast %8 : vector<1x128xf32> to vector<8x128xf32>
    %143 = arith.addf %141, %142 : vector<8x128xf32>
    %144 = arith.mulf %131, %143 : vector<8x128xf32>
    %145 = arith.addf %140, %144 : vector<8x128xf32>
    %146 = math.tanh %145 : vector<8x128xf32>
    %cst_38 = arith.constant 1.000000e+00 : f32
    %147 = vector.broadcast %cst_38 : f32 to vector<8x128xf32>
    %148 = arith.subf %147, %139 : vector<8x128xf32>
    %149 = arith.mulf %148, %146 : vector<8x128xf32>
    %150 = arith.mulf %139, %115 : vector<8x128xf32>
    %151 = arith.addf %149, %150 : vector<8x128xf32>
    %152 = arith.index_cast %119 : i32 to index
    %c0_39 = arith.constant 0 : index
    %153 = vector.load %arg12[%152, %c0_39] : memref<64x128xf32, #tpu.memory_space<vmem>>, vector<8x128xf32>
    tpu.vector_store %arg12[%152, %c0_39], %151 {strides = array<i32>} : memref<64x128xf32, #tpu.memory_space<vmem>>, vector<8x128xf32>,
    %c4_i32 = arith.constant 4 : i32
    %c8_i32_40 = arith.constant 8 : i32
    %154 = arith.muli %c4_i32, %c8_i32_40 : i32
    %155 = tpu.assume_multiple %154, 8 : i32
    %156 = arith.index_cast %155 : i32 to index
    %c0_41 = arith.constant 0 : index
    %157 = vector.load %arg11[%156, %c0_41] : memref<64x384xf32, #tpu.memory_space<vmem>>, vector<8x384xf32>
    %158 = arith.truncf %151 : vector<8x128xf32> to vector<8x128xbf16>
    %cst_42 = arith.constant dense<0.000000e+00> : vector<8x384xf32>
    %159 = tpu.matmul %158, %7, %cst_42 {dimension_numbers = #tpu.dot_dimension_numbers<[1], [0], [0], [1], [0, 0, 1, 1], [], []>} : vector<8x128xbf16>, vector<128x384xbf16>, vector<8x384xf32> -> vector<8x384xf32>
    %160 = vector.extract_strided_slice %157 {offsets = [0, 0], sizes = [8, 128], strides = [1, 1]} : vector<8x384xf32> to vector<8x128xf32>
    %161 = vector.extract_strided_slice %159 {offsets = [0, 0], sizes = [8, 128], strides = [1, 1]} : vector<8x384xf32> to vector<8x128xf32>
    %162 = arith.addf %160, %161 : vector<8x128xf32>
    %163 = arith.negf %162 : vector<8x128xf32>
    %164 = math.exp %163 : vector<8x128xf32>
    %cst_43 = arith.constant 1.000000e+00 : f32
    %165 = vector.broadcast %cst_43 : f32 to vector<8x128xf32>
    %166 = arith.addf %165, %164 : vector<8x128xf32>
    %167 = arith.divf %165, %166 : vector<8x128xf32>
    %168 = vector.extract_strided_slice %157 {offsets = [0, 128], sizes = [8, 128], strides = [1, 1]} : vector<8x384xf32> to vector<8x128xf32>
    %169 = vector.extract_strided_slice %159 {offsets = [0, 128], sizes = [8, 128], strides = [1, 1]} : vector<8x384xf32> to vector<8x128xf32>
    %170 = arith.addf %168, %169 : vector<8x128xf32>
    %171 = arith.negf %170 : vector<8x128xf32>
    %172 = math.exp %171 : vector<8x128xf32>
    %cst_44 = arith.constant 1.000000e+00 : f32
    %173 = vector.broadcast %cst_44 : f32 to vector<8x128xf32>
    %174 = arith.addf %173, %172 : vector<8x128xf32>
    %175 = arith.divf %173, %174 : vector<8x128xf32>
    %176 = vector.extract_strided_slice %157 {offsets = [0, 256], sizes = [8, 128], strides = [1, 1]} : vector<8x384xf32> to vector<8x128xf32>
    %177 = vector.extract_strided_slice %159 {offsets = [0, 256], sizes = [8, 128], strides = [1, 1]} : vector<8x384xf32> to vector<8x128xf32>
    %178 = vector.broadcast %8 : vector<1x128xf32> to vector<8x128xf32>
    %179 = arith.addf %177, %178 : vector<8x128xf32>
    %180 = arith.mulf %167, %179 : vector<8x128xf32>
    %181 = arith.addf %176, %180 : vector<8x128xf32>
    %182 = math.tanh %181 : vector<8x128xf32>
    %cst_45 = arith.constant 1.000000e+00 : f32
    %183 = vector.broadcast %cst_45 : f32 to vector<8x128xf32>
    %184 = arith.subf %183, %175 : vector<8x128xf32>
    %185 = arith.mulf %184, %182 : vector<8x128xf32>
    %186 = arith.mulf %175, %151 : vector<8x128xf32>
    %187 = arith.addf %185, %186 : vector<8x128xf32>
    %188 = arith.index_cast %155 : i32 to index
    %c0_46 = arith.constant 0 : index
    %189 = vector.load %arg12[%188, %c0_46] : memref<64x128xf32, #tpu.memory_space<vmem>>, vector<8x128xf32>
    tpu.vector_store %arg12[%188, %c0_46], %187 {strides = array<i32>} : memref<64x128xf32, #tpu.memory_space<vmem>>, vector<8x128xf32>,
    %c5_i32 = arith.constant 5 : i32
    %c8_i32_47 = arith.constant 8 : i32
    %190 = arith.muli %c5_i32, %c8_i32_47 : i32
    %191 = tpu.assume_multiple %190, 8 : i32
    %192 = arith.index_cast %191 : i32 to index
    %c0_48 = arith.constant 0 : index
    %193 = vector.load %arg11[%192, %c0_48] : memref<64x384xf32, #tpu.memory_space<vmem>>, vector<8x384xf32>
    %194 = arith.truncf %187 : vector<8x128xf32> to vector<8x128xbf16>
    %cst_49 = arith.constant dense<0.000000e+00> : vector<8x384xf32>
    %195 = tpu.matmul %194, %7, %cst_49 {dimension_numbers = #tpu.dot_dimension_numbers<[1], [0], [0], [1], [0, 0, 1, 1], [], []>} : vector<8x128xbf16>, vector<128x384xbf16>, vector<8x384xf32> -> vector<8x384xf32>
    %196 = vector.extract_strided_slice %193 {offsets = [0, 0], sizes = [8, 128], strides = [1, 1]} : vector<8x384xf32> to vector<8x128xf32>
    %197 = vector.extract_strided_slice %195 {offsets = [0, 0], sizes = [8, 128], strides = [1, 1]} : vector<8x384xf32> to vector<8x128xf32>
    %198 = arith.addf %196, %197 : vector<8x128xf32>
    %199 = arith.negf %198 : vector<8x128xf32>
    %200 = math.exp %199 : vector<8x128xf32>
    %cst_50 = arith.constant 1.000000e+00 : f32
    %201 = vector.broadcast %cst_50 : f32 to vector<8x128xf32>
    %202 = arith.addf %201, %200 : vector<8x128xf32>
    %203 = arith.divf %201, %202 : vector<8x128xf32>
    %204 = vector.extract_strided_slice %193 {offsets = [0, 128], sizes = [8, 128], strides = [1, 1]} : vector<8x384xf32> to vector<8x128xf32>
    %205 = vector.extract_strided_slice %195 {offsets = [0, 128], sizes = [8, 128], strides = [1, 1]} : vector<8x384xf32> to vector<8x128xf32>
    %206 = arith.addf %204, %205 : vector<8x128xf32>
    %207 = arith.negf %206 : vector<8x128xf32>
    %208 = math.exp %207 : vector<8x128xf32>
    %cst_51 = arith.constant 1.000000e+00 : f32
    %209 = vector.broadcast %cst_51 : f32 to vector<8x128xf32>
    %210 = arith.addf %209, %208 : vector<8x128xf32>
    %211 = arith.divf %209, %210 : vector<8x128xf32>
    %212 = vector.extract_strided_slice %193 {offsets = [0, 256], sizes = [8, 128], strides = [1, 1]} : vector<8x384xf32> to vector<8x128xf32>
    %213 = vector.extract_strided_slice %195 {offsets = [0, 256], sizes = [8, 128], strides = [1, 1]} : vector<8x384xf32> to vector<8x128xf32>
    %214 = vector.broadcast %8 : vector<1x128xf32> to vector<8x128xf32>
    %215 = arith.addf %213, %214 : vector<8x128xf32>
    %216 = arith.mulf %203, %215 : vector<8x128xf32>
    %217 = arith.addf %212, %216 : vector<8x128xf32>
    %218 = math.tanh %217 : vector<8x128xf32>
    %cst_52 = arith.constant 1.000000e+00 : f32
    %219 = vector.broadcast %cst_52 : f32 to vector<8x128xf32>
    %220 = arith.subf %219, %211 : vector<8x128xf32>
    %221 = arith.mulf %220, %218 : vector<8x128xf32>
    %222 = arith.mulf %211, %187 : vector<8x128xf32>
    %223 = arith.addf %221, %222 : vector<8x128xf32>
    %224 = arith.index_cast %191 : i32 to index
    %c0_53 = arith.constant 0 : index
    %225 = vector.load %arg12[%224, %c0_53] : memref<64x128xf32, #tpu.memory_space<vmem>>, vector<8x128xf32>
    tpu.vector_store %arg12[%224, %c0_53], %223 {strides = array<i32>} : memref<64x128xf32, #tpu.memory_space<vmem>>, vector<8x128xf32>,
    %c6_i32 = arith.constant 6 : i32
    %c8_i32_54 = arith.constant 8 : i32
    %226 = arith.muli %c6_i32, %c8_i32_54 : i32
    %227 = tpu.assume_multiple %226, 8 : i32
    %228 = arith.index_cast %227 : i32 to index
    %c0_55 = arith.constant 0 : index
    %229 = vector.load %arg11[%228, %c0_55] : memref<64x384xf32, #tpu.memory_space<vmem>>, vector<8x384xf32>
    %230 = arith.truncf %223 : vector<8x128xf32> to vector<8x128xbf16>
    %cst_56 = arith.constant dense<0.000000e+00> : vector<8x384xf32>
    %231 = tpu.matmul %230, %7, %cst_56 {dimension_numbers = #tpu.dot_dimension_numbers<[1], [0], [0], [1], [0, 0, 1, 1], [], []>} : vector<8x128xbf16>, vector<128x384xbf16>, vector<8x384xf32> -> vector<8x384xf32>
    %232 = vector.extract_strided_slice %229 {offsets = [0, 0], sizes = [8, 128], strides = [1, 1]} : vector<8x384xf32> to vector<8x128xf32>
    %233 = vector.extract_strided_slice %231 {offsets = [0, 0], sizes = [8, 128], strides = [1, 1]} : vector<8x384xf32> to vector<8x128xf32>
    %234 = arith.addf %232, %233 : vector<8x128xf32>
    %235 = arith.negf %234 : vector<8x128xf32>
    %236 = math.exp %235 : vector<8x128xf32>
    %cst_57 = arith.constant 1.000000e+00 : f32
    %237 = vector.broadcast %cst_57 : f32 to vector<8x128xf32>
    %238 = arith.addf %237, %236 : vector<8x128xf32>
    %239 = arith.divf %237, %238 : vector<8x128xf32>
    %240 = vector.extract_strided_slice %229 {offsets = [0, 128], sizes = [8, 128], strides = [1, 1]} : vector<8x384xf32> to vector<8x128xf32>
    %241 = vector.extract_strided_slice %231 {offsets = [0, 128], sizes = [8, 128], strides = [1, 1]} : vector<8x384xf32> to vector<8x128xf32>
    %242 = arith.addf %240, %241 : vector<8x128xf32>
    %243 = arith.negf %242 : vector<8x128xf32>
    %244 = math.exp %243 : vector<8x128xf32>
    %cst_58 = arith.constant 1.000000e+00 : f32
    %245 = vector.broadcast %cst_58 : f32 to vector<8x128xf32>
    %246 = arith.addf %245, %244 : vector<8x128xf32>
    %247 = arith.divf %245, %246 : vector<8x128xf32>
    %248 = vector.extract_strided_slice %229 {offsets = [0, 256], sizes = [8, 128], strides = [1, 1]} : vector<8x384xf32> to vector<8x128xf32>
    %249 = vector.extract_strided_slice %231 {offsets = [0, 256], sizes = [8, 128], strides = [1, 1]} : vector<8x384xf32> to vector<8x128xf32>
    %250 = vector.broadcast %8 : vector<1x128xf32> to vector<8x128xf32>
    %251 = arith.addf %249, %250 : vector<8x128xf32>
    %252 = arith.mulf %239, %251 : vector<8x128xf32>
    %253 = arith.addf %248, %252 : vector<8x128xf32>
    %254 = math.tanh %253 : vector<8x128xf32>
    %cst_59 = arith.constant 1.000000e+00 : f32
    %255 = vector.broadcast %cst_59 : f32 to vector<8x128xf32>
    %256 = arith.subf %255, %247 : vector<8x128xf32>
    %257 = arith.mulf %256, %254 : vector<8x128xf32>
    %258 = arith.mulf %247, %223 : vector<8x128xf32>
    %259 = arith.addf %257, %258 : vector<8x128xf32>
    %260 = arith.index_cast %227 : i32 to index
    %c0_60 = arith.constant 0 : index
    %261 = vector.load %arg12[%260, %c0_60] : memref<64x128xf32, #tpu.memory_space<vmem>>, vector<8x128xf32>
    tpu.vector_store %arg12[%260, %c0_60], %259 {strides = array<i32>} : memref<64x128xf32, #tpu.memory_space<vmem>>, vector<8x128xf32>,
    %c7_i32 = arith.constant 7 : i32
    %c8_i32_61 = arith.constant 8 : i32
    %262 = arith.muli %c7_i32, %c8_i32_61 : i32
    %263 = tpu.assume_multiple %262, 8 : i32
    %264 = arith.index_cast %263 : i32 to index
    %c0_62 = arith.constant 0 : index
    %265 = vector.load %arg11[%264, %c0_62] : memref<64x384xf32, #tpu.memory_space<vmem>>, vector<8x384xf32>
    %266 = arith.truncf %259 : vector<8x128xf32> to vector<8x128xbf16>
    %cst_63 = arith.constant dense<0.000000e+00> : vector<8x384xf32>
    %267 = tpu.matmul %266, %7, %cst_63 {dimension_numbers = #tpu.dot_dimension_numbers<[1], [0], [0], [1], [0, 0, 1, 1], [], []>} : vector<8x128xbf16>, vector<128x384xbf16>, vector<8x384xf32> -> vector<8x384xf32>
    %268 = vector.extract_strided_slice %265 {offsets = [0, 0], sizes = [8, 128], strides = [1, 1]} : vector<8x384xf32> to vector<8x128xf32>
    %269 = vector.extract_strided_slice %267 {offsets = [0, 0], sizes = [8, 128], strides = [1, 1]} : vector<8x384xf32> to vector<8x128xf32>
    %270 = arith.addf %268, %269 : vector<8x128xf32>
    %271 = arith.negf %270 : vector<8x128xf32>
    %272 = math.exp %271 : vector<8x128xf32>
    %cst_64 = arith.constant 1.000000e+00 : f32
    %273 = vector.broadcast %cst_64 : f32 to vector<8x128xf32>
    %274 = arith.addf %273, %272 : vector<8x128xf32>
    %275 = arith.divf %273, %274 : vector<8x128xf32>
    %276 = vector.extract_strided_slice %265 {offsets = [0, 128], sizes = [8, 128], strides = [1, 1]} : vector<8x384xf32> to vector<8x128xf32>
    %277 = vector.extract_strided_slice %267 {offsets = [0, 128], sizes = [8, 128], strides = [1, 1]} : vector<8x384xf32> to vector<8x128xf32>
    %278 = arith.addf %276, %277 : vector<8x128xf32>
    %279 = arith.negf %278 : vector<8x128xf32>
    %280 = math.exp %279 : vector<8x128xf32>
    %cst_65 = arith.constant 1.000000e+00 : f32
    %281 = vector.broadcast %cst_65 : f32 to vector<8x128xf32>
    %282 = arith.addf %281, %280 : vector<8x128xf32>
    %283 = arith.divf %281, %282 : vector<8x128xf32>
    %284 = vector.extract_strided_slice %265 {offsets = [0, 256], sizes = [8, 128], strides = [1, 1]} : vector<8x384xf32> to vector<8x128xf32>
    %285 = vector.extract_strided_slice %267 {offsets = [0, 256], sizes = [8, 128], strides = [1, 1]} : vector<8x384xf32> to vector<8x128xf32>
    %286 = vector.broadcast %8 : vector<1x128xf32> to vector<8x128xf32>
    %287 = arith.addf %285, %286 : vector<8x128xf32>
    %288 = arith.mulf %275, %287 : vector<8x128xf32>
    %289 = arith.addf %284, %288 : vector<8x128xf32>
    %290 = math.tanh %289 : vector<8x128xf32>
    %cst_66 = arith.constant 1.000000e+00 : f32
    %291 = vector.broadcast %cst_66 : f32 to vector<8x128xf32>
    %292 = arith.subf %291, %283 : vector<8x128xf32>
    %293 = arith.mulf %292, %290 : vector<8x128xf32>
    %294 = arith.mulf %283, %259 : vector<8x128xf32>
    %295 = arith.addf %293, %294 : vector<8x128xf32>
    %296 = arith.index_cast %263 : i32 to index
    %c0_67 = arith.constant 0 : index
    %297 = vector.load %arg12[%296, %c0_67] : memref<64x128xf32, #tpu.memory_space<vmem>>, vector<8x128xf32>
    tpu.vector_store %arg12[%296, %c0_67], %295 {strides = array<i32>} : memref<64x128xf32, #tpu.memory_space<vmem>>, vector<8x128xf32>,
    %c8_i32_68 = arith.constant 8 : i32
    %c0_69 = arith.constant 0 : index
    %c0_70 = arith.constant 0 : index
    %298 = vector.load %arg12[%c0_69, %c0_70] : memref<64x128xf32, #tpu.memory_space<vmem>>, vector<64x128xf32>
    %299 = arith.truncf %298 : vector<64x128xf32> to vector<64x128xbf16>
    %c0_71 = arith.constant 0 : index
    %c0_72 = arith.constant 0 : index
    %300 = vector.load %arg6[%c0_71, %c0_72] : memref<128x384xbf16, #tpu.memory_space<vmem>>, vector<128x384xbf16>
    %cst_73 = arith.constant dense<0.000000e+00> : vector<64x384xf32>
    %301 = tpu.matmul %299, %300, %cst_73 {dimension_numbers = #tpu.dot_dimension_numbers<[1], [0], [0], [1], [0, 0, 1, 1], [], []>} : vector<64x128xbf16>, vector<128x384xbf16>, vector<64x384xf32> -> vector<64x384xf32>
    %c0_74 = arith.constant 0 : index
    %c0_75 = arith.constant 0 : index
    %302 = vector.load %arg8[%c0_74, %c0_75] : memref<1x384xf32, #tpu.memory_space<vmem>>, vector<1x384xf32>
    %303 = vector.broadcast %302 : vector<1x384xf32> to vector<64x384xf32>
    %304 = arith.addf %301, %303 : vector<64x384xf32>
    %c0_76 = arith.constant 0 : index
    %c0_77 = arith.constant 0 : index
    %305 = vector.load %arg11[%c0_76, %c0_77] : memref<64x384xf32, #tpu.memory_space<vmem>>, vector<64x384xf32>
    tpu.vector_store %arg11[%c0_76, %c0_77], %304 {strides = array<i32>} : memref<64x384xf32, #tpu.memory_space<vmem>>, vector<64x384xf32>,
    %c0_78 = arith.constant 0 : index
    %c0_79 = arith.constant 0 : index
    %306 = vector.load %arg7[%c0_78, %c0_79] : memref<128x384xbf16, #tpu.memory_space<vmem>>, vector<128x384xbf16>
    %c0_80 = arith.constant 0 : index
    %c0_81 = arith.constant 0 : index
    %307 = vector.load %arg9[%c0_80, %c0_81] : memref<1x128xf32, #tpu.memory_space<vmem>>, vector<1x128xf32>
    %c0_82 = arith.constant 0 : index
    %c0_83 = arith.constant 0 : index
    %308 = vector.load %arg1[%c0_82, %c0_83] : memref<8x128xf32, #tpu.memory_space<vmem>>, vector<8x128xf32>
    %c0_i32_84 = arith.constant 0 : i32
    %c8_i32_85 = arith.constant 8 : i32
    %309 = arith.muli %c0_i32_84, %c8_i32_85 : i32
    %310 = tpu.assume_multiple %309, 8 : i32
    %311 = arith.index_cast %310 : i32 to index
    %c0_86 = arith.constant 0 : index
    %312 = vector.load %arg11[%311, %c0_86] : memref<64x384xf32, #tpu.memory_space<vmem>>, vector<8x384xf32>
    %313 = arith.truncf %308 : vector<8x128xf32> to vector<8x128xbf16>
    %cst_87 = arith.constant dense<0.000000e+00> : vector<8x384xf32>
    %314 = tpu.matmul %313, %306, %cst_87 {dimension_numbers = #tpu.dot_dimension_numbers<[1], [0], [0], [1], [0, 0, 1, 1], [], []>} : vector<8x128xbf16>, vector<128x384xbf16>, vector<8x384xf32> -> vector<8x384xf32>
    %315 = vector.extract_strided_slice %312 {offsets = [0, 0], sizes = [8, 128], strides = [1, 1]} : vector<8x384xf32> to vector<8x128xf32>
    %316 = vector.extract_strided_slice %314 {offsets = [0, 0], sizes = [8, 128], strides = [1, 1]} : vector<8x384xf32> to vector<8x128xf32>
    %317 = arith.addf %315, %316 : vector<8x128xf32>
    %318 = arith.negf %317 : vector<8x128xf32>
    %319 = math.exp %318 : vector<8x128xf32>
    %cst_88 = arith.constant 1.000000e+00 : f32
    %320 = vector.broadcast %cst_88 : f32 to vector<8x128xf32>
    %321 = arith.addf %320, %319 : vector<8x128xf32>
    %322 = arith.divf %320, %321 : vector<8x128xf32>
    %323 = vector.extract_strided_slice %312 {offsets = [0, 128], sizes = [8, 128], strides = [1, 1]} : vector<8x384xf32> to vector<8x128xf32>
    %324 = vector.extract_strided_slice %314 {offsets = [0, 128], sizes = [8, 128], strides = [1, 1]} : vector<8x384xf32> to vector<8x128xf32>
    %325 = arith.addf %323, %324 : vector<8x128xf32>
    %326 = arith.negf %325 : vector<8x128xf32>
    %327 = math.exp %326 : vector<8x128xf32>
    %cst_89 = arith.constant 1.000000e+00 : f32
    %328 = vector.broadcast %cst_89 : f32 to vector<8x128xf32>
    %329 = arith.addf %328, %327 : vector<8x128xf32>
    %330 = arith.divf %328, %329 : vector<8x128xf32>
    %331 = vector.extract_strided_slice %312 {offsets = [0, 256], sizes = [8, 128], strides = [1, 1]} : vector<8x384xf32> to vector<8x128xf32>
    %332 = vector.extract_strided_slice %314 {offsets = [0, 256], sizes = [8, 128], strides = [1, 1]} : vector<8x384xf32> to vector<8x128xf32>
    %333 = vector.broadcast %307 : vector<1x128xf32> to vector<8x128xf32>
    %334 = arith.addf %332, %333 : vector<8x128xf32>
    %335 = arith.mulf %322, %334 : vector<8x128xf32>
    %336 = arith.addf %331, %335 : vector<8x128xf32>
    %337 = math.tanh %336 : vector<8x128xf32>
    %cst_90 = arith.constant 1.000000e+00 : f32
    %338 = vector.broadcast %cst_90 : f32 to vector<8x128xf32>
    %339 = arith.subf %338, %330 : vector<8x128xf32>
    %340 = arith.mulf %339, %337 : vector<8x128xf32>
    %341 = arith.mulf %330, %308 : vector<8x128xf32>
    %342 = arith.addf %340, %341 : vector<8x128xf32>
    %343 = arith.index_cast %310 : i32 to index
    %c0_91 = arith.constant 0 : index
    %344 = vector.load %arg12[%343, %c0_91] : memref<64x128xf32, #tpu.memory_space<vmem>>, vector<8x128xf32>
    tpu.vector_store %arg12[%343, %c0_91], %342 {strides = array<i32>} : memref<64x128xf32, #tpu.memory_space<vmem>>, vector<8x128xf32>,
    %c1_i32_92 = arith.constant 1 : i32
    %c8_i32_93 = arith.constant 8 : i32
    %345 = arith.muli %c1_i32_92, %c8_i32_93 : i32
    %346 = tpu.assume_multiple %345, 8 : i32
    %347 = arith.index_cast %346 : i32 to index
    %c0_94 = arith.constant 0 : index
    %348 = vector.load %arg11[%347, %c0_94] : memref<64x384xf32, #tpu.memory_space<vmem>>, vector<8x384xf32>
    %349 = arith.truncf %342 : vector<8x128xf32> to vector<8x128xbf16>
    %cst_95 = arith.constant dense<0.000000e+00> : vector<8x384xf32>
    %350 = tpu.matmul %349, %306, %cst_95 {dimension_numbers = #tpu.dot_dimension_numbers<[1], [0], [0], [1], [0, 0, 1, 1], [], []>} : vector<8x128xbf16>, vector<128x384xbf16>, vector<8x384xf32> -> vector<8x384xf32>
    %351 = vector.extract_strided_slice %348 {offsets = [0, 0], sizes = [8, 128], strides = [1, 1]} : vector<8x384xf32> to vector<8x128xf32>
    %352 = vector.extract_strided_slice %350 {offsets = [0, 0], sizes = [8, 128], strides = [1, 1]} : vector<8x384xf32> to vector<8x128xf32>
    %353 = arith.addf %351, %352 : vector<8x128xf32>
    %354 = arith.negf %353 : vector<8x128xf32>
    %355 = math.exp %354 : vector<8x128xf32>
    %cst_96 = arith.constant 1.000000e+00 : f32
    %356 = vector.broadcast %cst_96 : f32 to vector<8x128xf32>
    %357 = arith.addf %356, %355 : vector<8x128xf32>
    %358 = arith.divf %356, %357 : vector<8x128xf32>
    %359 = vector.extract_strided_slice %348 {offsets = [0, 128], sizes = [8, 128], strides = [1, 1]} : vector<8x384xf32> to vector<8x128xf32>
    %360 = vector.extract_strided_slice %350 {offsets = [0, 128], sizes = [8, 128], strides = [1, 1]} : vector<8x384xf32> to vector<8x128xf32>
    %361 = arith.addf %359, %360 : vector<8x128xf32>
    %362 = arith.negf %361 : vector<8x128xf32>
    %363 = math.exp %362 : vector<8x128xf32>
    %cst_97 = arith.constant 1.000000e+00 : f32
    %364 = vector.broadcast %cst_97 : f32 to vector<8x128xf32>
    %365 = arith.addf %364, %363 : vector<8x128xf32>
    %366 = arith.divf %364, %365 : vector<8x128xf32>
    %367 = vector.extract_strided_slice %348 {offsets = [0, 256], sizes = [8, 128], strides = [1, 1]} : vector<8x384xf32> to vector<8x128xf32>
    %368 = vector.extract_strided_slice %350 {offsets = [0, 256], sizes = [8, 128], strides = [1, 1]} : vector<8x384xf32> to vector<8x128xf32>
    %369 = vector.broadcast %307 : vector<1x128xf32> to vector<8x128xf32>
    %370 = arith.addf %368, %369 : vector<8x128xf32>
    %371 = arith.mulf %358, %370 : vector<8x128xf32>
    %372 = arith.addf %367, %371 : vector<8x128xf32>
    %373 = math.tanh %372 : vector<8x128xf32>
    %cst_98 = arith.constant 1.000000e+00 : f32
    %374 = vector.broadcast %cst_98 : f32 to vector<8x128xf32>
    %375 = arith.subf %374, %366 : vector<8x128xf32>
    %376 = arith.mulf %375, %373 : vector<8x128xf32>
    %377 = arith.mulf %366, %342 : vector<8x128xf32>
    %378 = arith.addf %376, %377 : vector<8x128xf32>
    %379 = arith.index_cast %346 : i32 to index
    %c0_99 = arith.constant 0 : index
    %380 = vector.load %arg12[%379, %c0_99] : memref<64x128xf32, #tpu.memory_space<vmem>>, vector<8x128xf32>
    tpu.vector_store %arg12[%379, %c0_99], %378 {strides = array<i32>} : memref<64x128xf32, #tpu.memory_space<vmem>>, vector<8x128xf32>,
    %c2_i32_100 = arith.constant 2 : i32
    %c8_i32_101 = arith.constant 8 : i32
    %381 = arith.muli %c2_i32_100, %c8_i32_101 : i32
    %382 = tpu.assume_multiple %381, 8 : i32
    %383 = arith.index_cast %382 : i32 to index
    %c0_102 = arith.constant 0 : index
    %384 = vector.load %arg11[%383, %c0_102] : memref<64x384xf32, #tpu.memory_space<vmem>>, vector<8x384xf32>
    %385 = arith.truncf %378 : vector<8x128xf32> to vector<8x128xbf16>
    %cst_103 = arith.constant dense<0.000000e+00> : vector<8x384xf32>
    %386 = tpu.matmul %385, %306, %cst_103 {dimension_numbers = #tpu.dot_dimension_numbers<[1], [0], [0], [1], [0, 0, 1, 1], [], []>} : vector<8x128xbf16>, vector<128x384xbf16>, vector<8x384xf32> -> vector<8x384xf32>
    %387 = vector.extract_strided_slice %384 {offsets = [0, 0], sizes = [8, 128], strides = [1, 1]} : vector<8x384xf32> to vector<8x128xf32>
    %388 = vector.extract_strided_slice %386 {offsets = [0, 0], sizes = [8, 128], strides = [1, 1]} : vector<8x384xf32> to vector<8x128xf32>
    %389 = arith.addf %387, %388 : vector<8x128xf32>
    %390 = arith.negf %389 : vector<8x128xf32>
    %391 = math.exp %390 : vector<8x128xf32>
    %cst_104 = arith.constant 1.000000e+00 : f32
    %392 = vector.broadcast %cst_104 : f32 to vector<8x128xf32>
    %393 = arith.addf %392, %391 : vector<8x128xf32>
    %394 = arith.divf %392, %393 : vector<8x128xf32>
    %395 = vector.extract_strided_slice %384 {offsets = [0, 128], sizes = [8, 128], strides = [1, 1]} : vector<8x384xf32> to vector<8x128xf32>
    %396 = vector.extract_strided_slice %386 {offsets = [0, 128], sizes = [8, 128], strides = [1, 1]} : vector<8x384xf32> to vector<8x128xf32>
    %397 = arith.addf %395, %396 : vector<8x128xf32>
    %398 = arith.negf %397 : vector<8x128xf32>
    %399 = math.exp %398 : vector<8x128xf32>
    %cst_105 = arith.constant 1.000000e+00 : f32
    %400 = vector.broadcast %cst_105 : f32 to vector<8x128xf32>
    %401 = arith.addf %400, %399 : vector<8x128xf32>
    %402 = arith.divf %400, %401 : vector<8x128xf32>
    %403 = vector.extract_strided_slice %384 {offsets = [0, 256], sizes = [8, 128], strides = [1, 1]} : vector<8x384xf32> to vector<8x128xf32>
    %404 = vector.extract_strided_slice %386 {offsets = [0, 256], sizes = [8, 128], strides = [1, 1]} : vector<8x384xf32> to vector<8x128xf32>
    %405 = vector.broadcast %307 : vector<1x128xf32> to vector<8x128xf32>
    %406 = arith.addf %404, %405 : vector<8x128xf32>
    %407 = arith.mulf %394, %406 : vector<8x128xf32>
    %408 = arith.addf %403, %407 : vector<8x128xf32>
    %409 = math.tanh %408 : vector<8x128xf32>
    %cst_106 = arith.constant 1.000000e+00 : f32
    %410 = vector.broadcast %cst_106 : f32 to vector<8x128xf32>
    %411 = arith.subf %410, %402 : vector<8x128xf32>
    %412 = arith.mulf %411, %409 : vector<8x128xf32>
    %413 = arith.mulf %402, %378 : vector<8x128xf32>
    %414 = arith.addf %412, %413 : vector<8x128xf32>
    %415 = arith.index_cast %382 : i32 to index
    %c0_107 = arith.constant 0 : index
    %416 = vector.load %arg12[%415, %c0_107] : memref<64x128xf32, #tpu.memory_space<vmem>>, vector<8x128xf32>
    tpu.vector_store %arg12[%415, %c0_107], %414 {strides = array<i32>} : memref<64x128xf32, #tpu.memory_space<vmem>>, vector<8x128xf32>,
    %c3_i32_108 = arith.constant 3 : i32
    %c8_i32_109 = arith.constant 8 : i32
    %417 = arith.muli %c3_i32_108, %c8_i32_109 : i32
    %418 = tpu.assume_multiple %417, 8 : i32
    %419 = arith.index_cast %418 : i32 to index
    %c0_110 = arith.constant 0 : index
    %420 = vector.load %arg11[%419, %c0_110] : memref<64x384xf32, #tpu.memory_space<vmem>>, vector<8x384xf32>
    %421 = arith.truncf %414 : vector<8x128xf32> to vector<8x128xbf16>
    %cst_111 = arith.constant dense<0.000000e+00> : vector<8x384xf32>
    %422 = tpu.matmul %421, %306, %cst_111 {dimension_numbers = #tpu.dot_dimension_numbers<[1], [0], [0], [1], [0, 0, 1, 1], [], []>} : vector<8x128xbf16>, vector<128x384xbf16>, vector<8x384xf32> -> vector<8x384xf32>
    %423 = vector.extract_strided_slice %420 {offsets = [0, 0], sizes = [8, 128], strides = [1, 1]} : vector<8x384xf32> to vector<8x128xf32>
    %424 = vector.extract_strided_slice %422 {offsets = [0, 0], sizes = [8, 128], strides = [1, 1]} : vector<8x384xf32> to vector<8x128xf32>
    %425 = arith.addf %423, %424 : vector<8x128xf32>
    %426 = arith.negf %425 : vector<8x128xf32>
    %427 = math.exp %426 : vector<8x128xf32>
    %cst_112 = arith.constant 1.000000e+00 : f32
    %428 = vector.broadcast %cst_112 : f32 to vector<8x128xf32>
    %429 = arith.addf %428, %427 : vector<8x128xf32>
    %430 = arith.divf %428, %429 : vector<8x128xf32>
    %431 = vector.extract_strided_slice %420 {offsets = [0, 128], sizes = [8, 128], strides = [1, 1]} : vector<8x384xf32> to vector<8x128xf32>
    %432 = vector.extract_strided_slice %422 {offsets = [0, 128], sizes = [8, 128], strides = [1, 1]} : vector<8x384xf32> to vector<8x128xf32>
    %433 = arith.addf %431, %432 : vector<8x128xf32>
    %434 = arith.negf %433 : vector<8x128xf32>
    %435 = math.exp %434 : vector<8x128xf32>
    %cst_113 = arith.constant 1.000000e+00 : f32
    %436 = vector.broadcast %cst_113 : f32 to vector<8x128xf32>
    %437 = arith.addf %436, %435 : vector<8x128xf32>
    %438 = arith.divf %436, %437 : vector<8x128xf32>
    %439 = vector.extract_strided_slice %420 {offsets = [0, 256], sizes = [8, 128], strides = [1, 1]} : vector<8x384xf32> to vector<8x128xf32>
    %440 = vector.extract_strided_slice %422 {offsets = [0, 256], sizes = [8, 128], strides = [1, 1]} : vector<8x384xf32> to vector<8x128xf32>
    %441 = vector.broadcast %307 : vector<1x128xf32> to vector<8x128xf32>
    %442 = arith.addf %440, %441 : vector<8x128xf32>
    %443 = arith.mulf %430, %442 : vector<8x128xf32>
    %444 = arith.addf %439, %443 : vector<8x128xf32>
    %445 = math.tanh %444 : vector<8x128xf32>
    %cst_114 = arith.constant 1.000000e+00 : f32
    %446 = vector.broadcast %cst_114 : f32 to vector<8x128xf32>
    %447 = arith.subf %446, %438 : vector<8x128xf32>
    %448 = arith.mulf %447, %445 : vector<8x128xf32>
    %449 = arith.mulf %438, %414 : vector<8x128xf32>
    %450 = arith.addf %448, %449 : vector<8x128xf32>
    %451 = arith.index_cast %418 : i32 to index
    %c0_115 = arith.constant 0 : index
    %452 = vector.load %arg12[%451, %c0_115] : memref<64x128xf32, #tpu.memory_space<vmem>>, vector<8x128xf32>
    tpu.vector_store %arg12[%451, %c0_115], %450 {strides = array<i32>} : memref<64x128xf32, #tpu.memory_space<vmem>>, vector<8x128xf32>,
    %c4_i32_116 = arith.constant 4 : i32
    %c8_i32_117 = arith.constant 8 : i32
    %453 = arith.muli %c4_i32_116, %c8_i32_117 : i32
    %454 = tpu.assume_multiple %453, 8 : i32
    %455 = arith.index_cast %454 : i32 to index
    %c0_118 = arith.constant 0 : index
    %456 = vector.load %arg11[%455, %c0_118] : memref<64x384xf32, #tpu.memory_space<vmem>>, vector<8x384xf32>
    %457 = arith.truncf %450 : vector<8x128xf32> to vector<8x128xbf16>
    %cst_119 = arith.constant dense<0.000000e+00> : vector<8x384xf32>
    %458 = tpu.matmul %457, %306, %cst_119 {dimension_numbers = #tpu.dot_dimension_numbers<[1], [0], [0], [1], [0, 0, 1, 1], [], []>} : vector<8x128xbf16>, vector<128x384xbf16>, vector<8x384xf32> -> vector<8x384xf32>
    %459 = vector.extract_strided_slice %456 {offsets = [0, 0], sizes = [8, 128], strides = [1, 1]} : vector<8x384xf32> to vector<8x128xf32>
    %460 = vector.extract_strided_slice %458 {offsets = [0, 0], sizes = [8, 128], strides = [1, 1]} : vector<8x384xf32> to vector<8x128xf32>
    %461 = arith.addf %459, %460 : vector<8x128xf32>
    %462 = arith.negf %461 : vector<8x128xf32>
    %463 = math.exp %462 : vector<8x128xf32>
    %cst_120 = arith.constant 1.000000e+00 : f32
    %464 = vector.broadcast %cst_120 : f32 to vector<8x128xf32>
    %465 = arith.addf %464, %463 : vector<8x128xf32>
    %466 = arith.divf %464, %465 : vector<8x128xf32>
    %467 = vector.extract_strided_slice %456 {offsets = [0, 128], sizes = [8, 128], strides = [1, 1]} : vector<8x384xf32> to vector<8x128xf32>
    %468 = vector.extract_strided_slice %458 {offsets = [0, 128], sizes = [8, 128], strides = [1, 1]} : vector<8x384xf32> to vector<8x128xf32>
    %469 = arith.addf %467, %468 : vector<8x128xf32>
    %470 = arith.negf %469 : vector<8x128xf32>
    %471 = math.exp %470 : vector<8x128xf32>
    %cst_121 = arith.constant 1.000000e+00 : f32
    %472 = vector.broadcast %cst_121 : f32 to vector<8x128xf32>
    %473 = arith.addf %472, %471 : vector<8x128xf32>
    %474 = arith.divf %472, %473 : vector<8x128xf32>
    %475 = vector.extract_strided_slice %456 {offsets = [0, 256], sizes = [8, 128], strides = [1, 1]} : vector<8x384xf32> to vector<8x128xf32>
    %476 = vector.extract_strided_slice %458 {offsets = [0, 256], sizes = [8, 128], strides = [1, 1]} : vector<8x384xf32> to vector<8x128xf32>
    %477 = vector.broadcast %307 : vector<1x128xf32> to vector<8x128xf32>
    %478 = arith.addf %476, %477 : vector<8x128xf32>
    %479 = arith.mulf %466, %478 : vector<8x128xf32>
    %480 = arith.addf %475, %479 : vector<8x128xf32>
    %481 = math.tanh %480 : vector<8x128xf32>
    %cst_122 = arith.constant 1.000000e+00 : f32
    %482 = vector.broadcast %cst_122 : f32 to vector<8x128xf32>
    %483 = arith.subf %482, %474 : vector<8x128xf32>
    %484 = arith.mulf %483, %481 : vector<8x128xf32>
    %485 = arith.mulf %474, %450 : vector<8x128xf32>
    %486 = arith.addf %484, %485 : vector<8x128xf32>
    %487 = arith.index_cast %454 : i32 to index
    %c0_123 = arith.constant 0 : index
    %488 = vector.load %arg12[%487, %c0_123] : memref<64x128xf32, #tpu.memory_space<vmem>>, vector<8x128xf32>
    tpu.vector_store %arg12[%487, %c0_123], %486 {strides = array<i32>} : memref<64x128xf32, #tpu.memory_space<vmem>>, vector<8x128xf32>,
    %c5_i32_124 = arith.constant 5 : i32
    %c8_i32_125 = arith.constant 8 : i32
    %489 = arith.muli %c5_i32_124, %c8_i32_125 : i32
    %490 = tpu.assume_multiple %489, 8 : i32
    %491 = arith.index_cast %490 : i32 to index
    %c0_126 = arith.constant 0 : index
    %492 = vector.load %arg11[%491, %c0_126] : memref<64x384xf32, #tpu.memory_space<vmem>>, vector<8x384xf32>
    %493 = arith.truncf %486 : vector<8x128xf32> to vector<8x128xbf16>
    %cst_127 = arith.constant dense<0.000000e+00> : vector<8x384xf32>
    %494 = tpu.matmul %493, %306, %cst_127 {dimension_numbers = #tpu.dot_dimension_numbers<[1], [0], [0], [1], [0, 0, 1, 1], [], []>} : vector<8x128xbf16>, vector<128x384xbf16>, vector<8x384xf32> -> vector<8x384xf32>
    %495 = vector.extract_strided_slice %492 {offsets = [0, 0], sizes = [8, 128], strides = [1, 1]} : vector<8x384xf32> to vector<8x128xf32>
    %496 = vector.extract_strided_slice %494 {offsets = [0, 0], sizes = [8, 128], strides = [1, 1]} : vector<8x384xf32> to vector<8x128xf32>
    %497 = arith.addf %495, %496 : vector<8x128xf32>
    %498 = arith.negf %497 : vector<8x128xf32>
    %499 = math.exp %498 : vector<8x128xf32>
    %cst_128 = arith.constant 1.000000e+00 : f32
    %500 = vector.broadcast %cst_128 : f32 to vector<8x128xf32>
    %501 = arith.addf %500, %499 : vector<8x128xf32>
    %502 = arith.divf %500, %501 : vector<8x128xf32>
    %503 = vector.extract_strided_slice %492 {offsets = [0, 128], sizes = [8, 128], strides = [1, 1]} : vector<8x384xf32> to vector<8x128xf32>
    %504 = vector.extract_strided_slice %494 {offsets = [0, 128], sizes = [8, 128], strides = [1, 1]} : vector<8x384xf32> to vector<8x128xf32>
    %505 = arith.addf %503, %504 : vector<8x128xf32>
    %506 = arith.negf %505 : vector<8x128xf32>
    %507 = math.exp %506 : vector<8x128xf32>
    %cst_129 = arith.constant 1.000000e+00 : f32
    %508 = vector.broadcast %cst_129 : f32 to vector<8x128xf32>
    %509 = arith.addf %508, %507 : vector<8x128xf32>
    %510 = arith.divf %508, %509 : vector<8x128xf32>
    %511 = vector.extract_strided_slice %492 {offsets = [0, 256], sizes = [8, 128], strides = [1, 1]} : vector<8x384xf32> to vector<8x128xf32>
    %512 = vector.extract_strided_slice %494 {offsets = [0, 256], sizes = [8, 128], strides = [1, 1]} : vector<8x384xf32> to vector<8x128xf32>
    %513 = vector.broadcast %307 : vector<1x128xf32> to vector<8x128xf32>
    %514 = arith.addf %512, %513 : vector<8x128xf32>
    %515 = arith.mulf %502, %514 : vector<8x128xf32>
    %516 = arith.addf %511, %515 : vector<8x128xf32>
    %517 = math.tanh %516 : vector<8x128xf32>
    %cst_130 = arith.constant 1.000000e+00 : f32
    %518 = vector.broadcast %cst_130 : f32 to vector<8x128xf32>
    %519 = arith.subf %518, %510 : vector<8x128xf32>
    %520 = arith.mulf %519, %517 : vector<8x128xf32>
    %521 = arith.mulf %510, %486 : vector<8x128xf32>
    %522 = arith.addf %520, %521 : vector<8x128xf32>
    %523 = arith.index_cast %490 : i32 to index
    %c0_131 = arith.constant 0 : index
    %524 = vector.load %arg12[%523, %c0_131] : memref<64x128xf32, #tpu.memory_space<vmem>>, vector<8x128xf32>
    tpu.vector_store %arg12[%523, %c0_131], %522 {strides = array<i32>} : memref<64x128xf32, #tpu.memory_space<vmem>>, vector<8x128xf32>,
    %c6_i32_132 = arith.constant 6 : i32
    %c8_i32_133 = arith.constant 8 : i32
    %525 = arith.muli %c6_i32_132, %c8_i32_133 : i32
    %526 = tpu.assume_multiple %525, 8 : i32
    %527 = arith.index_cast %526 : i32 to index
    %c0_134 = arith.constant 0 : index
    %528 = vector.load %arg11[%527, %c0_134] : memref<64x384xf32, #tpu.memory_space<vmem>>, vector<8x384xf32>
    %529 = arith.truncf %522 : vector<8x128xf32> to vector<8x128xbf16>
    %cst_135 = arith.constant dense<0.000000e+00> : vector<8x384xf32>
    %530 = tpu.matmul %529, %306, %cst_135 {dimension_numbers = #tpu.dot_dimension_numbers<[1], [0], [0], [1], [0, 0, 1, 1], [], []>} : vector<8x128xbf16>, vector<128x384xbf16>, vector<8x384xf32> -> vector<8x384xf32>
    %531 = vector.extract_strided_slice %528 {offsets = [0, 0], sizes = [8, 128], strides = [1, 1]} : vector<8x384xf32> to vector<8x128xf32>
    %532 = vector.extract_strided_slice %530 {offsets = [0, 0], sizes = [8, 128], strides = [1, 1]} : vector<8x384xf32> to vector<8x128xf32>
    %533 = arith.addf %531, %532 : vector<8x128xf32>
    %534 = arith.negf %533 : vector<8x128xf32>
    %535 = math.exp %534 : vector<8x128xf32>
    %cst_136 = arith.constant 1.000000e+00 : f32
    %536 = vector.broadcast %cst_136 : f32 to vector<8x128xf32>
    %537 = arith.addf %536, %535 : vector<8x128xf32>
    %538 = arith.divf %536, %537 : vector<8x128xf32>
    %539 = vector.extract_strided_slice %528 {offsets = [0, 128], sizes = [8, 128], strides = [1, 1]} : vector<8x384xf32> to vector<8x128xf32>
    %540 = vector.extract_strided_slice %530 {offsets = [0, 128], sizes = [8, 128], strides = [1, 1]} : vector<8x384xf32> to vector<8x128xf32>
    %541 = arith.addf %539, %540 : vector<8x128xf32>
    %542 = arith.negf %541 : vector<8x128xf32>
    %543 = math.exp %542 : vector<8x128xf32>
    %cst_137 = arith.constant 1.000000e+00 : f32
    %544 = vector.broadcast %cst_137 : f32 to vector<8x128xf32>
    %545 = arith.addf %544, %543 : vector<8x128xf32>
    %546 = arith.divf %544, %545 : vector<8x128xf32>
    %547 = vector.extract_strided_slice %528 {offsets = [0, 256], sizes = [8, 128], strides = [1, 1]} : vector<8x384xf32> to vector<8x128xf32>
    %548 = vector.extract_strided_slice %530 {offsets = [0, 256], sizes = [8, 128], strides = [1, 1]} : vector<8x384xf32> to vector<8x128xf32>
    %549 = vector.broadcast %307 : vector<1x128xf32> to vector<8x128xf32>
    %550 = arith.addf %548, %549 : vector<8x128xf32>
    %551 = arith.mulf %538, %550 : vector<8x128xf32>
    %552 = arith.addf %547, %551 : vector<8x128xf32>
    %553 = math.tanh %552 : vector<8x128xf32>
    %cst_138 = arith.constant 1.000000e+00 : f32
    %554 = vector.broadcast %cst_138 : f32 to vector<8x128xf32>
    %555 = arith.subf %554, %546 : vector<8x128xf32>
    %556 = arith.mulf %555, %553 : vector<8x128xf32>
    %557 = arith.mulf %546, %522 : vector<8x128xf32>
    %558 = arith.addf %556, %557 : vector<8x128xf32>
    %559 = arith.index_cast %526 : i32 to index
    %c0_139 = arith.constant 0 : index
    %560 = vector.load %arg12[%559, %c0_139] : memref<64x128xf32, #tpu.memory_space<vmem>>, vector<8x128xf32>
    tpu.vector_store %arg12[%559, %c0_139], %558 {strides = array<i32>} : memref<64x128xf32, #tpu.memory_space<vmem>>, vector<8x128xf32>,
    %c7_i32_140 = arith.constant 7 : i32
    %c8_i32_141 = arith.constant 8 : i32
    %561 = arith.muli %c7_i32_140, %c8_i32_141 : i32
    %562 = tpu.assume_multiple %561, 8 : i32
    %563 = arith.index_cast %562 : i32 to index
    %c0_142 = arith.constant 0 : index
    %564 = vector.load %arg11[%563, %c0_142] : memref<64x384xf32, #tpu.memory_space<vmem>>, vector<8x384xf32>
    %565 = arith.truncf %558 : vector<8x128xf32> to vector<8x128xbf16>
    %cst_143 = arith.constant dense<0.000000e+00> : vector<8x384xf32>
    %566 = tpu.matmul %565, %306, %cst_143 {dimension_numbers = #tpu.dot_dimension_numbers<[1], [0], [0], [1], [0, 0, 1, 1], [], []>} : vector<8x128xbf16>, vector<128x384xbf16>, vector<8x384xf32> -> vector<8x384xf32>
    %567 = vector.extract_strided_slice %564 {offsets = [0, 0], sizes = [8, 128], strides = [1, 1]} : vector<8x384xf32> to vector<8x128xf32>
    %568 = vector.extract_strided_slice %566 {offsets = [0, 0], sizes = [8, 128], strides = [1, 1]} : vector<8x384xf32> to vector<8x128xf32>
    %569 = arith.addf %567, %568 : vector<8x128xf32>
    %570 = arith.negf %569 : vector<8x128xf32>
    %571 = math.exp %570 : vector<8x128xf32>
    %cst_144 = arith.constant 1.000000e+00 : f32
    %572 = vector.broadcast %cst_144 : f32 to vector<8x128xf32>
    %573 = arith.addf %572, %571 : vector<8x128xf32>
    %574 = arith.divf %572, %573 : vector<8x128xf32>
    %575 = vector.extract_strided_slice %564 {offsets = [0, 128], sizes = [8, 128], strides = [1, 1]} : vector<8x384xf32> to vector<8x128xf32>
    %576 = vector.extract_strided_slice %566 {offsets = [0, 128], sizes = [8, 128], strides = [1, 1]} : vector<8x384xf32> to vector<8x128xf32>
    %577 = arith.addf %575, %576 : vector<8x128xf32>
    %578 = arith.negf %577 : vector<8x128xf32>
    %579 = math.exp %578 : vector<8x128xf32>
    %cst_145 = arith.constant 1.000000e+00 : f32
    %580 = vector.broadcast %cst_145 : f32 to vector<8x128xf32>
    %581 = arith.addf %580, %579 : vector<8x128xf32>
    %582 = arith.divf %580, %581 : vector<8x128xf32>
    %583 = vector.extract_strided_slice %564 {offsets = [0, 256], sizes = [8, 128], strides = [1, 1]} : vector<8x384xf32> to vector<8x128xf32>
    %584 = vector.extract_strided_slice %566 {offsets = [0, 256], sizes = [8, 128], strides = [1, 1]} : vector<8x384xf32> to vector<8x128xf32>
    %585 = vector.broadcast %307 : vector<1x128xf32> to vector<8x128xf32>
    %586 = arith.addf %584, %585 : vector<8x128xf32>
    %587 = arith.mulf %574, %586 : vector<8x128xf32>
    %588 = arith.addf %583, %587 : vector<8x128xf32>
    %589 = math.tanh %588 : vector<8x128xf32>
    %cst_146 = arith.constant 1.000000e+00 : f32
    %590 = vector.broadcast %cst_146 : f32 to vector<8x128xf32>
    %591 = arith.subf %590, %582 : vector<8x128xf32>
    %592 = arith.mulf %591, %589 : vector<8x128xf32>
    %593 = arith.mulf %582, %558 : vector<8x128xf32>
    %594 = arith.addf %592, %593 : vector<8x128xf32>
    %595 = arith.index_cast %562 : i32 to index
    %c0_147 = arith.constant 0 : index
    %596 = vector.load %arg12[%595, %c0_147] : memref<64x128xf32, #tpu.memory_space<vmem>>, vector<8x128xf32>
    tpu.vector_store %arg12[%595, %c0_147], %594 {strides = array<i32>} : memref<64x128xf32, #tpu.memory_space<vmem>>, vector<8x128xf32>,
    %c8_i32_148 = arith.constant 8 : i32
    %c0_149 = arith.constant 0 : index
    %c0_150 = arith.constant 0 : index
    %597 = tpu.strided_load %arg12[%c0_149, %c0_150] {strides = array<i32: 8, 1>} : memref<64x128xf32, #tpu.memory_space<vmem>>, vector<8x128xf32>
    %598 = arith.truncf %597 : vector<8x128xf32> to vector<8x128xbf16>
    %c0_151 = arith.constant 0 : index
    %c0_152 = arith.constant 0 : index
    %c0_153 = arith.constant 0 : index
    %599 = vector.load %arg10[%c0_151, %c0_152, %c0_153] : memref<8x8x128xbf16, #tpu.memory_space<vmem>>, vector<1x8x128xbf16>
    %600 = vector.shape_cast %599 : vector<1x8x128xbf16> to vector<8x128xbf16>
    %601 = vector.shape_cast %598 : vector<8x128xbf16> to vector<1x8x128xbf16>
    tpu.vector_store %arg10[%c0_151, %c0_152, %c0_153], %601 {strides = array<i32>} : memref<8x8x128xbf16, #tpu.memory_space<vmem>>, vector<1x8x128xbf16>,
    %c1 = arith.constant 1 : index
    %c0_154 = arith.constant 0 : index
    %602 = tpu.strided_load %arg12[%c1, %c0_154] {strides = array<i32: 8, 1>} : memref<64x128xf32, #tpu.memory_space<vmem>>, vector<8x128xf32>
    %603 = arith.truncf %602 : vector<8x128xf32> to vector<8x128xbf16>
    %c1_155 = arith.constant 1 : index
    %c0_156 = arith.constant 0 : index
    %c0_157 = arith.constant 0 : index
    %604 = vector.load %arg10[%c1_155, %c0_156, %c0_157] : memref<8x8x128xbf16, #tpu.memory_space<vmem>>, vector<1x8x128xbf16>
    %605 = vector.shape_cast %604 : vector<1x8x128xbf16> to vector<8x128xbf16>
    %606 = vector.shape_cast %603 : vector<8x128xbf16> to vector<1x8x128xbf16>
    tpu.vector_store %arg10[%c1_155, %c0_156, %c0_157], %606 {strides = array<i32>} : memref<8x8x128xbf16, #tpu.memory_space<vmem>>, vector<1x8x128xbf16>,
    %c2 = arith.constant 2 : index
    %c0_158 = arith.constant 0 : index
    %607 = tpu.strided_load %arg12[%c2, %c0_158] {strides = array<i32: 8, 1>} : memref<64x128xf32, #tpu.memory_space<vmem>>, vector<8x128xf32>
    %608 = arith.truncf %607 : vector<8x128xf32> to vector<8x128xbf16>
    %c2_159 = arith.constant 2 : index
    %c0_160 = arith.constant 0 : index
    %c0_161 = arith.constant 0 : index
    %609 = vector.load %arg10[%c2_159, %c0_160, %c0_161] : memref<8x8x128xbf16, #tpu.memory_space<vmem>>, vector<1x8x128xbf16>
    %610 = vector.shape_cast %609 : vector<1x8x128xbf16> to vector<8x128xbf16>
    %611 = vector.shape_cast %608 : vector<8x128xbf16> to vector<1x8x128xbf16>
    tpu.vector_store %arg10[%c2_159, %c0_160, %c0_161], %611 {strides = array<i32>} : memref<8x8x128xbf16, #tpu.memory_space<vmem>>, vector<1x8x128xbf16>,
    %c3 = arith.constant 3 : index
    %c0_162 = arith.constant 0 : index
    %612 = tpu.strided_load %arg12[%c3, %c0_162] {strides = array<i32: 8, 1>} : memref<64x128xf32, #tpu.memory_space<vmem>>, vector<8x128xf32>
    %613 = arith.truncf %612 : vector<8x128xf32> to vector<8x128xbf16>
    %c3_163 = arith.constant 3 : index
    %c0_164 = arith.constant 0 : index
    %c0_165 = arith.constant 0 : index
    %614 = vector.load %arg10[%c3_163, %c0_164, %c0_165] : memref<8x8x128xbf16, #tpu.memory_space<vmem>>, vector<1x8x128xbf16>
    %615 = vector.shape_cast %614 : vector<1x8x128xbf16> to vector<8x128xbf16>
    %616 = vector.shape_cast %613 : vector<8x128xbf16> to vector<1x8x128xbf16>
    tpu.vector_store %arg10[%c3_163, %c0_164, %c0_165], %616 {strides = array<i32>} : memref<8x8x128xbf16, #tpu.memory_space<vmem>>, vector<1x8x128xbf16>,
    %c4 = arith.constant 4 : index
    %c0_166 = arith.constant 0 : index
    %617 = tpu.strided_load %arg12[%c4, %c0_166] {strides = array<i32: 8, 1>} : memref<64x128xf32, #tpu.memory_space<vmem>>, vector<8x128xf32>
    %618 = arith.truncf %617 : vector<8x128xf32> to vector<8x128xbf16>
    %c4_167 = arith.constant 4 : index
    %c0_168 = arith.constant 0 : index
    %c0_169 = arith.constant 0 : index
    %619 = vector.load %arg10[%c4_167, %c0_168, %c0_169] : memref<8x8x128xbf16, #tpu.memory_space<vmem>>, vector<1x8x128xbf16>
    %620 = vector.shape_cast %619 : vector<1x8x128xbf16> to vector<8x128xbf16>
    %621 = vector.shape_cast %618 : vector<8x128xbf16> to vector<1x8x128xbf16>
    tpu.vector_store %arg10[%c4_167, %c0_168, %c0_169], %621 {strides = array<i32>} : memref<8x8x128xbf16, #tpu.memory_space<vmem>>, vector<1x8x128xbf16>,
    %c5 = arith.constant 5 : index
    %c0_170 = arith.constant 0 : index
    %622 = tpu.strided_load %arg12[%c5, %c0_170] {strides = array<i32: 8, 1>} : memref<64x128xf32, #tpu.memory_space<vmem>>, vector<8x128xf32>
    %623 = arith.truncf %622 : vector<8x128xf32> to vector<8x128xbf16>
    %c5_171 = arith.constant 5 : index
    %c0_172 = arith.constant 0 : index
    %c0_173 = arith.constant 0 : index
    %624 = vector.load %arg10[%c5_171, %c0_172, %c0_173] : memref<8x8x128xbf16, #tpu.memory_space<vmem>>, vector<1x8x128xbf16>
    %625 = vector.shape_cast %624 : vector<1x8x128xbf16> to vector<8x128xbf16>
    %626 = vector.shape_cast %623 : vector<8x128xbf16> to vector<1x8x128xbf16>
    tpu.vector_store %arg10[%c5_171, %c0_172, %c0_173], %626 {strides = array<i32>} : memref<8x8x128xbf16, #tpu.memory_space<vmem>>, vector<1x8x128xbf16>,
    %c6 = arith.constant 6 : index
    %c0_174 = arith.constant 0 : index
    %627 = tpu.strided_load %arg12[%c6, %c0_174] {strides = array<i32: 8, 1>} : memref<64x128xf32, #tpu.memory_space<vmem>>, vector<8x128xf32>
    %628 = arith.truncf %627 : vector<8x128xf32> to vector<8x128xbf16>
    %c6_175 = arith.constant 6 : index
    %c0_176 = arith.constant 0 : index
    %c0_177 = arith.constant 0 : index
    %629 = vector.load %arg10[%c6_175, %c0_176, %c0_177] : memref<8x8x128xbf16, #tpu.memory_space<vmem>>, vector<1x8x128xbf16>
    %630 = vector.shape_cast %629 : vector<1x8x128xbf16> to vector<8x128xbf16>
    %631 = vector.shape_cast %628 : vector<8x128xbf16> to vector<1x8x128xbf16>
    tpu.vector_store %arg10[%c6_175, %c0_176, %c0_177], %631 {strides = array<i32>} : memref<8x8x128xbf16, #tpu.memory_space<vmem>>, vector<1x8x128xbf16>,
    %c7 = arith.constant 7 : index
    %c0_178 = arith.constant 0 : index
    %632 = tpu.strided_load %arg12[%c7, %c0_178] {strides = array<i32: 8, 1>} : memref<64x128xf32, #tpu.memory_space<vmem>>, vector<8x128xf32>
    %633 = arith.truncf %632 : vector<8x128xf32> to vector<8x128xbf16>
    %c7_179 = arith.constant 7 : index
    %c0_180 = arith.constant 0 : index
    %c0_181 = arith.constant 0 : index
    %634 = vector.load %arg10[%c7_179, %c0_180, %c0_181] : memref<8x8x128xbf16, #tpu.memory_space<vmem>>, vector<1x8x128xbf16>
    %635 = vector.shape_cast %634 : vector<1x8x128xbf16> to vector<8x128xbf16>
    %636 = vector.shape_cast %633 : vector<8x128xbf16> to vector<1x8x128xbf16>
    tpu.vector_store %arg10[%c7_179, %c0_180, %c0_181], %636 {strides = array<i32>} : memref<8x8x128xbf16, #tpu.memory_space<vmem>>, vector<1x8x128xbf16>,
    return
  }
}

module attributes {stable_mosaic.version = 11 : i64} {
  func.func @_tied_projection_kernel(%arg0: i32, %arg1: i32, %arg2: memref<64x128xbf16, #tpu.memory_space<vmem>>, %arg3: memref<128x128xbf16, #tpu.memory_space<vmem>>, %arg4: memref<64x128xf32, #tpu.memory_space<vmem>>) attributes {dimension_semantics = [#tpu.dimension_semantics<parallel>, #tpu.dimension_semantics<parallel>], iteration_bounds = array<i64: 1, 1>, scalar_prefetch = 0 : i64, scratch_operands = 0 : i64, tpu.core_type = #tpu.core_type<tc>, window_params = [{transform_indices = @transform_0, window_bounds = array<i64: 64, 128>}, {transform_indices = @transform_1, window_bounds = array<i64: 128, 128>}, {transform_indices = @transform_2, window_bounds = array<i64: 64, 128>}]} {
    %c0 = arith.constant 0 : index
    %c0_0 = arith.constant 0 : index
    %0 = vector.load %arg2[%c0, %c0_0] : memref<64x128xbf16, #tpu.memory_space<vmem>>, vector<64x128xbf16>
    %c0_1 = arith.constant 0 : index
    %c0_2 = arith.constant 0 : index
    %1 = vector.load %arg3[%c0_1, %c0_2] : memref<128x128xbf16, #tpu.memory_space<vmem>>, vector<128x128xbf16>
    %cst = arith.constant dense<0.000000e+00> : vector<64x128xf32>
    %2 = tpu.matmul %0, %1, %cst {dimension_numbers = #tpu.dot_dimension_numbers<[1], [0], [0], [1], [0, 0, 1, 1], [], []>} : vector<64x128xbf16>, vector<128x128xbf16>, vector<64x128xf32> -> vector<64x128xf32>
    %c0_3 = arith.constant 0 : index
    %c0_4 = arith.constant 0 : index
    %3 = vector.load %arg4[%c0_3, %c0_4] : memref<64x128xf32, #tpu.memory_space<vmem>>, vector<64x128xf32>
    tpu.vector_store %arg4[%c0_3, %c0_4], %2 {strides = array<i32>} : memref<64x128xf32, #tpu.memory_space<vmem>>, vector<64x128xf32>,
    return
  }
  func.func @transform_0(%arg0: i32, %arg1: i32) -> (i32, i32) {
    %c0_i32 = arith.constant 0 : i32
    %c0_i32_0 = arith.constant 0 : i32
    return %arg0, %c0_i32 : i32, i32
  }
  func.func @transform_1(%arg0: i32, %arg1: i32) -> (i32, i32) {
    %c0_i32 = arith.constant 0 : i32
    %c0_i32_0 = arith.constant 0 : i32
    return %c0_i32, %arg1 : i32, i32
  }
  func.func @transform_2(%arg0: i32, %arg1: i32) -> (i32, i32) {
    %c0_i32 = arith.constant 0 : i32
    return %arg0, %arg1 : i32, i32
  }
}

</mosaic_0001>

<llo_original>
// kernel: lstm_decoder_forward.3
$region0: #{lstm_decoder_forward.3}
  #allocation0 [shape = 'u32[]', space=smem, size = 0x4, offset = 0x4, fixed_abs, tag = 'smem constant byte address 0x4 - core index']
  #allocation1 [shape = 'u32[72,128]{1,0:T(1,128)}', space=vmem, size = 0x9000, scoped, tag = 'internal scratch']
  %s0 = inlined_call_operand.vmem [shape: bf16[64,128], index: 0, kind: input, shape index: {}]
  %s1 = inlined_call_operand.vmem [shape: bf16[128,128], index: 1, kind: input, shape index: {}]
  %s2 = inlined_call_operand.vmem [shape: f32[64,128], index: 2, kind: output, shape index: {}]
  %s3 = sld [smem:[#allocation0]]
  $region18: #{lstm_decoder_forward.3} parent=0
    _
  %s5 = ssub.s32 1, %s3
  %s6 = scalar_select 0, %s5, %s3
  // Predicated region
  $region2: #{lstm_decoder_forward.3} parent=0 // pred_check
    _
  $region3: #{lstm_decoder_forward.3} parent=0 // pred_check_branch
    %8 = sbr.rel (0) target = $region5
  $region4: #{lstm_decoder_forward.3} parent=0 // pred_region
    _
  $region5: #{lstm_decoder_forward.3} parent=0 // pred_fallthru
    _
  // Predicated region
  $region6: #{lstm_decoder_forward.3} parent=0 // pred_check
    _
  $region7: #{lstm_decoder_forward.3} parent=0 // pred_check_branch
    %10 = sbr.rel (0) target = $region9
  $region8: #{lstm_decoder_forward.3} parent=0 // pred_region
    _
  $region9: #{lstm_decoder_forward.3} parent=0 // pred_fallthru
    _
  %v11 = vld [vmem:[%s0] sm:$0xf]
  %v12 = vld [vmem:[%s0 + $0x4] sm:$0xf]
  %v13 = vld [vmem:[%s0 + $0x8] sm:$0xf]
  %v14 = vld [vmem:[%s0 + $0xc] sm:$0xf]
  %v15 = vld [vmem:[%s0 + $0x10] sm:$0xf]
  %v16 = vld [vmem:[%s0 + $0x14] sm:$0xf]
  %v17 = vld [vmem:[%s0 + $0x18] sm:$0xf]
  %v18 = vld [vmem:[%s0 + $0x1c] sm:$0xf]
  %v19 = vld [vmem:[%s1] sm:$0xf]
  %v20 = vld [vmem:[%s1 + $0x4] sm:$0xf]
  %v21 = vld [vmem:[%s1 + $0x8] sm:$0xf]
  %v22 = vld [vmem:[%s1 + $0xc] sm:$0xf]
  %v23 = vld [vmem:[%s1 + $0x10] sm:$0xf]
  %v24 = vld [vmem:[%s1 + $0x14] sm:$0xf]
  %v25 = vld [vmem:[%s1 + $0x18] sm:$0xf]
  %v26 = vld [vmem:[%s1 + $0x1c] sm:$0xf]
  %v27 = vld [vmem:[%s1 + $0x20] sm:$0xf]
  %v28 = vld [vmem:[%s1 + $0x24] sm:$0xf]
  %v29 = vld [vmem:[%s1 + $0x28] sm:$0xf]
  %v30 = vld [vmem:[%s1 + $0x2c] sm:$0xf]
  %v31 = vld [vmem:[%s1 + $0x30] sm:$0xf]
  %v32 = vld [vmem:[%s1 + $0x34] sm:$0xf]
  %v33 = vld [vmem:[%s1 + $0x38] sm:$0xf]
  %v34 = vld [vmem:[%s1 + $0x3c] sm:$0xf]
  %v43 = vunpack.c.l.b16 %v11
  %v44 = vunpack.c.l.b16 %v12
  %v45 = vunpack.c.l.b16 %v13
  %v46 = vunpack.c.l.b16 %v14
  %v47 = vunpack.c.l.b16 %v15
  %v48 = vunpack.c.l.b16 %v16
  %v49 = vunpack.c.l.b16 %v17
  %v50 = vunpack.c.l.b16 %v18
  %v51 = vpack.c.b16 %v44, %v43
  %v52 = vpack.c.b16 %v46, %v45
  %v53 = vpack.c.b16 %v48, %v47
  %v54 = vpack.c.b16 %v50, %v49
  %v75 = vunpack.c.l.b16 %v19
  %v76 = vunpack.c.l.b16 %v20
  %v77 = vunpack.c.l.b16 %v21
  %v78 = vunpack.c.l.b16 %v22
  %v79 = vunpack.c.l.b16 %v23
  %v80 = vunpack.c.l.b16 %v24
  %v81 = vunpack.c.l.b16 %v25
  %v82 = vunpack.c.l.b16 %v26
  %v83 = vunpack.c.l.b16 %v27
  %v84 = vunpack.c.l.b16 %v28
  %v85 = vunpack.c.l.b16 %v29
  %v86 = vunpack.c.l.b16 %v30
  %v87 = vunpack.c.l.b16 %v31
  %v88 = vunpack.c.l.b16 %v32
  %v89 = vunpack.c.l.b16 %v33
  %v90 = vunpack.c.l.b16 %v34
  %v91 = vpack.c.b16 %v76, %v75
  %v92 = vpack.c.b16 %v78, %v77
  %v93 = vpack.c.b16 %v80, %v79
  %v94 = vpack.c.b16 %v82, %v81
  %v95 = vpack.c.b16 %v84, %v83
  %v96 = vpack.c.b16 %v86, %v85
  %v97 = vpack.c.b16 %v88, %v87
  %v98 = vpack.c.b16 %v90, %v89
  %107 = vmatpush.bf16.msra.mxu0 %v98
  %108 = vmatpush.bf16.msra.mxu0 %v97
  %109 = vmatpush.bf16.msra.mxu0 %v96
  %110 = vmatpush.bf16.msra.mxu0 %v95
  %111 = vmatpush.bf16.msra.mxu0 %v94
  %112 = vmatpush.bf16.msra.mxu0 %v93
  %113 = vmatpush.bf16.msra.mxu0 %v92
  %114 = vmatpush.bf16.msra.mxu0 %v91
  %115 = vmatmul.bf16.gmra.mxu0 %v51
  %v116 = vpop.f32.mrf.mxu0
  %v117 = vadd.f32 0.0, %v116
  %v118 = vpop.f32.mrf.mxu0
  %v119 = vadd.f32 0.0, %v118
  %120 = vmatmul.bf16.gmra.mxu0 %v52
  %v121 = vpop.f32.mrf.mxu0
  %v122 = vadd.f32 0.0, %v121
  %v123 = vpop.f32.mrf.mxu0
  %v124 = vadd.f32 0.0, %v123
  %125 = vmatmul.bf16.gmra.mxu0 %v53
  %v126 = vpop.f32.mrf.mxu0
  %v127 = vadd.f32 0.0, %v126
  %v128 = vpop.f32.mrf.mxu0
  %v129 = vadd.f32 0.0, %v128
  %130 = vmatmul.bf16.gmra.mxu0 %v54
  %v131 = vpop.f32.mrf.mxu0
  %v132 = vadd.f32 0.0, %v131
  %v133 = vpop.f32.mrf.mxu0
  %v134 = vadd.f32 0.0, %v133
  %135 = vdwg.mxu0
  %136 = vst [vmem:[%s2] sm:$0xff] %v117
  %137 = vst [vmem:[%s2 + $0x8] sm:$0xff] %v119
  %138 = vst [vmem:[%s2 + $0x10] sm:$0xff] %v122
  %139 = vst [vmem:[%s2 + $0x18] sm:$0xff] %v124
  %140 = vst [vmem:[%s2 + $0x20] sm:$0xff] %v127
  %141 = vst [vmem:[%s2 + $0x28] sm:$0xff] %v129
  %142 = vst [vmem:[%s2 + $0x30] sm:$0xff] %v132
  %143 = vst [vmem:[%s2 + $0x38] sm:$0xff] %v134
  // Predicated region
  $region10: #{lstm_decoder_forward.3} parent=0 // pred_check
    _
  $region11: #{lstm_decoder_forward.3} parent=0 // pred_check_branch
    %145 = sbr.rel (0) target = $region13
  $region12: #{lstm_decoder_forward.3} parent=0 // pred_region
    _
  $region13: #{lstm_decoder_forward.3} parent=0 // pred_fallthru
    _
  // Predicated region
  $region14: #{lstm_decoder_forward.3} parent=0 // pred_check
    _
  $region15: #{lstm_decoder_forward.3} parent=0 // pred_check_branch
    %147 = sbr.rel (0) target = $region17
  $region16: #{lstm_decoder_forward.3} parent=0 // pred_region
    _
  $region17: #{lstm_decoder_forward.3} parent=0 // pred_fallthru
    _

// kernel: lstm_decoder_forward.2
$region0: #{lstm_decoder_forward.2}
  #allocation0 [shape = 'u32[]', space=smem, size = 0x4, offset = 0x4, fixed_abs, tag = 'smem constant byte address 0x4 - core index']
  #allocation1 [shape = 'u32[72,128]{1,0:T(1,128)}', space=vmem, size = 0x9000, scoped, tag = 'internal scratch']
  #allocation2 [shape = 'f32[64,384]{1,0:T(8,128)}', space=vmem, size = 0x18000, scoped, tag = 'scratch operand']
  #allocation3 [shape = 'f32[64,128]{1,0:T(8,128)}', space=vmem, size = 0x8000, scoped, tag = 'scratch operand']
  %s0 = inlined_call_operand.vmem [shape: bf16[64,128], index: 0, kind: input, shape index: {}]
  %s1 = inlined_call_operand.vmem [shape: f32[8,128], index: 1, kind: input, shape index: {}]
  %s2 = inlined_call_operand.vmem [shape: bf16[128,384], index: 2, kind: input, shape index: {}]
  %s3 = inlined_call_operand.vmem [shape: bf16[128,384], index: 3, kind: input, shape index: {}]
  %s4 = inlined_call_operand.vmem [shape: f32[1,384], index: 4, kind: input, shape index: {}]
  %s5 = inlined_call_operand.vmem [shape: f32[1,128], index: 5, kind: input, shape index: {}]
  %s6 = inlined_call_operand.vmem [shape: bf16[128,384], index: 6, kind: input, shape index: {}]
  %s7 = inlined_call_operand.vmem [shape: bf16[128,384], index: 7, kind: input, shape index: {}]
  %s8 = inlined_call_operand.vmem [shape: f32[1,384], index: 8, kind: input, shape index: {}]
  %s9 = inlined_call_operand.vmem [shape: f32[1,128], index: 9, kind: input, shape index: {}]
  %s10 = inlined_call_operand.vmem [shape: bf16[8,8,128], index: 10, kind: output, shape index: {}]
  %s11 = sld [smem:[#allocation0]]
  $region50: #{lstm_decoder_forward.2} parent=0
    _
  %s13 = ssub.s32 1, %s11
  %s14 = scalar_select 0, %s13, %s11
  // Predicated region
  $region2: #{lstm_decoder_forward.2} parent=0 // pred_check
    _
  $region3: #{lstm_decoder_forward.2} parent=0 // pred_check_branch
    %16 = sbr.rel (0) target = $region5
  $region4: #{lstm_decoder_forward.2} parent=0 // pred_region
    _
  $region5: #{lstm_decoder_forward.2} parent=0 // pred_fallthru
    _
  // Predicated region
  $region6: #{lstm_decoder_forward.2} parent=0 // pred_check
    _
  $region7: #{lstm_decoder_forward.2} parent=0 // pred_check_branch
    %18 = sbr.rel (0) target = $region9
  $region8: #{lstm_decoder_forward.2} parent=0 // pred_region
    _
  $region9: #{lstm_decoder_forward.2} parent=0 // pred_fallthru
    _
  // Predicated region
  $region10: #{lstm_decoder_forward.2} parent=0 // pred_check
    _
  $region11: #{lstm_decoder_forward.2} parent=0 // pred_check_branch
    %20 = sbr.rel (0) target = $region13
  $region12: #{lstm_decoder_forward.2} parent=0 // pred_region
    _
  $region13: #{lstm_decoder_forward.2} parent=0 // pred_fallthru
    _
  // Predicated region
  $region14: #{lstm_decoder_forward.2} parent=0 // pred_check
    _
  $region15: #{lstm_decoder_forward.2} parent=0 // pred_check_branch
    %22 = sbr.rel (0) target = $region17
  $region16: #{lstm_decoder_forward.2} parent=0 // pred_region
    _
  $region17: #{lstm_decoder_forward.2} parent=0 // pred_fallthru
    _
  // Predicated region
  $region18: #{lstm_decoder_forward.2} parent=0 // pred_check
    _
  $region19: #{lstm_decoder_forward.2} parent=0 // pred_check_branch
    %24 = sbr.rel (0) target = $region21
  $region20: #{lstm_decoder_forward.2} parent=0 // pred_region
    _
  $region21: #{lstm_decoder_forward.2} parent=0 // pred_fallthru
    _
  // Predicated region
  $region22: #{lstm_decoder_forward.2} parent=0 // pred_check
    _
  $region23: #{lstm_decoder_forward.2} parent=0 // pred_check_branch
    %26 = sbr.rel (0) target = $region25
  $region24: #{lstm_decoder_forward.2} parent=0 // pred_region
    _
  $region25: #{lstm_decoder_forward.2} parent=0 // pred_fallthru
    _
  // Predicated region
  $region26: #{lstm_decoder_forward.2} parent=0 // pred_check
    _
  $region27: #{lstm_decoder_forward.2} parent=0 // pred_check_branch
    %28 = sbr.rel (0) target = $region29
  $region28: #{lstm_decoder_forward.2} parent=0 // pred_region
    _
  $region29: #{lstm_decoder_forward.2} parent=0 // pred_fallthru
    _
  // Predicated region
  $region30: #{lstm_decoder_forward.2} parent=0 // pred_check
    _
  $region31: #{lstm_decoder_forward.2} parent=0 // pred_check_branch
    %30 = sbr.rel (0) target = $region33
  $region32: #{lstm_decoder_forward.2} parent=0 // pred_region
    _
  $region33: #{lstm_decoder_forward.2} parent=0 // pred_fallthru
    _
  // Predicated region
  $region34: #{lstm_decoder_forward.2} parent=0 // pred_check
    _
  $region35: #{lstm_decoder_forward.2} parent=0 // pred_check_branch
    %32 = sbr.rel (0) target = $region37
  $region36: #{lstm_decoder_forward.2} parent=0 // pred_region
    _
  $region37: #{lstm_decoder_forward.2} parent=0 // pred_fallthru
    _
  // Predicated region
  $region38: #{lstm_decoder_forward.2} parent=0 // pred_check
    _
  $region39: #{lstm_decoder_forward.2} parent=0 // pred_check_branch
    %34 = sbr.rel (0) target = $region41
  $region40: #{lstm_decoder_forward.2} parent=0 // pred_region
    _
  $region41: #{lstm_decoder_forward.2} parent=0 // pred_fallthru
    _
  %v35 = vld [vmem:[%s0] sm:$0xf]
  %v36 = vld [vmem:[%s0 + $0x4] sm:$0xf]
  %v37 = vld [vmem:[%s0 + $0x8] sm:$0xf]
  %v38 = vld [vmem:[%s0 + $0xc] sm:$0xf]
  %v39 = vld [vmem:[%s0 + $0x10] sm:$0xf]
  %v40 = vld [vmem:[%s0 + $0x14] sm:$0xf]
  %v41 = vld [vmem:[%s0 + $0x18] sm:$0xf]
  %v42 = vld [vmem:[%s0 + $0x1c] sm:$0xf]
  %v43 = vld [vmem:[%s2] sm:$0xff]
  %v44 = vld [vmem:[%s2 + $0x8] sm:$0xf]
  %v45 = vld [vmem:[%s2 + $0xc] sm:$0xff]
  %v46 = vld [vmem:[%s2 + $0x14] sm:$0xf]
  %v47 = vld [vmem:[%s2 + $0x18] sm:$0xff]
  %v48 = vld [vmem:[%s2 + $0x20] sm:$0xf]
  %v49 = vld [vmem:[%s2 + $0x24] sm:$0xff]
  %v50 = vld [vmem:[%s2 + $0x2c] sm:$0xf]
  %v51 = vld [vmem:[%s2 + $0x30] sm:$0xff]
  %v52 = vld [vmem:[%s2 + $0x38] sm:$0xf]
  %v53 = vld [vmem:[%s2 + $0x3c] sm:$0xff]
  %v54 = vld [vmem:[%s2 + $0x44] sm:$0xf]
  %v55 = vld [vmem:[%s2 + $0x48] sm:$0xff]
  %v56 = vld [vmem:[%s2 + $0x50] sm:$0xf]
  %v57 = vld [vmem:[%s2 + $0x54] sm:$0xff]
  %v58 = vld [vmem:[%s2 + $0x5c] sm:$0xf]
  %v59 = vld [vmem:[%s2 + $0x60] sm:$0xff]
  %v60 = vld [vmem:[%s2 + $0x68] sm:$0xf]
  %v61 = vld [vmem:[%s2 + $0x6c] sm:$0xff]
  %v62 = vld [vmem:[%s2 + $0x74] sm:$0xf]
  %v63 = vld [vmem:[%s2 + $0x78] sm:$0xff]
  %v64 = vld [vmem:[%s2 + $0x80] sm:$0xf]
  %v65 = vld [vmem:[%s2 + $0x84] sm:$0xff]
  %v66 = vld [vmem:[%s2 + $0x8c] sm:$0xf]
  %v67 = vld [vmem:[%s2 + $0x90] sm:$0xff]
  %v68 = vld [vmem:[%s2 + $0x98] sm:$0xf]
  %v69 = vld [vmem:[%s2 + $0x9c] sm:$0xff]
  %v70 = vld [vmem:[%s2 + $0xa4] sm:$0xf]
  %v71 = vld [vmem:[%s2 + $0xa8] sm:$0xff]
  %v72 = vld [vmem:[%s2 + $0xb0] sm:$0xf]
  %v73 = vld [vmem:[%s2 + $0xb4] sm:$0xff]
  %v74 = vld [vmem:[%s2 + $0xbc] sm:$0xf]
  %v75 = vld [vmem:[%s4] sm:$0x7]
  %v77 = vperm.slane %v75, 0
  %v78 = vperm.slane %v75, 1
  %v79 = vperm.slane %v75, 2
  %v91 = vunpack.c.l.b16 %v35
  %v92 = vunpack.c.l.b16 %v36
  %v93 = vunpack.c.l.b16 %v37
  %v94 = vunpack.c.l.b16 %v38
  %v95 = vunpack.c.l.b16 %v39
  %v96 = vunpack.c.l.b16 %v40
  %v97 = vunpack.c.l.b16 %v41
  %v98 = vunpack.c.l.b16 %v42
  %v99 = vpack.c.b16 %v92, %v91
  %v100 = vpack.c.b16 %v94, %v93
  %v101 = vpack.c.b16 %v96, %v95
  %v102 = vpack.c.b16 %v98, %v97
  %v139 = vunpack.c.l.b16 %v43
  %v140 = vunpack.c.h.b16 %v43
  %v141 = vunpack.c.l.b16 %v44
  %v142 = vunpack.c.l.b16 %v45
  %v143 = vunpack.c.h.b16 %v45
  %v144 = vunpack.c.l.b16 %v46
  %v145 = vunpack.c.l.b16 %v47
  %v146 = vunpack.c.h.b16 %v47
  %v147 = vunpack.c.l.b16 %v48
  %v148 = vunpack.c.l.b16 %v49
  %v149 = vunpack.c.h.b16 %v49
  %v150 = vunpack.c.l.b16 %v50
  %v151 = vunpack.c.l.b16 %v51
  %v152 = vunpack.c.h.b16 %v51
  %v153 = vunpack.c.l.b16 %v52
  %v154 = vunpack.c.l.b16 %v53
  %v155 = vunpack.c.h.b16 %v53
  %v156 = vunpack.c.l.b16 %v54
  %v157 = vunpack.c.l.b16 %v55
  %v158 = vunpack.c.h.b16 %v55
  %v159 = vunpack.c.l.b16 %v56
  %v160 = vunpack.c.l.b16 %v57
  %v161 = vunpack.c.h.b16 %v57
  %v162 = vunpack.c.l.b16 %v58
  %v163 = vunpack.c.l.b16 %v59
  %v164 = vunpack.c.h.b16 %v59
  %v165 = vunpack.c.l.b16 %v60
  %v166 = vunpack.c.l.b16 %v61
  %v167 = vunpack.c.h.b16 %v61
  %v168 = vunpack.c.l.b16 %v62
  %v169 = vunpack.c.l.b16 %v63
  %v170 = vunpack.c.h.b16 %v63
  %v171 = vunpack.c.l.b16 %v64
  %v172 = vunpack.c.l.b16 %v65
  %v173 = vunpack.c.h.b16 %v65
  %v174 = vunpack.c.l.b16 %v66
  %v175 = vunpack.c.l.b16 %v67
  %v176 = vunpack.c.h.b16 %v67
  %v177 = vunpack.c.l.b16 %v68
  %v178 = vunpack.c.l.b16 %v69
  %v179 = vunpack.c.h.b16 %v69
  %v180 = vunpack.c.l.b16 %v70
  %v181 = vunpack.c.l.b16 %v71
  %v182 = vunpack.c.h.b16 %v71
  %v183 = vunpack.c.l.b16 %v72
  %v184 = vunpack.c.l.b16 %v73
  %v185 = vunpack.c.h.b16 %v73
  %v186 = vunpack.c.l.b16 %v74
  %v187 = vpack.c.b16 %v142, %v139
  %v188 = vpack.c.b16 %v143, %v140
  %v189 = vpack.c.b16 %v144, %v141
  %v190 = vpack.c.b16 %v148, %v145
  %v191 = vpack.c.b16 %v149, %v146
  %v192 = vpack.c.b16 %v150, %v147
  %v193 = vpack.c.b16 %v154, %v151
  %v194 = vpack.c.b16 %v155, %v152
  %v195 = vpack.c.b16 %v156, %v153
  %v196 = vpack.c.b16 %v160, %v157
  %v197 = vpack.c.b16 %v161, %v158
  %v198 = vpack.c.b16 %v162, %v159
  %v199 = vpack.c.b16 %v166, %v163
  %v200 = vpack.c.b16 %v167, %v164
  %v201 = vpack.c.b16 %v168, %v165
  %v202 = vpack.c.b16 %v172, %v169
  %v203 = vpack.c.b16 %v173, %v170
  %v204 = vpack.c.b16 %v174, %v171
  %v205 = vpack.c.b16 %v178, %v175
  %v206 = vpack.c.b16 %v179, %v176
  %v207 = vpack.c.b16 %v180, %v177
  %v208 = vpack.c.b16 %v184, %v181
  %v209 = vpack.c.b16 %v185, %v182
  %v210 = vpack.c.b16 %v186, %v183
  %235 = vmatpush.bf16.msra.mxu0 %v208
  %236 = vmatpush.bf16.msra.mxu0 %v205
  %237 = vmatpush.bf16.msra.mxu0 %v202
  %238 = vmatpush.bf16.msra.mxu0 %v199
  %239 = vmatpush.bf16.msra.mxu0 %v196
  %240 = vmatpush.bf16.msra.mxu0 %v193
  %241 = vmatpush.bf16.msra.mxu0 %v190
  %242 = vmatpush.bf16.msra.mxu0 %v187
  %243 = vmatmul.bf16.gmra.mxu0 %v99
  %v244 = vpop.f32.mrf.mxu0
  %v245 = vadd.f32 %v77, %v244
  %v246 = vpop.f32.mrf.mxu0
  %v247 = vadd.f32 %v77, %v246
  %248 = vmatmul.bf16.gmra.mxu0 %v100
  %v249 = vpop.f32.mrf.mxu0
  %v250 = vadd.f32 %v77, %v249
  %v251 = vpop.f32.mrf.mxu0
  %v252 = vadd.f32 %v77, %v251
  %253 = vmatmul.bf16.gmra.mxu0 %v101
  %v254 = vpop.f32.mrf.mxu0
  %v255 = vadd.f32 %v77, %v254
  %v256 = vpop.f32.mrf.mxu0
  %v257 = vadd.f32 %v77, %v256
  %258 = vmatmul.bf16.gmra.mxu0 %v102
  %v259 = vpop.f32.mrf.mxu0
  %v260 = vadd.f32 %v77, %v259
  %v261 = vpop.f32.mrf.mxu0
  %v262 = vadd.f32 %v77, %v261
  %263 = vdwg.mxu0
  %264 = vmatpush.bf16.msra.mxu0 %v209
  %265 = vmatpush.bf16.msra.mxu0 %v206
  %266 = vmatpush.bf16.msra.mxu0 %v203
  %267 = vmatpush.bf16.msra.mxu0 %v200
  %268 = vmatpush.bf16.msra.mxu0 %v197
  %269 = vmatpush.bf16.msra.mxu0 %v194
  %270 = vmatpush.bf16.msra.mxu0 %v191
  %271 = vmatpush.bf16.msra.mxu0 %v188
  %272 = vmatmul.bf16.gmra.mxu0 %v99
  %v273 = vpop.f32.mrf.mxu0
  %v274 = vadd.f32 %v78, %v273
  %v275 = vpop.f32.mrf.mxu0
  %v276 = vadd.f32 %v78, %v275
  %277 = vmatmul.bf16.gmra.mxu0 %v100
  %v278 = vpop.f32.mrf.mxu0
  %v279 = vadd.f32 %v78, %v278
  %v280 = vpop.f32.mrf.mxu0
  %v281 = vadd.f32 %v78, %v280
  %282 = vmatmul.bf16.gmra.mxu0 %v101
  %v283 = vpop.f32.mrf.mxu0
  %v284 = vadd.f32 %v78, %v283
  %v285 = vpop.f32.mrf.mxu0
  %v286 = vadd.f32 %v78, %v285
  %287 = vmatmul.bf16.gmra.mxu0 %v102
  %v288 = vpop.f32.mrf.mxu0
  %v289 = vadd.f32 %v78, %v288
  %v290 = vpop.f32.mrf.mxu0
  %v291 = vadd.f32 %v78, %v290
  %292 = vdwg.mxu0
  %293 = vmatpush.bf16.msra.mxu0 %v210
  %294 = vmatpush.bf16.msra.mxu0 %v207
  %295 = vmatpush.bf16.msra.mxu0 %v204
  %296 = vmatpush.bf16.msra.mxu0 %v201
  %297 = vmatpush.bf16.msra.mxu0 %v198
  %298 = vmatpush.bf16.msra.mxu0 %v195
  %299 = vmatpush.bf16.msra.mxu0 %v192
  %300 = vmatpush.bf16.msra.mxu0 %v189
  %301 = vmatmul.bf16.gmra.mxu0 %v99
  %v302 = vpop.f32.mrf.mxu0
  %v303 = vadd.f32 %v79, %v302
  %v304 = vpop.f32.mrf.mxu0
  %v305 = vadd.f32 %v79, %v304
  %306 = vmatmul.bf16.gmra.mxu0 %v100
  %v307 = vpop.f32.mrf.mxu0
  %v308 = vadd.f32 %v79, %v307
  %v309 = vpop.f32.mrf.mxu0
  %v310 = vadd.f32 %v79, %v309
  %311 = vmatmul.bf16.gmra.mxu0 %v101
  %v312 = vpop.f32.mrf.mxu0
  %v313 = vadd.f32 %v79, %v312
  %v314 = vpop.f32.mrf.mxu0
  %v315 = vadd.f32 %v79, %v314
  %316 = vmatmul.bf16.gmra.mxu0 %v102
  %v317 = vpop.f32.mrf.mxu0
  %v318 = vadd.f32 %v79, %v317
  %v319 = vpop.f32.mrf.mxu0
  %v320 = vadd.f32 %v79, %v319
  %321 = vdwg.mxu0
  %322 = vst [vmem:[#allocation2] sm:$0xff] %v245
  %323 = vst [vmem:[#allocation2 + $0x8] sm:$0xff] %v274
  %324 = vst [vmem:[#allocation2 + $0x10] sm:$0xff] %v303
  %325 = vst [vmem:[#allocation2 + $0x18] sm:$0xff] %v247
  %326 = vst [vmem:[#allocation2 + $0x20] sm:$0xff] %v276
  %327 = vst [vmem:[#allocation2 + $0x28] sm:$0xff] %v305
  %328 = vst [vmem:[#allocation2 + $0x30] sm:$0xff] %v250
  %329 = vst [vmem:[#allocation2 + $0x38] sm:$0xff] %v279
  %330 = vst [vmem:[#allocation2 + $0x40] sm:$0xff] %v308
  %331 = vst [vmem:[#allocation2 + $0x48] sm:$0xff] %v252
  %332 = vst [vmem:[#allocation2 + $0x50] sm:$0xff] %v281
  %333 = vst [vmem:[#allocation2 + $0x58] sm:$0xff] %v310
  %334 = vst [vmem:[#allocation2 + $0x60] sm:$0xff] %v255
  %335 = vst [vmem:[#allocation2 + $0x68] sm:$0xff] %v284
  %336 = vst [vmem:[#allocation2 + $0x70] sm:$0xff] %v313
  %337 = vst [vmem:[#allocation2 + $0x78] sm:$0xff] %v257
  %338 = vst [vmem:[#allocation2 + $0x80] sm:$0xff] %v286
  %339 = vst [vmem:[#allocation2 + $0x88] sm:$0xff] %v315
  %340 = vst [vmem:[#allocation2 + $0x90] sm:$0xff] %v260
  %341 = vst [vmem:[#allocation2 + $0x98] sm:$0xff] %v289
  %342 = vst [vmem:[#allocation2 + $0xa0] sm:$0xff] %v318
  %343 = vst [vmem:[#allocation2 + $0xa8] sm:$0xff] %v262
  %344 = vst [vmem:[#allocation2 + $0xb0] sm:$0xff] %v291
  %345 = vst [vmem:[#allocation2 + $0xb8] sm:$0xff] %v320
  %v346 = vld [vmem:[%s3] sm:$0xff]
  %v347 = vld [vmem:[%s3 + $0x8] sm:$0xf]
  %v348 = vld [vmem:[%s3 + $0xc] sm:$0xff]
  %v349 = vld [vmem:[%s3 + $0x14] sm:$0xf]
  %v350 = vld [vmem:[%s3 + $0x18] sm:$0xff]
  %v351 = vld [vmem:[%s3 + $0x20] sm:$0xf]
  %v352 = vld [vmem:[%s3 + $0x24] sm:$0xff]
  %v353 = vld [vmem:[%s3 + $0x2c] sm:$0xf]
  %v354 = vld [vmem:[%s3 + $0x30] sm:$0xff]
  %v355 = vld [vmem:[%s3 + $0x38] sm:$0xf]
  %v356 = vld [vmem:[%s3 + $0x3c] sm:$0xff]
  %v357 = vld [vmem:[%s3 + $0x44] sm:$0xf]
  %v358 = vld [vmem:[%s3 + $0x48] sm:$0xff]
  %v359 = vld [vmem:[%s3 + $0x50] sm:$0xf]
  %v360 = vld [vmem:[%s3 + $0x54] sm:$0xff]
  %v361 = vld [vmem:[%s3 + $0x5c] sm:$0xf]
  %v362 = vld [vmem:[%s3 + $0x60] sm:$0xff]
  %v363 = vld [vmem:[%s3 + $0x68] sm:$0xf]
  %v364 = vld [vmem:[%s3 + $0x6c] sm:$0xff]
  %v365 = vld [vmem:[%s3 + $0x74] sm:$0xf]
  %v366 = vld [vmem:[%s3 + $0x78] sm:$0xff]
  %v367 = vld [vmem:[%s3 + $0x80] sm:$0xf]
  %v368 = vld [vmem:[%s3 + $0x84] sm:$0xff]
  %v369 = vld [vmem:[%s3 + $0x8c] sm:$0xf]
  %v370 = vld [vmem:[%s3 + $0x90] sm:$0xff]
  %v371 = vld [vmem:[%s3 + $0x98] sm:$0xf]
  %v372 = vld [vmem:[%s3 + $0x9c] sm:$0xff]
  %v373 = vld [vmem:[%s3 + $0xa4] sm:$0xf]
  %v374 = vld [vmem:[%s3 + $0xa8] sm:$0xff]
  %v375 = vld [vmem:[%s3 + $0xb0] sm:$0xf]
  %v376 = vld [vmem:[%s3 + $0xb4] sm:$0xff]
  %v377 = vld [vmem:[%s3 + $0xbc] sm:$0xf]
  %v378 = vld [vmem:[%s5] sm:$0x1]
  %v379 = vld [vmem:[%s1] sm:$0xff]
  %s380 = smul.u32 0, 3
  %s381 = smul.addr %s380, 8
  %s382 = scalar_lea.vmem [#allocation2], %s381
  %v383 = vld [vmem:[%s382] sm:$0xff]
  %v384 = vld [vmem:[%s382 + $0x8] sm:$0xff]
  %v385 = vld [vmem:[%s382 + $0x10] sm:$0xff]
  %v386 = vpack.c.bf16 %v379, %v379
  %v419 = vunpack.c.l.b16 %v346
  %v420 = vunpack.c.h.b16 %v346
  %v421 = vunpack.c.l.b16 %v347
  %v422 = vunpack.c.l.b16 %v348
  %v423 = vunpack.c.h.b16 %v348
  %v424 = vunpack.c.l.b16 %v349
  %v425 = vunpack.c.l.b16 %v350
  %v426 = vunpack.c.h.b16 %v350
  %v427 = vunpack.c.l.b16 %v351
  %v428 = vunpack.c.l.b16 %v352
  %v429 = vunpack.c.h.b16 %v352
  %v430 = vunpack.c.l.b16 %v353
  %v431 = vunpack.c.l.b16 %v354
  %v432 = vunpack.c.h.b16 %v354
  %v433 = vunpack.c.l.b16 %v355
  %v434 = vunpack.c.l.b16 %v356
  %v435 = vunpack.c.h.b16 %v356
  %v436 = vunpack.c.l.b16 %v357
  %v437 = vunpack.c.l.b16 %v358
  %v438 = vunpack.c.h.b16 %v358
  %v439 = vunpack.c.l.b16 %v359
  %v440 = vunpack.c.l.b16 %v360
  %v441 = vunpack.c.h.b16 %v360
  %v442 = vunpack.c.l.b16 %v361
  %v443 = vunpack.c.l.b16 %v362
  %v444 = vunpack.c.h.b16 %v362
  %v445 = vunpack.c.l.b16 %v363
  %v446 = vunpack.c.l.b16 %v364
  %v447 = vunpack.c.h.b16 %v364
  %v448 = vunpack.c.l.b16 %v365
  %v449 = vunpack.c.l.b16 %v366
  %v450 = vunpack.c.h.b16 %v366
  %v451 = vunpack.c.l.b16 %v367
  %v452 = vunpack.c.l.b16 %v368
  %v453 = vunpack.c.h.b16 %v368
  %v454 = vunpack.c.l.b16 %v369
  %v455 = vunpack.c.l.b16 %v370
  %v456 = vunpack.c.h.b16 %v370
  %v457 = vunpack.c.l.b16 %v371
  %v458 = vunpack.c.l.b16 %v372
  %v459 = vunpack.c.h.b16 %v372
  %v460 = vunpack.c.l.b16 %v373
  %v461 = vunpack.c.l.b16 %v374
  %v462 = vunpack.c.h.b16 %v374
  %v463 = vunpack.c.l.b16 %v375
  %v464 = vunpack.c.l.b16 %v376
  %v465 = vunpack.c.h.b16 %v376
  %v466 = vunpack.c.l.b16 %v377
  %v467 = vpack.c.b16 %v422, %v419
  %v468 = vpack.c.b16 %v423, %v420
  %v469 = vpack.c.b16 %v424, %v421
  %v470 = vpack.c.b16 %v428, %v425
  %v471 = vpack.c.b16 %v429, %v426
  %v472 = vpack.c.b16 %v430, %v427
  %v473 = vpack.c.b16 %v434, %v431
  %v474 = vpack.c.b16 %v435, %v432
  %v475 = vpack.c.b16 %v436, %v433
  %v476 = vpack.c.b16 %v440, %v437
  %v477 = vpack.c.b16 %v441, %v438
  %v478 = vpack.c.b16 %v442, %v439
  %v479 = vpack.c.b16 %v446, %v443
  %v480 = vpack.c.b16 %v447, %v444
  %v481 = vpack.c.b16 %v448, %v445
  %v482 = vpack.c.b16 %v452, %v449
  %v483 = vpack.c.b16 %v453, %v450
  %v484 = vpack.c.b16 %v454, %v451
  %v485 = vpack.c.b16 %v458, %v455
  %v486 = vpack.c.b16 %v459, %v456
  %v487 = vpack.c.b16 %v460, %v457
  %v488 = vpack.c.b16 %v464, %v461
  %v489 = vpack.c.b16 %v465, %v462
  %v490 = vpack.c.b16 %v466, %v463
  %515 = vmatpush.bf16.msra.mxu0 %v488
  %516 = vmatpush.bf16.msra.mxu0 %v485
  %517 = vmatpush.bf16.msra.mxu0 %v482
  %518 = vmatpush.bf16.msra.mxu0 %v479
  %519 = vmatpush.bf16.msra.mxu0 %v476
  %520 = vmatpush.bf16.msra.mxu0 %v473
  %521 = vmatpush.bf16.msra.mxu0 %v470
  %522 = vmatpush.bf16.msra.mxu0 %v467
  %523 = vmatmul.bf16.gmra.mxu0 %v386
  %v524 = vpop.f32.mrf.mxu0
  %v525 = vadd.f32 0.0, %v524
  %v526 = vpop.f32.mrf.mxu0
  %527 = vdwg.mxu0
  %528 = vmatpush.bf16.msra.mxu0 %v489
  %529 = vmatpush.bf16.msra.mxu0 %v486
  %530 = vmatpush.bf16.msra.mxu0 %v483
  %531 = vmatpush.bf16.msra.mxu0 %v480
  %532 = vmatpush.bf16.msra.mxu0 %v477
  %533 = vmatpush.bf16.msra.mxu0 %v474
  %534 = vmatpush.bf16.msra.mxu0 %v471
  %535 = vmatpush.bf16.msra.mxu0 %v468
  %536 = vmatmul.bf16.gmra.mxu0 %v386
  %v537 = vpop.f32.mrf.mxu0
  %v538 = vadd.f32 0.0, %v537
  %v539 = vpop.f32.mrf.mxu0
  %540 = vdwg.mxu0
  %541 = vmatpush.bf16.msra.mxu0 %v490
  %542 = vmatpush.bf16.msra.mxu0 %v487
  %543 = vmatpush.bf16.msra.mxu0 %v484
  %544 = vmatpush.bf16.msra.mxu0 %v481
  %545 = vmatpush.bf16.msra.mxu0 %v478
  %546 = vmatpush.bf16.msra.mxu0 %v475
  %547 = vmatpush.bf16.msra.mxu0 %v472
  %548 = vmatpush.bf16.msra.mxu0 %v469
  %549 = vmatmul.bf16.gmra.mxu0 %v386
  %v550 = vpop.f32.mrf.mxu0
  %v551 = vadd.f32 0.0, %v550
  %v552 = vpop.f32.mrf.mxu0
  %553 = vdwg.mxu0
  %v554 = vadd.f32 %v383, %v525
  %v555 = vxor.u32 %v554, 2147483648
  %v556 = vmul.f32 %v555, 1.442695
  %v557 = vpow.pop %v556
  %v558 = vadd.f32 %v557, 1.0
  %v559 = vrcp.pop %v558
  %v560 = vmul.f32 %v558, %v559
  %v561 = vsub.f32 1.0, %v560
  %v562 = vmul.f32 %v559, %v561
  %v563 = vadd.f32 %v559, %v562
  %vm564 = vweird.f32 %v558
  %vm565 = vweird.f32 %v559
  %vm566 = vmor %vm564, %vm565
  %v567 = vsel %vm566, %v559, %v563
  %v568 = vand.u32 2147483647, %v558
  %vm569 = vcmp.eq.f32.partialorder %v568, 8.507059e+37
  %v570 = vand.u32 %v558, 2147483648
  %v571 = vor.u32 1.1754944e-38, %v570
  %v572 = vsel %vm569, %v571, %v567
  %v573 = vmul.f32 1.0, %v572
  %v574 = vadd.f32 %v384, %v538
  %v575 = vxor.u32 %v574, 2147483648
  %v576 = vmul.f32 %v575, 1.442695
  %v577 = vpow.pop %v576
  %v578 = vadd.f32 %v577, 1.0
  %v579 = vrcp.pop %v578
  %v580 = vmul.f32 %v578, %v579
  %v581 = vsub.f32 1.0, %v580
  %v582 = vmul.f32 %v579, %v581
  %v583 = vadd.f32 %v579, %v582
  %vm584 = vweird.f32 %v578
  %vm585 = vweird.f32 %v579
  %vm586 = vmor %vm584, %vm585
  %v587 = vsel %vm586, %v579, %v583
  %v588 = vand.u32 2147483647, %v578
  %vm589 = vcmp.eq.f32.partialorder %v588, 8.507059e+37
  %v590 = vand.u32 %v578, 2147483648
  %v591 = vor.u32 1.1754944e-38, %v590
  %v592 = vsel %vm589, %v591, %v587
  %v593 = vmul.f32 1.0, %v592
  %v595 = vperm.slane %v378, 0
  %v597 = vadd.f32 %v551, %v595
  %v598 = vmul.f32 %v573, %v597
  %v599 = vadd.f32 %v385, %v598
  %v600 = vtanh.pop %v599
  %v601 = vsub.f32 1.0, %v593
  %v602 = vmul.f32 %v601, %v600
  %v603 = vmul.f32 %v593, %v379
  %v604 = vadd.f32 %v602, %v603
  %605 = vst [vmem:[#allocation3] sm:$0xff] %v604
  %s606 = smul.u32 1, 3
  %s607 = smul.addr %s606, 8
  %s608 = scalar_lea.vmem [#allocation2], %s607
  %v609 = vld [vmem:[%s608] sm:$0xff]
  %v610 = vld [vmem:[%s608 + $0x8] sm:$0xff]
  %v611 = vld [vmem:[%s608 + $0x10] sm:$0xff]
  %v612 = vpack.c.bf16 %v604, %v604
  %613 = vmatpush.bf16.msra.mxu0 %v488
  %614 = vmatpush.bf16.msra.mxu0 %v485
  %615 = vmatpush.bf16.msra.mxu0 %v482
  %616 = vmatpush.bf16.msra.mxu0 %v479
  %617 = vmatpush.bf16.msra.mxu0 %v476
  %618 = vmatpush.bf16.msra.mxu0 %v473
  %619 = vmatpush.bf16.msra.mxu0 %v470
  %620 = vmatpush.bf16.msra.mxu0 %v467
  %621 = vmatmul.bf16.gmra.mxu0 %v612
  %v622 = vpop.f32.mrf.mxu0
  %v623 = vadd.f32 0.0, %v622
  %v624 = vpop.f32.mrf.mxu0
  %625 = vdwg.mxu0
  %626 = vmatpush.bf16.msra.mxu0 %v489
  %627 = vmatpush.bf16.msra.mxu0 %v486
  %628 = vmatpush.bf16.msra.mxu0 %v483
  %629 = vmatpush.bf16.msra.mxu0 %v480
  %630 = vmatpush.bf16.msra.mxu0 %v477
  %631 = vmatpush.bf16.msra.mxu0 %v474
  %632 = vmatpush.bf16.msra.mxu0 %v471
  %633 = vmatpush.bf16.msra.mxu0 %v468
  %634 = vmatmul.bf16.gmra.mxu0 %v612
  %v635 = vpop.f32.mrf.mxu0
  %v636 = vadd.f32 0.0, %v635
  %v637 = vpop.f32.mrf.mxu0
  %638 = vdwg.mxu0
  %639 = vmatpush.bf16.msra.mxu0 %v490
  %640 = vmatpush.bf16.msra.mxu0 %v487
  %641 = vmatpush.bf16.msra.mxu0 %v484
  %642 = vmatpush.bf16.msra.mxu0 %v481
  %643 = vmatpush.bf16.msra.mxu0 %v478
  %644 = vmatpush.bf16.msra.mxu0 %v475
  %645 = vmatpush.bf16.msra.mxu0 %v472
  %646 = vmatpush.bf16.msra.mxu0 %v469
  %647 = vmatmul.bf16.gmra.mxu0 %v612
  %v648 = vpop.f32.mrf.mxu0
  %v649 = vadd.f32 0.0, %v648
  %v650 = vpop.f32.mrf.mxu0
  %651 = vdwg.mxu0
  %v652 = vadd.f32 %v609, %v623
  %v653 = vxor.u32 %v652, 2147483648
  %v654 = vmul.f32 %v653, 1.442695
  %v655 = vpow.pop %v654
  %v656 = vadd.f32 %v655, 1.0
  %v657 = vrcp.pop %v656
  %v658 = vmul.f32 %v656, %v657
  %v659 = vsub.f32 1.0, %v658
  %v660 = vmul.f32 %v657, %v659
  %v661 = vadd.f32 %v657, %v660
  %vm662 = vweird.f32 %v656
  %vm663 = vweird.f32 %v657
  %vm664 = vmor %vm662, %vm663
  %v665 = vsel %vm664, %v657, %v661
  %v666 = vand.u32 2147483647, %v656
  %vm667 = vcmp.eq.f32.partialorder %v666, 8.507059e+37
  %v668 = vand.u32 %v656, 2147483648
  %v669 = vor.u32 1.1754944e-38, %v668
  %v670 = vsel %vm667, %v669, %v665
  %v671 = vmul.f32 1.0, %v670
  %v672 = vadd.f32 %v610, %v636
  %v673 = vxor.u32 %v672, 2147483648
  %v674 = vmul.f32 %v673, 1.442695
  %v675 = vpow.pop %v674
  %v676 = vadd.f32 %v675, 1.0
  %v677 = vrcp.pop %v676
  %v678 = vmul.f32 %v676, %v677
  %v679 = vsub.f32 1.0, %v678
  %v680 = vmul.f32 %v677, %v679
  %v681 = vadd.f32 %v677, %v680
  %vm682 = vweird.f32 %v676
  %vm683 = vweird.f32 %v677
  %vm684 = vmor %vm682, %vm683
  %v685 = vsel %vm684, %v677, %v681
  %v686 = vand.u32 2147483647, %v676
  %vm687 = vcmp.eq.f32.partialorder %v686, 8.507059e+37
  %v688 = vand.u32 %v676, 2147483648
  %v689 = vor.u32 1.1754944e-38, %v688
  %v690 = vsel %vm687, %v689, %v685
  %v691 = vmul.f32 1.0, %v690
  %v692 = vadd.f32 %v649, %v595
  %v693 = vmul.f32 %v671, %v692
  %v694 = vadd.f32 %v611, %v693
  %v695 = vtanh.pop %v694
  %v696 = vsub.f32 1.0, %v691
  %v697 = vmul.f32 %v696, %v695
  %v698 = vmul.f32 %v691, %v604
  %v699 = vadd.f32 %v697, %v698
  %s700 = scalar_lea.vmem [#allocation3], 8
  %701 = vst [vmem:[%s700] sm:$0xff] %v699
  %s702 = smul.u32 2, 3
  %s703 = smul.addr %s702, 8
  %s704 = scalar_lea.vmem [#allocation2], %s703
  %v705 = vld [vmem:[%s704] sm:$0xff]
  %v706 = vld [vmem:[%s704 + $0x8] sm:$0xff]
  %v707 = vld [vmem:[%s704 + $0x10] sm:$0xff]
  %v708 = vpack.c.bf16 %v699, %v699
  %709 = vmatpush.bf16.msra.mxu0 %v488
  %710 = vmatpush.bf16.msra.mxu0 %v485
  %711 = vmatpush.bf16.msra.mxu0 %v482
  %712 = vmatpush.bf16.msra.mxu0 %v479
  %713 = vmatpush.bf16.msra.mxu0 %v476
  %714 = vmatpush.bf16.msra.mxu0 %v473
  %715 = vmatpush.bf16.msra.mxu0 %v470
  %716 = vmatpush.bf16.msra.mxu0 %v467
  %717 = vmatmul.bf16.gmra.mxu0 %v708
  %v718 = vpop.f32.mrf.mxu0
  %v719 = vadd.f32 0.0, %v718
  %v720 = vpop.f32.mrf.mxu0
  %721 = vdwg.mxu0
  %722 = vmatpush.bf16.msra.mxu0 %v489
  %723 = vmatpush.bf16.msra.mxu0 %v486
  %724 = vmatpush.bf16.msra.mxu0 %v483
  %725 = vmatpush.bf16.msra.mxu0 %v480
  %726 = vmatpush.bf16.msra.mxu0 %v477
  %727 = vmatpush.bf16.msra.mxu0 %v474
  %728 = vmatpush.bf16.msra.mxu0 %v471
  %729 = vmatpush.bf16.msra.mxu0 %v468
  %730 = vmatmul.bf16.gmra.mxu0 %v708
  %v731 = vpop.f32.mrf.mxu0
  %v732 = vadd.f32 0.0, %v731
  %v733 = vpop.f32.mrf.mxu0
  %734 = vdwg.mxu0
  %735 = vmatpush.bf16.msra.mxu0 %v490
  %736 = vmatpush.bf16.msra.mxu0 %v487
  %737 = vmatpush.bf16.msra.mxu0 %v484
  %738 = vmatpush.bf16.msra.mxu0 %v481
  %739 = vmatpush.bf16.msra.mxu0 %v478
  %740 = vmatpush.bf16.msra.mxu0 %v475
  %741 = vmatpush.bf16.msra.mxu0 %v472
  %742 = vmatpush.bf16.msra.mxu0 %v469
  %743 = vmatmul.bf16.gmra.mxu0 %v708
  %v744 = vpop.f32.mrf.mxu0
  %v745 = vadd.f32 0.0, %v744
  %v746 = vpop.f32.mrf.mxu0
  %747 = vdwg.mxu0
  %v748 = vadd.f32 %v705, %v719
  %v749 = vxor.u32 %v748, 2147483648
  %v750 = vmul.f32 %v749, 1.442695
  %v751 = vpow.pop %v750
  %v752 = vadd.f32 %v751, 1.0
  %v753 = vrcp.pop %v752
  %v754 = vmul.f32 %v752, %v753
  %v755 = vsub.f32 1.0, %v754
  %v756 = vmul.f32 %v753, %v755
  %v757 = vadd.f32 %v753, %v756
  %vm758 = vweird.f32 %v752
  %vm759 = vweird.f32 %v753
  %vm760 = vmor %vm758, %vm759
  %v761 = vsel %vm760, %v753, %v757
  %v762 = vand.u32 2147483647, %v752
  %vm763 = vcmp.eq.f32.partialorder %v762, 8.507059e+37
  %v764 = vand.u32 %v752, 2147483648
  %v765 = vor.u32 1.1754944e-38, %v764
  %v766 = vsel %vm763, %v765, %v761
  %v767 = vmul.f32 1.0, %v766
  %v768 = vadd.f32 %v706, %v732
  %v769 = vxor.u32 %v768, 2147483648
  %v770 = vmul.f32 %v769, 1.442695
  %v771 = vpow.pop %v770
  %v772 = vadd.f32 %v771, 1.0
  %v773 = vrcp.pop %v772
  %v774 = vmul.f32 %v772, %v773
  %v775 = vsub.f32 1.0, %v774
  %v776 = vmul.f32 %v773, %v775
  %v777 = vadd.f32 %v773, %v776
  %vm778 = vweird.f32 %v772
  %vm779 = vweird.f32 %v773
  %vm780 = vmor %vm778, %vm779
  %v781 = vsel %vm780, %v773, %v777
  %v782 = vand.u32 2147483647, %v772
  %vm783 = vcmp.eq.f32.partialorder %v782, 8.507059e+37
  %v784 = vand.u32 %v772, 2147483648
  %v785 = vor.u32 1.1754944e-38, %v784
  %v786 = vsel %vm783, %v785, %v781
  %v787 = vmul.f32 1.0, %v786
  %v788 = vadd.f32 %v745, %v595
  %v789 = vmul.f32 %v767, %v788
  %v790 = vadd.f32 %v707, %v789
  %v791 = vtanh.pop %v790
  %v792 = vsub.f32 1.0, %v787
  %v793 = vmul.f32 %v792, %v791
  %v794 = vmul.f32 %v787, %v699
  %v795 = vadd.f32 %v793, %v794
  %s796 = scalar_lea.vmem [#allocation3], 16
  %797 = vst [vmem:[%s796] sm:$0xff] %v795
  %s798 = smul.u32 3, 3
  %s799 = smul.addr %s798, 8
  %s800 = scalar_lea.vmem [#allocation2], %s799
  %v801 = vld [vmem:[%s800] sm:$0xff]
  %v802 = vld [vmem:[%s800 + $0x8] sm:$0xff]
  %v803 = vld [vmem:[%s800 + $0x10] sm:$0xff]
  %v804 = vpack.c.bf16 %v795, %v795
  %805 = vmatpush.bf16.msra.mxu0 %v488
  %806 = vmatpush.bf16.msra.mxu0 %v485
  %807 = vmatpush.bf16.msra.mxu0 %v482
  %808 = vmatpush.bf16.msra.mxu0 %v479
  %809 = vmatpush.bf16.msra.mxu0 %v476
  %810 = vmatpush.bf16.msra.mxu0 %v473
  %811 = vmatpush.bf16.msra.mxu0 %v470
  %812 = vmatpush.bf16.msra.mxu0 %v467
  %813 = vmatmul.bf16.gmra.mxu0 %v804
  %v814 = vpop.f32.mrf.mxu0
  %v815 = vadd.f32 0.0, %v814
  %v816 = vpop.f32.mrf.mxu0
  %817 = vdwg.mxu0
  %818 = vmatpush.bf16.msra.mxu0 %v489
  %819 = vmatpush.bf16.msra.mxu0 %v486
  %820 = vmatpush.bf16.msra.mxu0 %v483
  %821 = vmatpush.bf16.msra.mxu0 %v480
  %822 = vmatpush.bf16.msra.mxu0 %v477
  %823 = vmatpush.bf16.msra.mxu0 %v474
  %824 = vmatpush.bf16.msra.mxu0 %v471
  %825 = vmatpush.bf16.msra.mxu0 %v468
  %826 = vmatmul.bf16.gmra.mxu0 %v804
  %v827 = vpop.f32.mrf.mxu0
  %v828 = vadd.f32 0.0, %v827
  %v829 = vpop.f32.mrf.mxu0
  %830 = vdwg.mxu0
  %831 = vmatpush.bf16.msra.mxu0 %v490
  %832 = vmatpush.bf16.msra.mxu0 %v487
  %833 = vmatpush.bf16.msra.mxu0 %v484
  %834 = vmatpush.bf16.msra.mxu0 %v481
  %835 = vmatpush.bf16.msra.mxu0 %v478
  %836 = vmatpush.bf16.msra.mxu0 %v475
  %837 = vmatpush.bf16.msra.mxu0 %v472
  %838 = vmatpush.bf16.msra.mxu0 %v469
  %839 = vmatmul.bf16.gmra.mxu0 %v804
  %v840 = vpop.f32.mrf.mxu0
  %v841 = vadd.f32 0.0, %v840
  %v842 = vpop.f32.mrf.mxu0
  %843 = vdwg.mxu0
  %v844 = vadd.f32 %v801, %v815
  %v845 = vxor.u32 %v844, 2147483648
  %v846 = vmul.f32 %v845, 1.442695
  %v847 = vpow.pop %v846
  %v848 = vadd.f32 %v847, 1.0
  %v849 = vrcp.pop %v848
  %v850 = vmul.f32 %v848, %v849
  %v851 = vsub.f32 1.0, %v850
  %v852 = vmul.f32 %v849, %v851
  %v853 = vadd.f32 %v849, %v852
  %vm854 = vweird.f32 %v848
  %vm855 = vweird.f32 %v849
  %vm856 = vmor %vm854, %vm855
  %v857 = vsel %vm856, %v849, %v853
  %v858 = vand.u32 2147483647, %v848
  %vm859 = vcmp.eq.f32.partialorder %v858, 8.507059e+37
  %v860 = vand.u32 %v848, 2147483648
  %v861 = vor.u32 1.1754944e-38, %v860
  %v862 = vsel %vm859, %v861, %v857
  %v863 = vmul.f32 1.0, %v862
  %v864 = vadd.f32 %v802, %v828
  %v865 = vxor.u32 %v864, 2147483648
  %v866 = vmul.f32 %v865, 1.442695
  %v867 = vpow.pop %v866
  %v868 = vadd.f32 %v867, 1.0
  %v869 = vrcp.pop %v868
  %v870 = vmul.f32 %v868, %v869
  %v871 = vsub.f32 1.0, %v870
  %v872 = vmul.f32 %v869, %v871
  %v873 = vadd.f32 %v869, %v872
  %vm874 = vweird.f32 %v868
  %vm875 = vweird.f32 %v869
  %vm876 = vmor %vm874, %vm875
  %v877 = vsel %vm876, %v869, %v873
  %v878 = vand.u32 2147483647, %v868
  %vm879 = vcmp.eq.f32.partialorder %v878, 8.507059e+37
  %v880 = vand.u32 %v868, 2147483648
  %v881 = vor.u32 1.1754944e-38, %v880
  %v882 = vsel %vm879, %v881, %v877
  %v883 = vmul.f32 1.0, %v882
  %v884 = vadd.f32 %v841, %v595
  %v885 = vmul.f32 %v863, %v884
  %v886 = vadd.f32 %v803, %v885
  %v887 = vtanh.pop %v886
  %v888 = vsub.f32 1.0, %v883
  %v889 = vmul.f32 %v888, %v887
  %v890 = vmul.f32 %v883, %v795
  %v891 = vadd.f32 %v889, %v890
  %s892 = scalar_lea.vmem [#allocation3], 24
  %893 = vst [vmem:[%s892] sm:$0xff] %v891
  %s894 = smul.u32 4, 3
  %s895 = smul.addr %s894, 8
  %s896 = scalar_lea.vmem [#allocation2], %s895
  %v897 = vld [vmem:[%s896] sm:$0xff]
  %v898 = vld [vmem:[%s896 + $0x8] sm:$0xff]
  %v899 = vld [vmem:[%s896 + $0x10] sm:$0xff]
  %v900 = vpack.c.bf16 %v891, %v891
  %901 = vmatpush.bf16.msra.mxu0 %v488
  %902 = vmatpush.bf16.msra.mxu0 %v485
  %903 = vmatpush.bf16.msra.mxu0 %v482
  %904 = vmatpush.bf16.msra.mxu0 %v479
  %905 = vmatpush.bf16.msra.mxu0 %v476
  %906 = vmatpush.bf16.msra.mxu0 %v473
  %907 = vmatpush.bf16.msra.mxu0 %v470
  %908 = vmatpush.bf16.msra.mxu0 %v467
  %909 = vmatmul.bf16.gmra.mxu0 %v900
  %v910 = vpop.f32.mrf.mxu0
  %v911 = vadd.f32 0.0, %v910
  %v912 = vpop.f32.mrf.mxu0
  %913 = vdwg.mxu0
  %914 = vmatpush.bf16.msra.mxu0 %v489
  %915 = vmatpush.bf16.msra.mxu0 %v486
  %916 = vmatpush.bf16.msra.mxu0 %v483
  %917 = vmatpush.bf16.msra.mxu0 %v480
  %918 = vmatpush.bf16.msra.mxu0 %v477
  %919 = vmatpush.bf16.msra.mxu0 %v474
  %920 = vmatpush.bf16.msra.mxu0 %v471
  %921 = vmatpush.bf16.msra.mxu0 %v468
  %922 = vmatmul.bf16.gmra.mxu0 %v900
  %v923 = vpop.f32.mrf.mxu0
  %v924 = vadd.f32 0.0, %v923
  %v925 = vpop.f32.mrf.mxu0
  %926 = vdwg.mxu0
  %927 = vmatpush.bf16.msra.mxu0 %v490
  %928 = vmatpush.bf16.msra.mxu0 %v487
  %929 = vmatpush.bf16.msra.mxu0 %v484
  %930 = vmatpush.bf16.msra.mxu0 %v481
  %931 = vmatpush.bf16.msra.mxu0 %v478
  %932 = vmatpush.bf16.msra.mxu0 %v475
  %933 = vmatpush.bf16.msra.mxu0 %v472
  %934 = vmatpush.bf16.msra.mxu0 %v469
  %935 = vmatmul.bf16.gmra.mxu0 %v900
  %v936 = vpop.f32.mrf.mxu0
  %v937 = vadd.f32 0.0, %v936
  %v938 = vpop.f32.mrf.mxu0
  %939 = vdwg.mxu0
  %v940 = vadd.f32 %v897, %v911
  %v941 = vxor.u32 %v940, 2147483648
  %v942 = vmul.f32 %v941, 1.442695
  %v943 = vpow.pop %v942
  %v944 = vadd.f32 %v943, 1.0
  %v945 = vrcp.pop %v944
  %v946 = vmul.f32 %v944, %v945
  %v947 = vsub.f32 1.0, %v946
  %v948 = vmul.f32 %v945, %v947
  %v949 = vadd.f32 %v945, %v948
  %vm950 = vweird.f32 %v944
  %vm951 = vweird.f32 %v945
  %vm952 = vmor %vm950, %vm951
  %v953 = vsel %vm952, %v945, %v949
  %v954 = vand.u32 2147483647, %v944
  %vm955 = vcmp.eq.f32.partialorder %v954, 8.507059e+37
  %v956 = vand.u32 %v944, 2147483648
  %v957 = vor.u32 1.1754944e-38, %v956
  %v958 = vsel %vm955, %v957, %v953
  %v959 = vmul.f32 1.0, %v958
  %v960 = vadd.f32 %v898, %v924
  %v961 = vxor.u32 %v960, 2147483648
  %v962 = vmul.f32 %v961, 1.442695
  %v963 = vpow.pop %v962
  %v964 = vadd.f32 %v963, 1.0
  %v965 = vrcp.pop %v964
  %v966 = vmul.f32 %v964, %v965
  %v967 = vsub.f32 1.0, %v966
  %v968 = vmul.f32 %v965, %v967
  %v969 = vadd.f32 %v965, %v968
  %vm970 = vweird.f32 %v964
  %vm971 = vweird.f32 %v965
  %vm972 = vmor %vm970, %vm971
  %v973 = vsel %vm972, %v965, %v969
  %v974 = vand.u32 2147483647, %v964
  %vm975 = vcmp.eq.f32.partialorder %v974, 8.507059e+37
  %v976 = vand.u32 %v964, 2147483648
  %v977 = vor.u32 1.1754944e-38, %v976
  %v978 = vsel %vm975, %v977, %v973
  %v979 = vmul.f32 1.0, %v978
  %v980 = vadd.f32 %v937, %v595
  %v981 = vmul.f32 %v959, %v980
  %v982 = vadd.f32 %v899, %v981
  %v983 = vtanh.pop %v982
  %v984 = vsub.f32 1.0, %v979
  %v985 = vmul.f32 %v984, %v983
  %v986 = vmul.f32 %v979, %v891
  %v987 = vadd.f32 %v985, %v986
  %s988 = scalar_lea.vmem [#allocation3], 32
  %989 = vst [vmem:[%s988] sm:$0xff] %v987
  %s990 = smul.u32 5, 3
  %s991 = smul.addr %s990, 8
  %s992 = scalar_lea.vmem [#allocation2], %s991
  %v993 = vld [vmem:[%s992] sm:$0xff]
  %v994 = vld [vmem:[%s992 + $0x8] sm:$0xff]
  %v995 = vld [vmem:[%s992 + $0x10] sm:$0xff]
  %v996 = vpack.c.bf16 %v987, %v987
  %997 = vmatpush.bf16.msra.mxu0 %v488
  %998 = vmatpush.bf16.msra.mxu0 %v485
  %999 = vmatpush.bf16.msra.mxu0 %v482
  %1000 = vmatpush.bf16.msra.mxu0 %v479
  %1001 = vmatpush.bf16.msra.mxu0 %v476
  %1002 = vmatpush.bf16.msra.mxu0 %v473
  %1003 = vmatpush.bf16.msra.mxu0 %v470
  %1004 = vmatpush.bf16.msra.mxu0 %v467
  %1005 = vmatmul.bf16.gmra.mxu0 %v996
  %v1006 = vpop.f32.mrf.mxu0
  %v1007 = vadd.f32 0.0, %v1006
  %v1008 = vpop.f32.mrf.mxu0
  %1009 = vdwg.mxu0
  %1010 = vmatpush.bf16.msra.mxu0 %v489
  %1011 = vmatpush.bf16.msra.mxu0 %v486
  %1012 = vmatpush.bf16.msra.mxu0 %v483
  %1013 = vmatpush.bf16.msra.mxu0 %v480
  %1014 = vmatpush.bf16.msra.mxu0 %v477
  %1015 = vmatpush.bf16.msra.mxu0 %v474
  %1016 = vmatpush.bf16.msra.mxu0 %v471
  %1017 = vmatpush.bf16.msra.mxu0 %v468
  %1018 = vmatmul.bf16.gmra.mxu0 %v996
  %v1019 = vpop.f32.mrf.mxu0
  %v1020 = vadd.f32 0.0, %v1019
  %v1021 = vpop.f32.mrf.mxu0
  %1022 = vdwg.mxu0
  %1023 = vmatpush.bf16.msra.mxu0 %v490
  %1024 = vmatpush.bf16.msra.mxu0 %v487
  %1025 = vmatpush.bf16.msra.mxu0 %v484
  %1026 = vmatpush.bf16.msra.mxu0 %v481
  %1027 = vmatpush.bf16.msra.mxu0 %v478
  %1028 = vmatpush.bf16.msra.mxu0 %v475
  %1029 = vmatpush.bf16.msra.mxu0 %v472
  %1030 = vmatpush.bf16.msra.mxu0 %v469
  %1031 = vmatmul.bf16.gmra.mxu0 %v996
  %v1032 = vpop.f32.mrf.mxu0
  %v1033 = vadd.f32 0.0, %v1032
  %v1034 = vpop.f32.mrf.mxu0
  %1035 = vdwg.mxu0
  %v1036 = vadd.f32 %v993, %v1007
  %v1037 = vxor.u32 %v1036, 2147483648
  %v1038 = vmul.f32 %v1037, 1.442695
  %v1039 = vpow.pop %v1038
  %v1040 = vadd.f32 %v1039, 1.0
  %v1041 = vrcp.pop %v1040
  %v1042 = vmul.f32 %v1040, %v1041
  %v1043 = vsub.f32 1.0, %v1042
  %v1044 = vmul.f32 %v1041, %v1043
  %v1045 = vadd.f32 %v1041, %v1044
  %vm1046 = vweird.f32 %v1040
  %vm1047 = vweird.f32 %v1041
  %vm1048 = vmor %vm1046, %vm1047
  %v1049 = vsel %vm1048, %v1041, %v1045
  %v1050 = vand.u32 2147483647, %v1040
  %vm1051 = vcmp.eq.f32.partialorder %v1050, 8.507059e+37
  %v1052 = vand.u32 %v1040, 2147483648
  %v1053 = vor.u32 1.1754944e-38, %v1052
  %v1054 = vsel %vm1051, %v1053, %v1049
  %v1055 = vmul.f32 1.0, %v1054
  %v1056 = vadd.f32 %v994, %v1020
  %v1057 = vxor.u32 %v1056, 2147483648
  %v1058 = vmul.f32 %v1057, 1.442695
  %v1059 = vpow.pop %v1058
  %v1060 = vadd.f32 %v1059, 1.0
  %v1061 = vrcp.pop %v1060
  %v1062 = vmul.f32 %v1060, %v1061
  %v1063 = vsub.f32 1.0, %v1062
  %v1064 = vmul.f32 %v1061, %v1063
  %v1065 = vadd.f32 %v1061, %v1064
  %vm1066 = vweird.f32 %v1060
  %vm1067 = vweird.f32 %v1061
  %vm1068 = vmor %vm1066, %vm1067
  %v1069 = vsel %vm1068, %v1061, %v1065
  %v1070 = vand.u32 2147483647, %v1060
  %vm1071 = vcmp.eq.f32.partialorder %v1070, 8.507059e+37
  %v1072 = vand.u32 %v1060, 2147483648
  %v1073 = vor.u32 1.1754944e-38, %v1072
  %v1074 = vsel %vm1071, %v1073, %v1069
  %v1075 = vmul.f32 1.0, %v1074
  %v1076 = vadd.f32 %v1033, %v595
  %v1077 = vmul.f32 %v1055, %v1076
  %v1078 = vadd.f32 %v995, %v1077
  %v1079 = vtanh.pop %v1078
  %v1080 = vsub.f32 1.0, %v1075
  %v1081 = vmul.f32 %v1080, %v1079
  %v1082 = vmul.f32 %v1075, %v987
  %v1083 = vadd.f32 %v1081, %v1082
  %s1084 = scalar_lea.vmem [#allocation3], 40
  %1085 = vst [vmem:[%s1084] sm:$0xff] %v1083
  %s1086 = smul.u32 6, 3
  %s1087 = smul.addr %s1086, 8
  %s1088 = scalar_lea.vmem [#allocation2], %s1087
  %v1089 = vld [vmem:[%s1088] sm:$0xff]
  %v1090 = vld [vmem:[%s1088 + $0x8] sm:$0xff]
  %v1091 = vld [vmem:[%s1088 + $0x10] sm:$0xff]
  %v1092 = vpack.c.bf16 %v1083, %v1083
  %1093 = vmatpush.bf16.msra.mxu0 %v488
  %1094 = vmatpush.bf16.msra.mxu0 %v485
  %1095 = vmatpush.bf16.msra.mxu0 %v482
  %1096 = vmatpush.bf16.msra.mxu0 %v479
  %1097 = vmatpush.bf16.msra.mxu0 %v476
  %1098 = vmatpush.bf16.msra.mxu0 %v473
  %1099 = vmatpush.bf16.msra.mxu0 %v470
  %1100 = vmatpush.bf16.msra.mxu0 %v467
  %1101 = vmatmul.bf16.gmra.mxu0 %v1092
  %v1102 = vpop.f32.mrf.mxu0
  %v1103 = vadd.f32 0.0, %v1102
  %v1104 = vpop.f32.mrf.mxu0
  %1105 = vdwg.mxu0
  %1106 = vmatpush.bf16.msra.mxu0 %v489
  %1107 = vmatpush.bf16.msra.mxu0 %v486
  %1108 = vmatpush.bf16.msra.mxu0 %v483
  %1109 = vmatpush.bf16.msra.mxu0 %v480
  %1110 = vmatpush.bf16.msra.mxu0 %v477
  %1111 = vmatpush.bf16.msra.mxu0 %v474
  %1112 = vmatpush.bf16.msra.mxu0 %v471
  %1113 = vmatpush.bf16.msra.mxu0 %v468
  %1114 = vmatmul.bf16.gmra.mxu0 %v1092
  %v1115 = vpop.f32.mrf.mxu0
  %v1116 = vadd.f32 0.0, %v1115
  %v1117 = vpop.f32.mrf.mxu0
  %1118 = vdwg.mxu0
  %1119 = vmatpush.bf16.msra.mxu0 %v490
  %1120 = vmatpush.bf16.msra.mxu0 %v487
  %1121 = vmatpush.bf16.msra.mxu0 %v484
  %1122 = vmatpush.bf16.msra.mxu0 %v481
  %1123 = vmatpush.bf16.msra.mxu0 %v478
  %1124 = vmatpush.bf16.msra.mxu0 %v475
  %1125 = vmatpush.bf16.msra.mxu0 %v472
  %1126 = vmatpush.bf16.msra.mxu0 %v469
  %1127 = vmatmul.bf16.gmra.mxu0 %v1092
  %v1128 = vpop.f32.mrf.mxu0
  %v1129 = vadd.f32 0.0, %v1128
  %v1130 = vpop.f32.mrf.mxu0
  %1131 = vdwg.mxu0
  %v1132 = vadd.f32 %v1089, %v1103
  %v1133 = vxor.u32 %v1132, 2147483648
  %v1134 = vmul.f32 %v1133, 1.442695
  %v1135 = vpow.pop %v1134
  %v1136 = vadd.f32 %v1135, 1.0
  %v1137 = vrcp.pop %v1136
  %v1138 = vmul.f32 %v1136, %v1137
  %v1139 = vsub.f32 1.0, %v1138
  %v1140 = vmul.f32 %v1137, %v1139
  %v1141 = vadd.f32 %v1137, %v1140
  %vm1142 = vweird.f32 %v1136
  %vm1143 = vweird.f32 %v1137
  %vm1144 = vmor %vm1142, %vm1143
  %v1145 = vsel %vm1144, %v1137, %v1141
  %v1146 = vand.u32 2147483647, %v1136
  %vm1147 = vcmp.eq.f32.partialorder %v1146, 8.507059e+37
  %v1148 = vand.u32 %v1136, 2147483648
  %v1149 = vor.u32 1.1754944e-38, %v1148
  %v1150 = vsel %vm1147, %v1149, %v1145
  %v1151 = vmul.f32 1.0, %v1150
  %v1152 = vadd.f32 %v1090, %v1116
  %v1153 = vxor.u32 %v1152, 2147483648
  %v1154 = vmul.f32 %v1153, 1.442695
  %v1155 = vpow.pop %v1154
  %v1156 = vadd.f32 %v1155, 1.0
  %v1157 = vrcp.pop %v1156
  %v1158 = vmul.f32 %v1156, %v1157
  %v1159 = vsub.f32 1.0, %v1158
  %v1160 = vmul.f32 %v1157, %v1159
  %v1161 = vadd.f32 %v1157, %v1160
  %vm1162 = vweird.f32 %v1156
  %vm1163 = vweird.f32 %v1157
  %vm1164 = vmor %vm1162, %vm1163
  %v1165 = vsel %vm1164, %v1157, %v1161
  %v1166 = vand.u32 2147483647, %v1156
  %vm1167 = vcmp.eq.f32.partialorder %v1166, 8.507059e+37
  %v1168 = vand.u32 %v1156, 2147483648
  %v1169 = vor.u32 1.1754944e-38, %v1168
  %v1170 = vsel %vm1167, %v1169, %v1165
  %v1171 = vmul.f32 1.0, %v1170
  %v1172 = vadd.f32 %v1129, %v595
  %v1173 = vmul.f32 %v1151, %v1172
  %v1174 = vadd.f32 %v1091, %v1173
  %v1175 = vtanh.pop %v1174
  %v1176 = vsub.f32 1.0, %v1171
  %v1177 = vmul.f32 %v1176, %v1175
  %v1178 = vmul.f32 %v1171, %v1083
  %v1179 = vadd.f32 %v1177, %v1178
  %s1180 = scalar_lea.vmem [#allocation3], 48
  %1181 = vst [vmem:[%s1180] sm:$0xff] %v1179
  %s1182 = smul.u32 7, 3
  %s1183 = smul.addr %s1182, 8
  %s1184 = scalar_lea.vmem [#allocation2], %s1183
  %v1185 = vld [vmem:[%s1184] sm:$0xff]
  %v1186 = vld [vmem:[%s1184 + $0x8] sm:$0xff]
  %v1187 = vld [vmem:[%s1184 + $0x10] sm:$0xff]
  %v1188 = vpack.c.bf16 %v1179, %v1179
  %1189 = vmatpush.bf16.msra.mxu0 %v488
  %1190 = vmatpush.bf16.msra.mxu0 %v485
  %1191 = vmatpush.bf16.msra.mxu0 %v482
  %1192 = vmatpush.bf16.msra.mxu0 %v479
  %1193 = vmatpush.bf16.msra.mxu0 %v476
  %1194 = vmatpush.bf16.msra.mxu0 %v473
  %1195 = vmatpush.bf16.msra.mxu0 %v470
  %1196 = vmatpush.bf16.msra.mxu0 %v467
  %1197 = vmatmul.bf16.gmra.mxu0 %v1188
  %v1198 = vpop.f32.mrf.mxu0
  %v1199 = vadd.f32 0.0, %v1198
  %v1200 = vpop.f32.mrf.mxu0
  %1201 = vdwg.mxu0
  %1202 = vmatpush.bf16.msra.mxu0 %v489
  %1203 = vmatpush.bf16.msra.mxu0 %v486
  %1204 = vmatpush.bf16.msra.mxu0 %v483
  %1205 = vmatpush.bf16.msra.mxu0 %v480
  %1206 = vmatpush.bf16.msra.mxu0 %v477
  %1207 = vmatpush.bf16.msra.mxu0 %v474
  %1208 = vmatpush.bf16.msra.mxu0 %v471
  %1209 = vmatpush.bf16.msra.mxu0 %v468
  %1210 = vmatmul.bf16.gmra.mxu0 %v1188
  %v1211 = vpop.f32.mrf.mxu0
  %v1212 = vadd.f32 0.0, %v1211
  %v1213 = vpop.f32.mrf.mxu0
  %1214 = vdwg.mxu0
  %1215 = vmatpush.bf16.msra.mxu0 %v490
  %1216 = vmatpush.bf16.msra.mxu0 %v487
  %1217 = vmatpush.bf16.msra.mxu0 %v484
  %1218 = vmatpush.bf16.msra.mxu0 %v481
  %1219 = vmatpush.bf16.msra.mxu0 %v478
  %1220 = vmatpush.bf16.msra.mxu0 %v475
  %1221 = vmatpush.bf16.msra.mxu0 %v472
  %1222 = vmatpush.bf16.msra.mxu0 %v469
  %1223 = vmatmul.bf16.gmra.mxu0 %v1188
  %v1224 = vpop.f32.mrf.mxu0
  %v1225 = vadd.f32 0.0, %v1224
  %v1226 = vpop.f32.mrf.mxu0
  %1227 = vdwg.mxu0
  %v1228 = vadd.f32 %v1185, %v1199
  %v1229 = vxor.u32 %v1228, 2147483648
  %v1230 = vmul.f32 %v1229, 1.442695
  %v1231 = vpow.pop %v1230
  %v1232 = vadd.f32 %v1231, 1.0
  %v1233 = vrcp.pop %v1232
  %v1234 = vmul.f32 %v1232, %v1233
  %v1235 = vsub.f32 1.0, %v1234
  %v1236 = vmul.f32 %v1233, %v1235
  %v1237 = vadd.f32 %v1233, %v1236
  %vm1238 = vweird.f32 %v1232
  %vm1239 = vweird.f32 %v1233
  %vm1240 = vmor %vm1238, %vm1239
  %v1241 = vsel %vm1240, %v1233, %v1237
  %v1242 = vand.u32 2147483647, %v1232
  %vm1243 = vcmp.eq.f32.partialorder %v1242, 8.507059e+37
  %v1244 = vand.u32 %v1232, 2147483648
  %v1245 = vor.u32 1.1754944e-38, %v1244
  %v1246 = vsel %vm1243, %v1245, %v1241
  %v1247 = vmul.f32 1.0, %v1246
  %v1248 = vadd.f32 %v1186, %v1212
  %v1249 = vxor.u32 %v1248, 2147483648
  %v1250 = vmul.f32 %v1249, 1.442695
  %v1251 = vpow.pop %v1250
  %v1252 = vadd.f32 %v1251, 1.0
  %v1253 = vrcp.pop %v1252
  %v1254 = vmul.f32 %v1252, %v1253
  %v1255 = vsub.f32 1.0, %v1254
  %v1256 = vmul.f32 %v1253, %v1255
  %v1257 = vadd.f32 %v1253, %v1256
  %vm1258 = vweird.f32 %v1252
  %vm1259 = vweird.f32 %v1253
  %vm1260 = vmor %vm1258, %vm1259
  %v1261 = vsel %vm1260, %v1253, %v1257
  %v1262 = vand.u32 2147483647, %v1252
  %vm1263 = vcmp.eq.f32.partialorder %v1262, 8.507059e+37
  %v1264 = vand.u32 %v1252, 2147483648
  %v1265 = vor.u32 1.1754944e-38, %v1264
  %v1266 = vsel %vm1263, %v1265, %v1261
  %v1267 = vmul.f32 1.0, %v1266
  %v1268 = vadd.f32 %v1225, %v595
  %v1269 = vmul.f32 %v1247, %v1268
  %v1270 = vadd.f32 %v1187, %v1269
  %v1271 = vtanh.pop %v1270
  %v1272 = vsub.f32 1.0, %v1267
  %v1273 = vmul.f32 %v1272, %v1271
  %v1274 = vmul.f32 %v1267, %v1179
  %v1275 = vadd.f32 %v1273, %v1274
  %s1276 = scalar_lea.vmem [#allocation3], 56
  %1277 = vst [vmem:[%s1276] sm:$0xff] %v1275
  %v1278 = vld [vmem:[#allocation3] sm:$0xff]
  %v1279 = vld [vmem:[#allocation3 + $0x8] sm:$0xff]
  %v1280 = vld [vmem:[#allocation3 + $0x10] sm:$0xff]
  %v1281 = vld [vmem:[#allocation3 + $0x18] sm:$0xff]
  %v1282 = vld [vmem:[#allocation3 + $0x20] sm:$0xff]
  %v1283 = vld [vmem:[#allocation3 + $0x28] sm:$0xff]
  %v1284 = vld [vmem:[#allocation3 + $0x30] sm:$0xff]
  %v1285 = vld [vmem:[#allocation3 + $0x38] sm:$0xff]
  %v1286 = vpack.c.bf16 %v1279, %v1278
  %v1287 = vpack.c.bf16 %v1281, %v1280
  %v1288 = vpack.c.bf16 %v1283, %v1282
  %v1289 = vpack.c.bf16 %v1285, %v1284
  %v1290 = vld [vmem:[%s6] sm:$0xff]
  %v1291 = vld [vmem:[%s6 + $0x8] sm:$0xf]
  %v1292 = vld [vmem:[%s6 + $0xc] sm:$0xff]
  %v1293 = vld [vmem:[%s6 + $0x14] sm:$0xf]
  %v1294 = vld [vmem:[%s6 + $0x18] sm:$0xff]
  %v1295 = vld [vmem:[%s6 + $0x20] sm:$0xf]
  %v1296 = vld [vmem:[%s6 + $0x24] sm:$0xff]
  %v1297 = vld [vmem:[%s6 + $0x2c] sm:$0xf]
  %v1298 = vld [vmem:[%s6 + $0x30] sm:$0xff]
  %v1299 = vld [vmem:[%s6 + $0x38] sm:$0xf]
  %v1300 = vld [vmem:[%s6 + $0x3c] sm:$0xff]
  %v1301 = vld [vmem:[%s6 + $0x44] sm:$0xf]
  %v1302 = vld [vmem:[%s6 + $0x48] sm:$0xff]
  %v1303 = vld [vmem:[%s6 + $0x50] sm:$0xf]
  %v1304 = vld [vmem:[%s6 + $0x54] sm:$0xff]
  %v1305 = vld [vmem:[%s6 + $0x5c] sm:$0xf]
  %v1306 = vld [vmem:[%s6 + $0x60] sm:$0xff]
  %v1307 = vld [vmem:[%s6 + $0x68] sm:$0xf]
  %v1308 = vld [vmem:[%s6 + $0x6c] sm:$0xff]
  %v1309 = vld [vmem:[%s6 + $0x74] sm:$0xf]
  %v1310 = vld [vmem:[%s6 + $0x78] sm:$0xff]
  %v1311 = vld [vmem:[%s6 + $0x80] sm:$0xf]
  %v1312 = vld [vmem:[%s6 + $0x84] sm:$0xff]
  %v1313 = vld [vmem:[%s6 + $0x8c] sm:$0xf]
  %v1314 = vld [vmem:[%s6 + $0x90] sm:$0xff]
  %v1315 = vld [vmem:[%s6 + $0x98] sm:$0xf]
  %v1316 = vld [vmem:[%s6 + $0x9c] sm:$0xff]
  %v1317 = vld [vmem:[%s6 + $0xa4] sm:$0xf]
  %v1318 = vld [vmem:[%s6 + $0xa8] sm:$0xff]
  %v1319 = vld [vmem:[%s6 + $0xb0] sm:$0xf]
  %v1320 = vld [vmem:[%s6 + $0xb4] sm:$0xff]
  %v1321 = vld [vmem:[%s6 + $0xbc] sm:$0xf]
  %v1322 = vld [vmem:[%s8] sm:$0x7]
  %v1324 = vperm.slane %v1322, 0
  %v1325 = vperm.slane %v1322, 1
  %v1326 = vperm.slane %v1322, 2
  %v1362 = vunpack.c.l.b16 %v1290
  %v1363 = vunpack.c.h.b16 %v1290
  %v1364 = vunpack.c.l.b16 %v1291
  %v1365 = vunpack.c.l.b16 %v1292
  %v1366 = vunpack.c.h.b16 %v1292
  %v1367 = vunpack.c.l.b16 %v1293
  %v1368 = vunpack.c.l.b16 %v1294
  %v1369 = vunpack.c.h.b16 %v1294
  %v1370 = vunpack.c.l.b16 %v1295
  %v1371 = vunpack.c.l.b16 %v1296
  %v1372 = vunpack.c.h.b16 %v1296
  %v1373 = vunpack.c.l.b16 %v1297
  %v1374 = vunpack.c.l.b16 %v1298
  %v1375 = vunpack.c.h.b16 %v1298
  %v1376 = vunpack.c.l.b16 %v1299
  %v1377 = vunpack.c.l.b16 %v1300
  %v1378 = vunpack.c.h.b16 %v1300
  %v1379 = vunpack.c.l.b16 %v1301
  %v1380 = vunpack.c.l.b16 %v1302
  %v1381 = vunpack.c.h.b16 %v1302
  %v1382 = vunpack.c.l.b16 %v1303
  %v1383 = vunpack.c.l.b16 %v1304
  %v1384 = vunpack.c.h.b16 %v1304
  %v1385 = vunpack.c.l.b16 %v1305
  %v1386 = vunpack.c.l.b16 %v1306
  %v1387 = vunpack.c.h.b16 %v1306
  %v1388 = vunpack.c.l.b16 %v1307
  %v1389 = vunpack.c.l.b16 %v1308
  %v1390 = vunpack.c.h.b16 %v1308
  %v1391 = vunpack.c.l.b16 %v1309
  %v1392 = vunpack.c.l.b16 %v1310
  %v1393 = vunpack.c.h.b16 %v1310
  %v1394 = vunpack.c.l.b16 %v1311
  %v1395 = vunpack.c.l.b16 %v1312
  %v1396 = vunpack.c.h.b16 %v1312
  %v1397 = vunpack.c.l.b16 %v1313
  %v1398 = vunpack.c.l.b16 %v1314
  %v1399 = vunpack.c.h.b16 %v1314
  %v1400 = vunpack.c.l.b16 %v1315
  %v1401 = vunpack.c.l.b16 %v1316
  %v1402 = vunpack.c.h.b16 %v1316
  %v1403 = vunpack.c.l.b16 %v1317
  %v1404 = vunpack.c.l.b16 %v1318
  %v1405 = vunpack.c.h.b16 %v1318
  %v1406 = vunpack.c.l.b16 %v1319
  %v1407 = vunpack.c.l.b16 %v1320
  %v1408 = vunpack.c.h.b16 %v1320
  %v1409 = vunpack.c.l.b16 %v1321
  %v1410 = vpack.c.b16 %v1365, %v1362
  %v1411 = vpack.c.b16 %v1366, %v1363
  %v1412 = vpack.c.b16 %v1367, %v1364
  %v1413 = vpack.c.b16 %v1371, %v1368
  %v1414 = vpack.c.b16 %v1372, %v1369
  %v1415 = vpack.c.b16 %v1373, %v1370
  %v1416 = vpack.c.b16 %v1377, %v1374
  %v1417 = vpack.c.b16 %v1378, %v1375
  %v1418 = vpack.c.b16 %v1379, %v1376
  %v1419 = vpack.c.b16 %v1383, %v1380
  %v1420 = vpack.c.b16 %v1384, %v1381
  %v1421 = vpack.c.b16 %v1385, %v1382
  %v1422 = vpack.c.b16 %v1389, %v1386
  %v1423 = vpack.c.b16 %v1390, %v1387
  %v1424 = vpack.c.b16 %v1391, %v1388
  %v1425 = vpack.c.b16 %v1395, %v1392
  %v1426 = vpack.c.b16 %v1396, %v1393
  %v1427 = vpack.c.b16 %v1397, %v1394
  %v1428 = vpack.c.b16 %v1401, %v1398
  %v1429 = vpack.c.b16 %v1402, %v1399
  %v1430 = vpack.c.b16 %v1403, %v1400
  %v1431 = vpack.c.b16 %v1407, %v1404
  %v1432 = vpack.c.b16 %v1408, %v1405
  %v1433 = vpack.c.b16 %v1409, %v1406
  %1458 = vmatpush.bf16.msra.mxu0 %v1431
  %1459 = vmatpush.bf16.msra.mxu0 %v1428
  %1460 = vmatpush.bf16.msra.mxu0 %v1425
  %1461 = vmatpush.bf16.msra.mxu0 %v1422
  %1462 = vmatpush.bf16.msra.mxu0 %v1419
  %1463 = vmatpush.bf16.msra.mxu0 %v1416
  %1464 = vmatpush.bf16.msra.mxu0 %v1413
  %1465 = vmatpush.bf16.msra.mxu0 %v1410
  %1466 = vmatmul.bf16.gmra.mxu0 %v1286
  %v1467 = vpop.f32.mrf.mxu0
  %v1468 = vadd.f32 %v1324, %v1467
  %v1469 = vpop.f32.mrf.mxu0
  %v1470 = vadd.f32 %v1324, %v1469
  %1471 = vmatmul.bf16.gmra.mxu0 %v1287
  %v1472 = vpop.f32.mrf.mxu0
  %v1473 = vadd.f32 %v1324, %v1472
  %v1474 = vpop.f32.mrf.mxu0
  %v1475 = vadd.f32 %v1324, %v1474
  %1476 = vmatmul.bf16.gmra.mxu0 %v1288
  %v1477 = vpop.f32.mrf.mxu0
  %v1478 = vadd.f32 %v1324, %v1477
  %v1479 = vpop.f32.mrf.mxu0
  %v1480 = vadd.f32 %v1324, %v1479
  %1481 = vmatmul.bf16.gmra.mxu0 %v1289
  %v1482 = vpop.f32.mrf.mxu0
  %v1483 = vadd.f32 %v1324, %v1482
  %v1484 = vpop.f32.mrf.mxu0
  %v1485 = vadd.f32 %v1324, %v1484
  %1486 = vdwg.mxu0
  %1487 = vmatpush.bf16.msra.mxu0 %v1432
  %1488 = vmatpush.bf16.msra.mxu0 %v1429
  %1489 = vmatpush.bf16.msra.mxu0 %v1426
  %1490 = vmatpush.bf16.msra.mxu0 %v1423
  %1491 = vmatpush.bf16.msra.mxu0 %v1420
  %1492 = vmatpush.bf16.msra.mxu0 %v1417
  %1493 = vmatpush.bf16.msra.mxu0 %v1414
  %1494 = vmatpush.bf16.msra.mxu0 %v1411
  %1495 = vmatmul.bf16.gmra.mxu0 %v1286
  %v1496 = vpop.f32.mrf.mxu0
  %v1497 = vadd.f32 %v1325, %v1496
  %v1498 = vpop.f32.mrf.mxu0
  %v1499 = vadd.f32 %v1325, %v1498
  %1500 = vmatmul.bf16.gmra.mxu0 %v1287
  %v1501 = vpop.f32.mrf.mxu0
  %v1502 = vadd.f32 %v1325, %v1501
  %v1503 = vpop.f32.mrf.mxu0
  %v1504 = vadd.f32 %v1325, %v1503
  %1505 = vmatmul.bf16.gmra.mxu0 %v1288
  %v1506 = vpop.f32.mrf.mxu0
  %v1507 = vadd.f32 %v1325, %v1506
  %v1508 = vpop.f32.mrf.mxu0
  %v1509 = vadd.f32 %v1325, %v1508
  %1510 = vmatmul.bf16.gmra.mxu0 %v1289
  %v1511 = vpop.f32.mrf.mxu0
  %v1512 = vadd.f32 %v1325, %v1511
  %v1513 = vpop.f32.mrf.mxu0
  %v1514 = vadd.f32 %v1325, %v1513
  %1515 = vdwg.mxu0
  %1516 = vmatpush.bf16.msra.mxu0 %v1433
  %1517 = vmatpush.bf16.msra.mxu0 %v1430
  %1518 = vmatpush.bf16.msra.mxu0 %v1427
  %1519 = vmatpush.bf16.msra.mxu0 %v1424
  %1520 = vmatpush.bf16.msra.mxu0 %v1421
  %1521 = vmatpush.bf16.msra.mxu0 %v1418
  %1522 = vmatpush.bf16.msra.mxu0 %v1415
  %1523 = vmatpush.bf16.msra.mxu0 %v1412
  %1524 = vmatmul.bf16.gmra.mxu0 %v1286
  %v1525 = vpop.f32.mrf.mxu0
  %v1526 = vadd.f32 %v1326, %v1525
  %v1527 = vpop.f32.mrf.mxu0
  %v1528 = vadd.f32 %v1326, %v1527
  %1529 = vmatmul.bf16.gmra.mxu0 %v1287
  %v1530 = vpop.f32.mrf.mxu0
  %v1531 = vadd.f32 %v1326, %v1530
  %v1532 = vpop.f32.mrf.mxu0
  %v1533 = vadd.f32 %v1326, %v1532
  %1534 = vmatmul.bf16.gmra.mxu0 %v1288
  %v1535 = vpop.f32.mrf.mxu0
  %v1536 = vadd.f32 %v1326, %v1535
  %v1537 = vpop.f32.mrf.mxu0
  %v1538 = vadd.f32 %v1326, %v1537
  %1539 = vmatmul.bf16.gmra.mxu0 %v1289
  %v1540 = vpop.f32.mrf.mxu0
  %v1541 = vadd.f32 %v1326, %v1540
  %v1542 = vpop.f32.mrf.mxu0
  %v1543 = vadd.f32 %v1326, %v1542
  %1544 = vdwg.mxu0
  %1545 = vst [vmem:[#allocation2] sm:$0xff] %v1468
  %1546 = vst [vmem:[#allocation2 + $0x8] sm:$0xff] %v1497
  %1547 = vst [vmem:[#allocation2 + $0x10] sm:$0xff] %v1526
  %1548 = vst [vmem:[#allocation2 + $0x18] sm:$0xff] %v1470
  %1549 = vst [vmem:[#allocation2 + $0x20] sm:$0xff] %v1499
  %1550 = vst [vmem:[#allocation2 + $0x28] sm:$0xff] %v1528
  %1551 = vst [vmem:[#allocation2 + $0x30] sm:$0xff] %v1473
  %1552 = vst [vmem:[#allocation2 + $0x38] sm:$0xff] %v1502
  %1553 = vst [vmem:[#allocation2 + $0x40] sm:$0xff] %v1531
  %1554 = vst [vmem:[#allocation2 + $0x48] sm:$0xff] %v1475
  %1555 = vst [vmem:[#allocation2 + $0x50] sm:$0xff] %v1504
  %1556 = vst [vmem:[#allocation2 + $0x58] sm:$0xff] %v1533
  %1557 = vst [vmem:[#allocation2 + $0x60] sm:$0xff] %v1478
  %1558 = vst [vmem:[#allocation2 + $0x68] sm:$0xff] %v1507
  %1559 = vst [vmem:[#allocation2 + $0x70] sm:$0xff] %v1536
  %1560 = vst [vmem:[#allocation2 + $0x78] sm:$0xff] %v1480
  %1561 = vst [vmem:[#allocation2 + $0x80] sm:$0xff] %v1509
  %1562 = vst [vmem:[#allocation2 + $0x88] sm:$0xff] %v1538
  %1563 = vst [vmem:[#allocation2 + $0x90] sm:$0xff] %v1483
  %1564 = vst [vmem:[#allocation2 + $0x98] sm:$0xff] %v1512
  %1565 = vst [vmem:[#allocation2 + $0xa0] sm:$0xff] %v1541
  %1566 = vst [vmem:[#allocation2 + $0xa8] sm:$0xff] %v1485
  %1567 = vst [vmem:[#allocation2 + $0xb0] sm:$0xff] %v1514
  %1568 = vst [vmem:[#allocation2 + $0xb8] sm:$0xff] %v1543
  %v1569 = vld [vmem:[%s7] sm:$0xff]
  %v1570 = vld [vmem:[%s7 + $0x8] sm:$0xf]
  %v1571 = vld [vmem:[%s7 + $0xc] sm:$0xff]
  %v1572 = vld [vmem:[%s7 + $0x14] sm:$0xf]
  %v1573 = vld [vmem:[%s7 + $0x18] sm:$0xff]
  %v1574 = vld [vmem:[%s7 + $0x20] sm:$0xf]
  %v1575 = vld [vmem:[%s7 + $0x24] sm:$0xff]
  %v1576 = vld [vmem:[%s7 + $0x2c] sm:$0xf]
  %v1577 = vld [vmem:[%s7 + $0x30] sm:$0xff]
  %v1578 = vld [vmem:[%s7 + $0x38] sm:$0xf]
  %v1579 = vld [vmem:[%s7 + $0x3c] sm:$0xff]
  %v1580 = vld [vmem:[%s7 + $0x44] sm:$0xf]
  %v1581 = vld [vmem:[%s7 + $0x48] sm:$0xff]
  %v1582 = vld [vmem:[%s7 + $0x50] sm:$0xf]
  %v1583 = vld [vmem:[%s7 + $0x54] sm:$0xff]
  %v1584 = vld [vmem:[%s7 + $0x5c] sm:$0xf]
  %v1585 = vld [vmem:[%s7 + $0x60] sm:$0xff]
  %v1586 = vld [vmem:[%s7 + $0x68] sm:$0xf]
  %v1587 = vld [vmem:[%s7 + $0x6c] sm:$0xff]
  %v1588 = vld [vmem:[%s7 + $0x74] sm:$0xf]
  %v1589 = vld [vmem:[%s7 + $0x78] sm:$0xff]
  %v1590 = vld [vmem:[%s7 + $0x80] sm:$0xf]
  %v1591 = vld [vmem:[%s7 + $0x84] sm:$0xff]
  %v1592 = vld [vmem:[%s7 + $0x8c] sm:$0xf]
  %v1593 = vld [vmem:[%s7 + $0x90] sm:$0xff]
  %v1594 = vld [vmem:[%s7 + $0x98] sm:$0xf]
  %v1595 = vld [vmem:[%s7 + $0x9c] sm:$0xff]
  %v1596 = vld [vmem:[%s7 + $0xa4] sm:$0xf]
  %v1597 = vld [vmem:[%s7 + $0xa8] sm:$0xff]
  %v1598 = vld [vmem:[%s7 + $0xb0] sm:$0xf]
  %v1599 = vld [vmem:[%s7 + $0xb4] sm:$0xff]
  %v1600 = vld [vmem:[%s7 + $0xbc] sm:$0xf]
  %v1601 = vld [vmem:[%s9] sm:$0x1]
  %v1602 = vld [vmem:[%s1] sm:$0xff]
  %v1603 = vld [vmem:[%s382] sm:$0xff]
  %v1604 = vld [vmem:[%s382 + $0x8] sm:$0xff]
  %v1605 = vld [vmem:[%s382 + $0x10] sm:$0xff]
  %v1606 = vpack.c.bf16 %v1602, %v1602
  %v1639 = vunpack.c.l.b16 %v1569
  %v1640 = vunpack.c.h.b16 %v1569
  %v1641 = vunpack.c.l.b16 %v1570
  %v1642 = vunpack.c.l.b16 %v1571
  %v1643 = vunpack.c.h.b16 %v1571
  %v1644 = vunpack.c.l.b16 %v1572
  %v1645 = vunpack.c.l.b16 %v1573
  %v1646 = vunpack.c.h.b16 %v1573
  %v1647 = vunpack.c.l.b16 %v1574
  %v1648 = vunpack.c.l.b16 %v1575
  %v1649 = vunpack.c.h.b16 %v1575
  %v1650 = vunpack.c.l.b16 %v1576
  %v1651 = vunpack.c.l.b16 %v1577
  %v1652 = vunpack.c.h.b16 %v1577
  %v1653 = vunpack.c.l.b16 %v1578
  %v1654 = vunpack.c.l.b16 %v1579
  %v1655 = vunpack.c.h.b16 %v1579
  %v1656 = vunpack.c.l.b16 %v1580
  %v1657 = vunpack.c.l.b16 %v1581
  %v1658 = vunpack.c.h.b16 %v1581
  %v1659 = vunpack.c.l.b16 %v1582
  %v1660 = vunpack.c.l.b16 %v1583
  %v1661 = vunpack.c.h.b16 %v1583
  %v1662 = vunpack.c.l.b16 %v1584
  %v1663 = vunpack.c.l.b16 %v1585
  %v1664 = vunpack.c.h.b16 %v1585
  %v1665 = vunpack.c.l.b16 %v1586
  %v1666 = vunpack.c.l.b16 %v1587
  %v1667 = vunpack.c.h.b16 %v1587
  %v1668 = vunpack.c.l.b16 %v1588
  %v1669 = vunpack.c.l.b16 %v1589
  %v1670 = vunpack.c.h.b16 %v1589
  %v1671 = vunpack.c.l.b16 %v1590
  %v1672 = vunpack.c.l.b16 %v1591
  %v1673 = vunpack.c.h.b16 %v1591
  %v1674 = vunpack.c.l.b16 %v1592
  %v1675 = vunpack.c.l.b16 %v1593
  %v1676 = vunpack.c.h.b16 %v1593
  %v1677 = vunpack.c.l.b16 %v1594
  %v1678 = vunpack.c.l.b16 %v1595
  %v1679 = vunpack.c.h.b16 %v1595
  %v1680 = vunpack.c.l.b16 %v1596
  %v1681 = vunpack.c.l.b16 %v1597
  %v1682 = vunpack.c.h.b16 %v1597
  %v1683 = vunpack.c.l.b16 %v1598
  %v1684 = vunpack.c.l.b16 %v1599
  %v1685 = vunpack.c.h.b16 %v1599
  %v1686 = vunpack.c.l.b16 %v1600
  %v1687 = vpack.c.b16 %v1642, %v1639
  %v1688 = vpack.c.b16 %v1643, %v1640
  %v1689 = vpack.c.b16 %v1644, %v1641
  %v1690 = vpack.c.b16 %v1648, %v1645
  %v1691 = vpack.c.b16 %v1649, %v1646
  %v1692 = vpack.c.b16 %v1650, %v1647
  %v1693 = vpack.c.b16 %v1654, %v1651
  %v1694 = vpack.c.b16 %v1655, %v1652
  %v1695 = vpack.c.b16 %v1656, %v1653
  %v1696 = vpack.c.b16 %v1660, %v1657
  %v1697 = vpack.c.b16 %v1661, %v1658
  %v1698 = vpack.c.b16 %v1662, %v1659
  %v1699 = vpack.c.b16 %v1666, %v1663
  %v1700 = vpack.c.b16 %v1667, %v1664
  %v1701 = vpack.c.b16 %v1668, %v1665
  %v1702 = vpack.c.b16 %v1672, %v1669
  %v1703 = vpack.c.b16 %v1673, %v1670
  %v1704 = vpack.c.b16 %v1674, %v1671
  %v1705 = vpack.c.b16 %v1678, %v1675
  %v1706 = vpack.c.b16 %v1679, %v1676
  %v1707 = vpack.c.b16 %v1680, %v1677
  %v1708 = vpack.c.b16 %v1684, %v1681
  %v1709 = vpack.c.b16 %v1685, %v1682
  %v1710 = vpack.c.b16 %v1686, %v1683
  %1735 = vmatpush.bf16.msra.mxu0 %v1708
  %1736 = vmatpush.bf16.msra.mxu0 %v1705
  %1737 = vmatpush.bf16.msra.mxu0 %v1702
  %1738 = vmatpush.bf16.msra.mxu0 %v1699
  %1739 = vmatpush.bf16.msra.mxu0 %v1696
  %1740 = vmatpush.bf16.msra.mxu0 %v1693
  %1741 = vmatpush.bf16.msra.mxu0 %v1690
  %1742 = vmatpush.bf16.msra.mxu0 %v1687
  %1743 = vmatmul.bf16.gmra.mxu0 %v1606
  %v1744 = vpop.f32.mrf.mxu0
  %v1745 = vadd.f32 0.0, %v1744
  %v1746 = vpop.f32.mrf.mxu0
  %1747 = vdwg.mxu0
  %1748 = vmatpush.bf16.msra.mxu0 %v1709
  %1749 = vmatpush.bf16.msra.mxu0 %v1706
  %1750 = vmatpush.bf16.msra.mxu0 %v1703
  %1751 = vmatpush.bf16.msra.mxu0 %v1700
  %1752 = vmatpush.bf16.msra.mxu0 %v1697
  %1753 = vmatpush.bf16.msra.mxu0 %v1694
  %1754 = vmatpush.bf16.msra.mxu0 %v1691
  %1755 = vmatpush.bf16.msra.mxu0 %v1688
  %1756 = vmatmul.bf16.gmra.mxu0 %v1606
  %v1757 = vpop.f32.mrf.mxu0
  %v1758 = vadd.f32 0.0, %v1757
  %v1759 = vpop.f32.mrf.mxu0
  %1760 = vdwg.mxu0
  %1761 = vmatpush.bf16.msra.mxu0 %v1710
  %1762 = vmatpush.bf16.msra.mxu0 %v1707
  %1763 = vmatpush.bf16.msra.mxu0 %v1704
  %1764 = vmatpush.bf16.msra.mxu0 %v1701
  %1765 = vmatpush.bf16.msra.mxu0 %v1698
  %1766 = vmatpush.bf16.msra.mxu0 %v1695
  %1767 = vmatpush.bf16.msra.mxu0 %v1692
  %1768 = vmatpush.bf16.msra.mxu0 %v1689
  %1769 = vmatmul.bf16.gmra.mxu0 %v1606
  %v1770 = vpop.f32.mrf.mxu0
  %v1771 = vadd.f32 0.0, %v1770
  %v1772 = vpop.f32.mrf.mxu0
  %1773 = vdwg.mxu0
  %v1774 = vadd.f32 %v1603, %v1745
  %v1775 = vxor.u32 %v1774, 2147483648
  %v1776 = vmul.f32 %v1775, 1.442695
  %v1777 = vpow.pop %v1776
  %v1778 = vadd.f32 %v1777, 1.0
  %v1779 = vrcp.pop %v1778
  %v1780 = vmul.f32 %v1778, %v1779
  %v1781 = vsub.f32 1.0, %v1780
  %v1782 = vmul.f32 %v1779, %v1781
  %v1783 = vadd.f32 %v1779, %v1782
  %vm1784 = vweird.f32 %v1778
  %vm1785 = vweird.f32 %v1779
  %vm1786 = vmor %vm1784, %vm1785
  %v1787 = vsel %vm1786, %v1779, %v1783
  %v1788 = vand.u32 2147483647, %v1778
  %vm1789 = vcmp.eq.f32.partialorder %v1788, 8.507059e+37
  %v1790 = vand.u32 %v1778, 2147483648
  %v1791 = vor.u32 1.1754944e-38, %v1790
  %v1792 = vsel %vm1789, %v1791, %v1787
  %v1793 = vmul.f32 1.0, %v1792
  %v1794 = vadd.f32 %v1604, %v1758
  %v1795 = vxor.u32 %v1794, 2147483648
  %v1796 = vmul.f32 %v1795, 1.442695
  %v1797 = vpow.pop %v1796
  %v1798 = vadd.f32 %v1797, 1.0
  %v1799 = vrcp.pop %v1798
  %v1800 = vmul.f32 %v1798, %v1799
  %v1801 = vsub.f32 1.0, %v1800
  %v1802 = vmul.f32 %v1799, %v1801
  %v1803 = vadd.f32 %v1799, %v1802
  %vm1804 = vweird.f32 %v1798
  %vm1805 = vweird.f32 %v1799
  %vm1806 = vmor %vm1804, %vm1805
  %v1807 = vsel %vm1806, %v1799, %v1803
  %v1808 = vand.u32 2147483647, %v1798
  %vm1809 = vcmp.eq.f32.partialorder %v1808, 8.507059e+37
  %v1810 = vand.u32 %v1798, 2147483648
  %v1811 = vor.u32 1.1754944e-38, %v1810
  %v1812 = vsel %vm1809, %v1811, %v1807
  %v1813 = vmul.f32 1.0, %v1812
  %v1815 = vperm.slane %v1601, 0
  %v1817 = vadd.f32 %v1771, %v1815
  %v1818 = vmul.f32 %v1793, %v1817
  %v1819 = vadd.f32 %v1605, %v1818
  %v1820 = vtanh.pop %v1819
  %v1821 = vsub.f32 1.0, %v1813
  %v1822 = vmul.f32 %v1821, %v1820
  %v1823 = vmul.f32 %v1813, %v1602
  %v1824 = vadd.f32 %v1822, %v1823
  %1825 = vst [vmem:[#allocation3] sm:$0xff] %v1824
  %v1826 = vld [vmem:[%s608] sm:$0xff]
  %v1827 = vld [vmem:[%s608 + $0x8] sm:$0xff]
  %v1828 = vld [vmem:[%s608 + $0x10] sm:$0xff]
  %v1829 = vpack.c.bf16 %v1824, %v1824
  %1830 = vmatpush.bf16.msra.mxu0 %v1708
  %1831 = vmatpush.bf16.msra.mxu0 %v1705
  %1832 = vmatpush.bf16.msra.mxu0 %v1702
  %1833 = vmatpush.bf16.msra.mxu0 %v1699
  %1834 = vmatpush.bf16.msra.mxu0 %v1696
  %1835 = vmatpush.bf16.msra.mxu0 %v1693
  %1836 = vmatpush.bf16.msra.mxu0 %v1690
  %1837 = vmatpush.bf16.msra.mxu0 %v1687
  %1838 = vmatmul.bf16.gmra.mxu0 %v1829
  %v1839 = vpop.f32.mrf.mxu0
  %v1840 = vadd.f32 0.0, %v1839
  %v1841 = vpop.f32.mrf.mxu0
  %1842 = vdwg.mxu0
  %1843 = vmatpush.bf16.msra.mxu0 %v1709
  %1844 = vmatpush.bf16.msra.mxu0 %v1706
  %1845 = vmatpush.bf16.msra.mxu0 %v1703
  %1846 = vmatpush.bf16.msra.mxu0 %v1700
  %1847 = vmatpush.bf16.msra.mxu0 %v1697
  %1848 = vmatpush.bf16.msra.mxu0 %v1694
  %1849 = vmatpush.bf16.msra.mxu0 %v1691
  %1850 = vmatpush.bf16.msra.mxu0 %v1688
  %1851 = vmatmul.bf16.gmra.mxu0 %v1829
  %v1852 = vpop.f32.mrf.mxu0
  %v1853 = vadd.f32 0.0, %v1852
  %v1854 = vpop.f32.mrf.mxu0
  %1855 = vdwg.mxu0
  %1856 = vmatpush.bf16.msra.mxu0 %v1710
  %1857 = vmatpush.bf16.msra.mxu0 %v1707
  %1858 = vmatpush.bf16.msra.mxu0 %v1704
  %1859 = vmatpush.bf16.msra.mxu0 %v1701
  %1860 = vmatpush.bf16.msra.mxu0 %v1698
  %1861 = vmatpush.bf16.msra.mxu0 %v1695
  %1862 = vmatpush.bf16.msra.mxu0 %v1692
  %1863 = vmatpush.bf16.msra.mxu0 %v1689
  %1864 = vmatmul.bf16.gmra.mxu0 %v1829
  %v1865 = vpop.f32.mrf.mxu0
  %v1866 = vadd.f32 0.0, %v1865
  %v1867 = vpop.f32.mrf.mxu0
  %1868 = vdwg.mxu0
  %v1869 = vadd.f32 %v1826, %v1840
  %v1870 = vxor.u32 %v1869, 2147483648
  %v1871 = vmul.f32 %v1870, 1.442695
  %v1872 = vpow.pop %v1871
  %v1873 = vadd.f32 %v1872, 1.0
  %v1874 = vrcp.pop %v1873
  %v1875 = vmul.f32 %v1873, %v1874
  %v1876 = vsub.f32 1.0, %v1875
  %v1877 = vmul.f32 %v1874, %v1876
  %v1878 = vadd.f32 %v1874, %v1877
  %vm1879 = vweird.f32 %v1873
  %vm1880 = vweird.f32 %v1874
  %vm1881 = vmor %vm1879, %vm1880
  %v1882 = vsel %vm1881, %v1874, %v1878
  %v1883 = vand.u32 2147483647, %v1873
  %vm1884 = vcmp.eq.f32.partialorder %v1883, 8.507059e+37
  %v1885 = vand.u32 %v1873, 2147483648
  %v1886 = vor.u32 1.1754944e-38, %v1885
  %v1887 = vsel %vm1884, %v1886, %v1882
  %v1888 = vmul.f32 1.0, %v1887
  %v1889 = vadd.f32 %v1827, %v1853
  %v1890 = vxor.u32 %v1889, 2147483648
  %v1891 = vmul.f32 %v1890, 1.442695
  %v1892 = vpow.pop %v1891
  %v1893 = vadd.f32 %v1892, 1.0
  %v1894 = vrcp.pop %v1893
  %v1895 = vmul.f32 %v1893, %v1894
  %v1896 = vsub.f32 1.0, %v1895
  %v1897 = vmul.f32 %v1894, %v1896
  %v1898 = vadd.f32 %v1894, %v1897
  %vm1899 = vweird.f32 %v1893
  %vm1900 = vweird.f32 %v1894
  %vm1901 = vmor %vm1899, %vm1900
  %v1902 = vsel %vm1901, %v1894, %v1898
  %v1903 = vand.u32 2147483647, %v1893
  %vm1904 = vcmp.eq.f32.partialorder %v1903, 8.507059e+37
  %v1905 = vand.u32 %v1893, 2147483648
  %v1906 = vor.u32 1.1754944e-38, %v1905
  %v1907 = vsel %vm1904, %v1906, %v1902
  %v1908 = vmul.f32 1.0, %v1907
  %v1909 = vadd.f32 %v1866, %v1815
  %v1910 = vmul.f32 %v1888, %v1909
  %v1911 = vadd.f32 %v1828, %v1910
  %v1912 = vtanh.pop %v1911
  %v1913 = vsub.f32 1.0, %v1908
  %v1914 = vmul.f32 %v1913, %v1912
  %v1915 = vmul.f32 %v1908, %v1824
  %v1916 = vadd.f32 %v1914, %v1915
  %1917 = vst [vmem:[%s700] sm:$0xff] %v1916
  %v1918 = vld [vmem:[%s704] sm:$0xff]
  %v1919 = vld [vmem:[%s704 + $0x8] sm:$0xff]
  %v1920 = vld [vmem:[%s704 + $0x10] sm:$0xff]
  %v1921 = vpack.c.bf16 %v1916, %v1916
  %1922 = vmatpush.bf16.msra.mxu0 %v1708
  %1923 = vmatpush.bf16.msra.mxu0 %v1705
  %1924 = vmatpush.bf16.msra.mxu0 %v1702
  %1925 = vmatpush.bf16.msra.mxu0 %v1699
  %1926 = vmatpush.bf16.msra.mxu0 %v1696
  %1927 = vmatpush.bf16.msra.mxu0 %v1693
  %1928 = vmatpush.bf16.msra.mxu0 %v1690
  %1929 = vmatpush.bf16.msra.mxu0 %v1687
  %1930 = vmatmul.bf16.gmra.mxu0 %v1921
  %v1931 = vpop.f32.mrf.mxu0
  %v1932 = vadd.f32 0.0, %v1931
  %v1933 = vpop.f32.mrf.mxu0
  %1934 = vdwg.mxu0
  %1935 = vmatpush.bf16.msra.mxu0 %v1709
  %1936 = vmatpush.bf16.msra.mxu0 %v1706
  %1937 = vmatpush.bf16.msra.mxu0 %v1703
  %1938 = vmatpush.bf16.msra.mxu0 %v1700
  %1939 = vmatpush.bf16.msra.mxu0 %v1697
  %1940 = vmatpush.bf16.msra.mxu0 %v1694
  %1941 = vmatpush.bf16.msra.mxu0 %v1691
  %1942 = vmatpush.bf16.msra.mxu0 %v1688
  %1943 = vmatmul.bf16.gmra.mxu0 %v1921
  %v1944 = vpop.f32.mrf.mxu0
  %v1945 = vadd.f32 0.0, %v1944
  %v1946 = vpop.f32.mrf.mxu0
  %1947 = vdwg.mxu0
  %1948 = vmatpush.bf16.msra.mxu0 %v1710
  %1949 = vmatpush.bf16.msra.mxu0 %v1707
  %1950 = vmatpush.bf16.msra.mxu0 %v1704
  %1951 = vmatpush.bf16.msra.mxu0 %v1701
  %1952 = vmatpush.bf16.msra.mxu0 %v1698
  %1953 = vmatpush.bf16.msra.mxu0 %v1695
  %1954 = vmatpush.bf16.msra.mxu0 %v1692
  %1955 = vmatpush.bf16.msra.mxu0 %v1689
  %1956 = vmatmul.bf16.gmra.mxu0 %v1921
  %v1957 = vpop.f32.mrf.mxu0
  %v1958 = vadd.f32 0.0, %v1957
  %v1959 = vpop.f32.mrf.mxu0
  %1960 = vdwg.mxu0
  %v1961 = vadd.f32 %v1918, %v1932
  %v1962 = vxor.u32 %v1961, 2147483648
  %v1963 = vmul.f32 %v1962, 1.442695
  %v1964 = vpow.pop %v1963
  %v1965 = vadd.f32 %v1964, 1.0
  %v1966 = vrcp.pop %v1965
  %v1967 = vmul.f32 %v1965, %v1966
  %v1968 = vsub.f32 1.0, %v1967
  %v1969 = vmul.f32 %v1966, %v1968
  %v1970 = vadd.f32 %v1966, %v1969
  %vm1971 = vweird.f32 %v1965
  %vm1972 = vweird.f32 %v1966
  %vm1973 = vmor %vm1971, %vm1972
  %v1974 = vsel %vm1973, %v1966, %v1970
  %v1975 = vand.u32 2147483647, %v1965
  %vm1976 = vcmp.eq.f32.partialorder %v1975, 8.507059e+37
  %v1977 = vand.u32 %v1965, 2147483648
  %v1978 = vor.u32 1.1754944e-38, %v1977
  %v1979 = vsel %vm1976, %v1978, %v1974
  %v1980 = vmul.f32 1.0, %v1979
  %v1981 = vadd.f32 %v1919, %v1945
  %v1982 = vxor.u32 %v1981, 2147483648
  %v1983 = vmul.f32 %v1982, 1.442695
  %v1984 = vpow.pop %v1983
  %v1985 = vadd.f32 %v1984, 1.0
  %v1986 = vrcp.pop %v1985
  %v1987 = vmul.f32 %v1985, %v1986
  %v1988 = vsub.f32 1.0, %v1987
  %v1989 = vmul.f32 %v1986, %v1988
  %v1990 = vadd.f32 %v1986, %v1989
  %vm1991 = vweird.f32 %v1985
  %vm1992 = vweird.f32 %v1986
  %vm1993 = vmor %vm1991, %vm1992
  %v1994 = vsel %vm1993, %v1986, %v1990
  %v1995 = vand.u32 2147483647, %v1985
  %vm1996 = vcmp.eq.f32.partialorder %v1995, 8.507059e+37
  %v1997 = vand.u32 %v1985, 2147483648
  %v1998 = vor.u32 1.1754944e-38, %v1997
  %v1999 = vsel %vm1996, %v1998, %v1994
  %v2000 = vmul.f32 1.0, %v1999
  %v2001 = vadd.f32 %v1958, %v1815
  %v2002 = vmul.f32 %v1980, %v2001
  %v2003 = vadd.f32 %v1920, %v2002
  %v2004 = vtanh.pop %v2003
  %v2005 = vsub.f32 1.0, %v2000
  %v2006 = vmul.f32 %v2005, %v2004
  %v2007 = vmul.f32 %v2000, %v1916
  %v2008 = vadd.f32 %v2006, %v2007
  %2009 = vst [vmem:[%s796] sm:$0xff] %v2008
  %v2010 = vld [vmem:[%s800] sm:$0xff]
  %v2011 = vld [vmem:[%s800 + $0x8] sm:$0xff]
  %v2012 = vld [vmem:[%s800 + $0x10] sm:$0xff]
  %v2013 = vpack.c.bf16 %v2008, %v2008
  %2014 = vmatpush.bf16.msra.mxu0 %v1708
  %2015 = vmatpush.bf16.msra.mxu0 %v1705
  %2016 = vmatpush.bf16.msra.mxu0 %v1702
  %2017 = vmatpush.bf16.msra.mxu0 %v1699
  %2018 = vmatpush.bf16.msra.mxu0 %v1696
  %2019 = vmatpush.bf16.msra.mxu0 %v1693
  %2020 = vmatpush.bf16.msra.mxu0 %v1690
  %2021 = vmatpush.bf16.msra.mxu0 %v1687
  %2022 = vmatmul.bf16.gmra.mxu0 %v2013
  %v2023 = vpop.f32.mrf.mxu0
  %v2024 = vadd.f32 0.0, %v2023
  %v2025 = vpop.f32.mrf.mxu0
  %2026 = vdwg.mxu0
  %2027 = vmatpush.bf16.msra.mxu0 %v1709
  %2028 = vmatpush.bf16.msra.mxu0 %v1706
  %2029 = vmatpush.bf16.msra.mxu0 %v1703
  %2030 = vmatpush.bf16.msra.mxu0 %v1700
  %2031 = vmatpush.bf16.msra.mxu0 %v1697
  %2032 = vmatpush.bf16.msra.mxu0 %v1694
  %2033 = vmatpush.bf16.msra.mxu0 %v1691
  %2034 = vmatpush.bf16.msra.mxu0 %v1688
  %2035 = vmatmul.bf16.gmra.mxu0 %v2013
  %v2036 = vpop.f32.mrf.mxu0
  %v2037 = vadd.f32 0.0, %v2036
  %v2038 = vpop.f32.mrf.mxu0
  %2039 = vdwg.mxu0
  %2040 = vmatpush.bf16.msra.mxu0 %v1710
  %2041 = vmatpush.bf16.msra.mxu0 %v1707
  %2042 = vmatpush.bf16.msra.mxu0 %v1704
  %2043 = vmatpush.bf16.msra.mxu0 %v1701
  %2044 = vmatpush.bf16.msra.mxu0 %v1698
  %2045 = vmatpush.bf16.msra.mxu0 %v1695
  %2046 = vmatpush.bf16.msra.mxu0 %v1692
  %2047 = vmatpush.bf16.msra.mxu0 %v1689
  %2048 = vmatmul.bf16.gmra.mxu0 %v2013
  %v2049 = vpop.f32.mrf.mxu0
  %v2050 = vadd.f32 0.0, %v2049
  %v2051 = vpop.f32.mrf.mxu0
  %2052 = vdwg.mxu0
  %v2053 = vadd.f32 %v2010, %v2024
  %v2054 = vxor.u32 %v2053, 2147483648
  %v2055 = vmul.f32 %v2054, 1.442695
  %v2056 = vpow.pop %v2055
  %v2057 = vadd.f32 %v2056, 1.0
  %v2058 = vrcp.pop %v2057
  %v2059 = vmul.f32 %v2057, %v2058
  %v2060 = vsub.f32 1.0, %v2059
  %v2061 = vmul.f32 %v2058, %v2060
  %v2062 = vadd.f32 %v2058, %v2061
  %vm2063 = vweird.f32 %v2057
  %vm2064 = vweird.f32 %v2058
  %vm2065 = vmor %vm2063, %vm2064
  %v2066 = vsel %vm2065, %v2058, %v2062
  %v2067 = vand.u32 2147483647, %v2057
  %vm2068 = vcmp.eq.f32.partialorder %v2067, 8.507059e+37
  %v2069 = vand.u32 %v2057, 2147483648
  %v2070 = vor.u32 1.1754944e-38, %v2069
  %v2071 = vsel %vm2068, %v2070, %v2066
  %v2072 = vmul.f32 1.0, %v2071
  %v2073 = vadd.f32 %v2011, %v2037
  %v2074 = vxor.u32 %v2073, 2147483648
  %v2075 = vmul.f32 %v2074, 1.442695
  %v2076 = vpow.pop %v2075
  %v2077 = vadd.f32 %v2076, 1.0
  %v2078 = vrcp.pop %v2077
  %v2079 = vmul.f32 %v2077, %v2078
  %v2080 = vsub.f32 1.0, %v2079
  %v2081 = vmul.f32 %v2078, %v2080
  %v2082 = vadd.f32 %v2078, %v2081
  %vm2083 = vweird.f32 %v2077
  %vm2084 = vweird.f32 %v2078
  %vm2085 = vmor %vm2083, %vm2084
  %v2086 = vsel %vm2085, %v2078, %v2082
  %v2087 = vand.u32 2147483647, %v2077
  %vm2088 = vcmp.eq.f32.partialorder %v2087, 8.507059e+37
  %v2089 = vand.u32 %v2077, 2147483648
  %v2090 = vor.u32 1.1754944e-38, %v2089
  %v2091 = vsel %vm2088, %v2090, %v2086
  %v2092 = vmul.f32 1.0, %v2091
  %v2093 = vadd.f32 %v2050, %v1815
  %v2094 = vmul.f32 %v2072, %v2093
  %v2095 = vadd.f32 %v2012, %v2094
  %v2096 = vtanh.pop %v2095
  %v2097 = vsub.f32 1.0, %v2092
  %v2098 = vmul.f32 %v2097, %v2096
  %v2099 = vmul.f32 %v2092, %v2008
  %v2100 = vadd.f32 %v2098, %v2099
  %2101 = vst [vmem:[%s892] sm:$0xff] %v2100
  %v2102 = vld [vmem:[%s896] sm:$0xff]
  %v2103 = vld [vmem:[%s896 + $0x8] sm:$0xff]
  %v2104 = vld [vmem:[%s896 + $0x10] sm:$0xff]
  %v2105 = vpack.c.bf16 %v2100, %v2100
  %2106 = vmatpush.bf16.msra.mxu0 %v1708
  %2107 = vmatpush.bf16.msra.mxu0 %v1705
  %2108 = vmatpush.bf16.msra.mxu0 %v1702
  %2109 = vmatpush.bf16.msra.mxu0 %v1699
  %2110 = vmatpush.bf16.msra.mxu0 %v1696
  %2111 = vmatpush.bf16.msra.mxu0 %v1693
  %2112 = vmatpush.bf16.msra.mxu0 %v1690
  %2113 = vmatpush.bf16.msra.mxu0 %v1687
  %2114 = vmatmul.bf16.gmra.mxu0 %v2105
  %v2115 = vpop.f32.mrf.mxu0
  %v2116 = vadd.f32 0.0, %v2115
  %v2117 = vpop.f32.mrf.mxu0
  %2118 = vdwg.mxu0
  %2119 = vmatpush.bf16.msra.mxu0 %v1709
  %2120 = vmatpush.bf16.msra.mxu0 %v1706
  %2121 = vmatpush.bf16.msra.mxu0 %v1703
  %2122 = vmatpush.bf16.msra.mxu0 %v1700
  %2123 = vmatpush.bf16.msra.mxu0 %v1697
  %2124 = vmatpush.bf16.msra.mxu0 %v1694
  %2125 = vmatpush.bf16.msra.mxu0 %v1691
  %2126 = vmatpush.bf16.msra.mxu0 %v1688
  %2127 = vmatmul.bf16.gmra.mxu0 %v2105
  %v2128 = vpop.f32.mrf.mxu0
  %v2129 = vadd.f32 0.0, %v2128
  %v2130 = vpop.f32.mrf.mxu0
  %2131 = vdwg.mxu0
  %2132 = vmatpush.bf16.msra.mxu0 %v1710
  %2133 = vmatpush.bf16.msra.mxu0 %v1707
  %2134 = vmatpush.bf16.msra.mxu0 %v1704
  %2135 = vmatpush.bf16.msra.mxu0 %v1701
  %2136 = vmatpush.bf16.msra.mxu0 %v1698
  %2137 = vmatpush.bf16.msra.mxu0 %v1695
  %2138 = vmatpush.bf16.msra.mxu0 %v1692
  %2139 = vmatpush.bf16.msra.mxu0 %v1689
  %2140 = vmatmul.bf16.gmra.mxu0 %v2105
  %v2141 = vpop.f32.mrf.mxu0
  %v2142 = vadd.f32 0.0, %v2141
  %v2143 = vpop.f32.mrf.mxu0
  %2144 = vdwg.mxu0
  %v2145 = vadd.f32 %v2102, %v2116
  %v2146 = vxor.u32 %v2145, 2147483648
  %v2147 = vmul.f32 %v2146, 1.442695
  %v2148 = vpow.pop %v2147
  %v2149 = vadd.f32 %v2148, 1.0
  %v2150 = vrcp.pop %v2149
  %v2151 = vmul.f32 %v2149, %v2150
  %v2152 = vsub.f32 1.0, %v2151
  %v2153 = vmul.f32 %v2150, %v2152
  %v2154 = vadd.f32 %v2150, %v2153
  %vm2155 = vweird.f32 %v2149
  %vm2156 = vweird.f32 %v2150
  %vm2157 = vmor %vm2155, %vm2156
  %v2158 = vsel %vm2157, %v2150, %v2154
  %v2159 = vand.u32 2147483647, %v2149
  %vm2160 = vcmp.eq.f32.partialorder %v2159, 8.507059e+37
  %v2161 = vand.u32 %v2149, 2147483648
  %v2162 = vor.u32 1.1754944e-38, %v2161
  %v2163 = vsel %vm2160, %v2162, %v2158
  %v2164 = vmul.f32 1.0, %v2163
  %v2165 = vadd.f32 %v2103, %v2129
  %v2166 = vxor.u32 %v2165, 2147483648
  %v2167 = vmul.f32 %v2166, 1.442695
  %v2168 = vpow.pop %v2167
  %v2169 = vadd.f32 %v2168, 1.0
  %v2170 = vrcp.pop %v2169
  %v2171 = vmul.f32 %v2169, %v2170
  %v2172 = vsub.f32 1.0, %v2171
  %v2173 = vmul.f32 %v2170, %v2172
  %v2174 = vadd.f32 %v2170, %v2173
  %vm2175 = vweird.f32 %v2169
  %vm2176 = vweird.f32 %v2170
  %vm2177 = vmor %vm2175, %vm2176
  %v2178 = vsel %vm2177, %v2170, %v2174
  %v2179 = vand.u32 2147483647, %v2169
  %vm2180 = vcmp.eq.f32.partialorder %v2179, 8.507059e+37
  %v2181 = vand.u32 %v2169, 2147483648
  %v2182 = vor.u32 1.1754944e-38, %v2181
  %v2183 = vsel %vm2180, %v2182, %v2178
  %v2184 = vmul.f32 1.0, %v2183
  %v2185 = vadd.f32 %v2142, %v1815
  %v2186 = vmul.f32 %v2164, %v2185
  %v2187 = vadd.f32 %v2104, %v2186
  %v2188 = vtanh.pop %v2187
  %v2189 = vsub.f32 1.0, %v2184
  %v2190 = vmul.f32 %v2189, %v2188
  %v2191 = vmul.f32 %v2184, %v2100
  %v2192 = vadd.f32 %v2190, %v2191
  %2193 = vst [vmem:[%s988] sm:$0xff] %v2192
  %v2194 = vld [vmem:[%s992] sm:$0xff]
  %v2195 = vld [vmem:[%s992 + $0x8] sm:$0xff]
  %v2196 = vld [vmem:[%s992 + $0x10] sm:$0xff]
  %v2197 = vpack.c.bf16 %v2192, %v2192
  %2198 = vmatpush.bf16.msra.mxu0 %v1708
  %2199 = vmatpush.bf16.msra.mxu0 %v1705
  %2200 = vmatpush.bf16.msra.mxu0 %v1702
  %2201 = vmatpush.bf16.msra.mxu0 %v1699
  %2202 = vmatpush.bf16.msra.mxu0 %v1696
  %2203 = vmatpush.bf16.msra.mxu0 %v1693
  %2204 = vmatpush.bf16.msra.mxu0 %v1690
  %2205 = vmatpush.bf16.msra.mxu0 %v1687
  %2206 = vmatmul.bf16.gmra.mxu0 %v2197
  %v2207 = vpop.f32.mrf.mxu0
  %v2208 = vadd.f32 0.0, %v2207
  %v2209 = vpop.f32.mrf.mxu0
  %2210 = vdwg.mxu0
  %2211 = vmatpush.bf16.msra.mxu0 %v1709
  %2212 = vmatpush.bf16.msra.mxu0 %v1706
  %2213 = vmatpush.bf16.msra.mxu0 %v1703
  %2214 = vmatpush.bf16.msra.mxu0 %v1700
  %2215 = vmatpush.bf16.msra.mxu0 %v1697
  %2216 = vmatpush.bf16.msra.mxu0 %v1694
  %2217 = vmatpush.bf16.msra.mxu0 %v1691
  %2218 = vmatpush.bf16.msra.mxu0 %v1688
  %2219 = vmatmul.bf16.gmra.mxu0 %v2197
  %v2220 = vpop.f32.mrf.mxu0
  %v2221 = vadd.f32 0.0, %v2220
  %v2222 = vpop.f32.mrf.mxu0
  %2223 = vdwg.mxu0
  %2224 = vmatpush.bf16.msra.mxu0 %v1710
  %2225 = vmatpush.bf16.msra.mxu0 %v1707
  %2226 = vmatpush.bf16.msra.mxu0 %v1704
  %2227 = vmatpush.bf16.msra.mxu0 %v1701
  %2228 = vmatpush.bf16.msra.mxu0 %v1698
  %2229 = vmatpush.bf16.msra.mxu0 %v1695
  %2230 = vmatpush.bf16.msra.mxu0 %v1692
  %2231 = vmatpush.bf16.msra.mxu0 %v1689
  %2232 = vmatmul.bf16.gmra.mxu0 %v2197
  %v2233 = vpop.f32.mrf.mxu0
  %v2234 = vadd.f32 0.0, %v2233
  %v2235 = vpop.f32.mrf.mxu0
  %2236 = vdwg.mxu0
  %v2237 = vadd.f32 %v2194, %v2208
  %v2238 = vxor.u32 %v2237, 2147483648
  %v2239 = vmul.f32 %v2238, 1.442695
  %v2240 = vpow.pop %v2239
  %v2241 = vadd.f32 %v2240, 1.0
  %v2242 = vrcp.pop %v2241
  %v2243 = vmul.f32 %v2241, %v2242
  %v2244 = vsub.f32 1.0, %v2243
  %v2245 = vmul.f32 %v2242, %v2244
  %v2246 = vadd.f32 %v2242, %v2245
  %vm2247 = vweird.f32 %v2241
  %vm2248 = vweird.f32 %v2242
  %vm2249 = vmor %vm2247, %vm2248
  %v2250 = vsel %vm2249, %v2242, %v2246
  %v2251 = vand.u32 2147483647, %v2241
  %vm2252 = vcmp.eq.f32.partialorder %v2251, 8.507059e+37
  %v2253 = vand.u32 %v2241, 2147483648
  %v2254 = vor.u32 1.1754944e-38, %v2253
  %v2255 = vsel %vm2252, %v2254, %v2250
  %v2256 = vmul.f32 1.0, %v2255
  %v2257 = vadd.f32 %v2195, %v2221
  %v2258 = vxor.u32 %v2257, 2147483648
  %v2259 = vmul.f32 %v2258, 1.442695
  %v2260 = vpow.pop %v2259
  %v2261 = vadd.f32 %v2260, 1.0
  %v2262 = vrcp.pop %v2261
  %v2263 = vmul.f32 %v2261, %v2262
  %v2264 = vsub.f32 1.0, %v2263
  %v2265 = vmul.f32 %v2262, %v2264
  %v2266 = vadd.f32 %v2262, %v2265
  %vm2267 = vweird.f32 %v2261
  %vm2268 = vweird.f32 %v2262
  %vm2269 = vmor %vm2267, %vm2268
  %v2270 = vsel %vm2269, %v2262, %v2266
  %v2271 = vand.u32 2147483647, %v2261
  %vm2272 = vcmp.eq.f32.partialorder %v2271, 8.507059e+37
  %v2273 = vand.u32 %v2261, 2147483648
  %v2274 = vor.u32 1.1754944e-38, %v2273
  %v2275 = vsel %vm2272, %v2274, %v2270
  %v2276 = vmul.f32 1.0, %v2275
  %v2277 = vadd.f32 %v2234, %v1815
  %v2278 = vmul.f32 %v2256, %v2277
  %v2279 = vadd.f32 %v2196, %v2278
  %v2280 = vtanh.pop %v2279
  %v2281 = vsub.f32 1.0, %v2276
  %v2282 = vmul.f32 %v2281, %v2280
  %v2283 = vmul.f32 %v2276, %v2192
  %v2284 = vadd.f32 %v2282, %v2283
  %2285 = vst [vmem:[%s1084] sm:$0xff] %v2284
  %v2286 = vld [vmem:[%s1088] sm:$0xff]
  %v2287 = vld [vmem:[%s1088 + $0x8] sm:$0xff]
  %v2288 = vld [vmem:[%s1088 + $0x10] sm:$0xff]
  %v2289 = vpack.c.bf16 %v2284, %v2284
  %2290 = vmatpush.bf16.msra.mxu0 %v1708
  %2291 = vmatpush.bf16.msra.mxu0 %v1705
  %2292 = vmatpush.bf16.msra.mxu0 %v1702
  %2293 = vmatpush.bf16.msra.mxu0 %v1699
  %2294 = vmatpush.bf16.msra.mxu0 %v1696
  %2295 = vmatpush.bf16.msra.mxu0 %v1693
  %2296 = vmatpush.bf16.msra.mxu0 %v1690
  %2297 = vmatpush.bf16.msra.mxu0 %v1687
  %2298 = vmatmul.bf16.gmra.mxu0 %v2289
  %v2299 = vpop.f32.mrf.mxu0
  %v2300 = vadd.f32 0.0, %v2299
  %v2301 = vpop.f32.mrf.mxu0
  %2302 = vdwg.mxu0
  %2303 = vmatpush.bf16.msra.mxu0 %v1709
  %2304 = vmatpush.bf16.msra.mxu0 %v1706
  %2305 = vmatpush.bf16.msra.mxu0 %v1703
  %2306 = vmatpush.bf16.msra.mxu0 %v1700
  %2307 = vmatpush.bf16.msra.mxu0 %v1697
  %2308 = vmatpush.bf16.msra.mxu0 %v1694
  %2309 = vmatpush.bf16.msra.mxu0 %v1691
  %2310 = vmatpush.bf16.msra.mxu0 %v1688
  %2311 = vmatmul.bf16.gmra.mxu0 %v2289
  %v2312 = vpop.f32.mrf.mxu0
  %v2313 = vadd.f32 0.0, %v2312
  %v2314 = vpop.f32.mrf.mxu0
  %2315 = vdwg.mxu0
  %2316 = vmatpush.bf16.msra.mxu0 %v1710
  %2317 = vmatpush.bf16.msra.mxu0 %v1707
  %2318 = vmatpush.bf16.msra.mxu0 %v1704
  %2319 = vmatpush.bf16.msra.mxu0 %v1701
  %2320 = vmatpush.bf16.msra.mxu0 %v1698
  %2321 = vmatpush.bf16.msra.mxu0 %v1695
  %2322 = vmatpush.bf16.msra.mxu0 %v1692
  %2323 = vmatpush.bf16.msra.mxu0 %v1689
  %2324 = vmatmul.bf16.gmra.mxu0 %v2289
  %v2325 = vpop.f32.mrf.mxu0
  %v2326 = vadd.f32 0.0, %v2325
  %v2327 = vpop.f32.mrf.mxu0
  %2328 = vdwg.mxu0
  %v2329 = vadd.f32 %v2286, %v2300
  %v2330 = vxor.u32 %v2329, 2147483648
  %v2331 = vmul.f32 %v2330, 1.442695
  %v2332 = vpow.pop %v2331
  %v2333 = vadd.f32 %v2332, 1.0
  %v2334 = vrcp.pop %v2333
  %v2335 = vmul.f32 %v2333, %v2334
  %v2336 = vsub.f32 1.0, %v2335
  %v2337 = vmul.f32 %v2334, %v2336
  %v2338 = vadd.f32 %v2334, %v2337
  %vm2339 = vweird.f32 %v2333
  %vm2340 = vweird.f32 %v2334
  %vm2341 = vmor %vm2339, %vm2340
  %v2342 = vsel %vm2341, %v2334, %v2338
  %v2343 = vand.u32 2147483647, %v2333
  %vm2344 = vcmp.eq.f32.partialorder %v2343, 8.507059e+37
  %v2345 = vand.u32 %v2333, 2147483648
  %v2346 = vor.u32 1.1754944e-38, %v2345
  %v2347 = vsel %vm2344, %v2346, %v2342
  %v2348 = vmul.f32 1.0, %v2347
  %v2349 = vadd.f32 %v2287, %v2313
  %v2350 = vxor.u32 %v2349, 2147483648
  %v2351 = vmul.f32 %v2350, 1.442695
  %v2352 = vpow.pop %v2351
  %v2353 = vadd.f32 %v2352, 1.0
  %v2354 = vrcp.pop %v2353
  %v2355 = vmul.f32 %v2353, %v2354
  %v2356 = vsub.f32 1.0, %v2355
  %v2357 = vmul.f32 %v2354, %v2356
  %v2358 = vadd.f32 %v2354, %v2357
  %vm2359 = vweird.f32 %v2353
  %vm2360 = vweird.f32 %v2354
  %vm2361 = vmor %vm2359, %vm2360
  %v2362 = vsel %vm2361, %v2354, %v2358
  %v2363 = vand.u32 2147483647, %v2353
  %vm2364 = vcmp.eq.f32.partialorder %v2363, 8.507059e+37
  %v2365 = vand.u32 %v2353, 2147483648
  %v2366 = vor.u32 1.1754944e-38, %v2365
  %v2367 = vsel %vm2364, %v2366, %v2362
  %v2368 = vmul.f32 1.0, %v2367
  %v2369 = vadd.f32 %v2326, %v1815
  %v2370 = vmul.f32 %v2348, %v2369
  %v2371 = vadd.f32 %v2288, %v2370
  %v2372 = vtanh.pop %v2371
  %v2373 = vsub.f32 1.0, %v2368
  %v2374 = vmul.f32 %v2373, %v2372
  %v2375 = vmul.f32 %v2368, %v2284
  %v2376 = vadd.f32 %v2374, %v2375
  %2377 = vst [vmem:[%s1180] sm:$0xff] %v2376
  %v2378 = vld [vmem:[%s1184] sm:$0xff]
  %v2379 = vld [vmem:[%s1184 + $0x8] sm:$0xff]
  %v2380 = vld [vmem:[%s1184 + $0x10] sm:$0xff]
  %v2381 = vpack.c.bf16 %v2376, %v2376
  %2382 = vmatpush.bf16.msra.mxu0 %v1708
  %2383 = vmatpush.bf16.msra.mxu0 %v1705
  %2384 = vmatpush.bf16.msra.mxu0 %v1702
  %2385 = vmatpush.bf16.msra.mxu0 %v1699
  %2386 = vmatpush.bf16.msra.mxu0 %v1696
  %2387 = vmatpush.bf16.msra.mxu0 %v1693
  %2388 = vmatpush.bf16.msra.mxu0 %v1690
  %2389 = vmatpush.bf16.msra.mxu0 %v1687
  %2390 = vmatmul.bf16.gmra.mxu0 %v2381
  %v2391 = vpop.f32.mrf.mxu0
  %v2392 = vadd.f32 0.0, %v2391
  %v2393 = vpop.f32.mrf.mxu0
  %2394 = vdwg.mxu0
  %2395 = vmatpush.bf16.msra.mxu0 %v1709
  %2396 = vmatpush.bf16.msra.mxu0 %v1706
  %2397 = vmatpush.bf16.msra.mxu0 %v1703
  %2398 = vmatpush.bf16.msra.mxu0 %v1700
  %2399 = vmatpush.bf16.msra.mxu0 %v1697
  %2400 = vmatpush.bf16.msra.mxu0 %v1694
  %2401 = vmatpush.bf16.msra.mxu0 %v1691
  %2402 = vmatpush.bf16.msra.mxu0 %v1688
  %2403 = vmatmul.bf16.gmra.mxu0 %v2381
  %v2404 = vpop.f32.mrf.mxu0
  %v2405 = vadd.f32 0.0, %v2404
  %v2406 = vpop.f32.mrf.mxu0
  %2407 = vdwg.mxu0
  %2408 = vmatpush.bf16.msra.mxu0 %v1710
  %2409 = vmatpush.bf16.msra.mxu0 %v1707
  %2410 = vmatpush.bf16.msra.mxu0 %v1704
  %2411 = vmatpush.bf16.msra.mxu0 %v1701
  %2412 = vmatpush.bf16.msra.mxu0 %v1698
  %2413 = vmatpush.bf16.msra.mxu0 %v1695
  %2414 = vmatpush.bf16.msra.mxu0 %v1692
  %2415 = vmatpush.bf16.msra.mxu0 %v1689
  %2416 = vmatmul.bf16.gmra.mxu0 %v2381
  %v2417 = vpop.f32.mrf.mxu0
  %v2418 = vadd.f32 0.0, %v2417
  %v2419 = vpop.f32.mrf.mxu0
  %2420 = vdwg.mxu0
  %v2421 = vadd.f32 %v2378, %v2392
  %v2422 = vxor.u32 %v2421, 2147483648
  %v2423 = vmul.f32 %v2422, 1.442695
  %v2424 = vpow.pop %v2423
  %v2425 = vadd.f32 %v2424, 1.0
  %v2426 = vrcp.pop %v2425
  %v2427 = vmul.f32 %v2425, %v2426
  %v2428 = vsub.f32 1.0, %v2427
  %v2429 = vmul.f32 %v2426, %v2428
  %v2430 = vadd.f32 %v2426, %v2429
  %vm2431 = vweird.f32 %v2425
  %vm2432 = vweird.f32 %v2426
  %vm2433 = vmor %vm2431, %vm2432
  %v2434 = vsel %vm2433, %v2426, %v2430
  %v2435 = vand.u32 2147483647, %v2425
  %vm2436 = vcmp.eq.f32.partialorder %v2435, 8.507059e+37
  %v2437 = vand.u32 %v2425, 2147483648
  %v2438 = vor.u32 1.1754944e-38, %v2437
  %v2439 = vsel %vm2436, %v2438, %v2434
  %v2440 = vmul.f32 1.0, %v2439
  %v2441 = vadd.f32 %v2379, %v2405
  %v2442 = vxor.u32 %v2441, 2147483648
  %v2443 = vmul.f32 %v2442, 1.442695
  %v2444 = vpow.pop %v2443
  %v2445 = vadd.f32 %v2444, 1.0
  %v2446 = vrcp.pop %v2445
  %v2447 = vmul.f32 %v2445, %v2446
  %v2448 = vsub.f32 1.0, %v2447
  %v2449 = vmul.f32 %v2446, %v2448
  %v2450 = vadd.f32 %v2446, %v2449
  %vm2451 = vweird.f32 %v2445
  %vm2452 = vweird.f32 %v2446
  %vm2453 = vmor %vm2451, %vm2452
  %v2454 = vsel %vm2453, %v2446, %v2450
  %v2455 = vand.u32 2147483647, %v2445
  %vm2456 = vcmp.eq.f32.partialorder %v2455, 8.507059e+37
  %v2457 = vand.u32 %v2445, 2147483648
  %v2458 = vor.u32 1.1754944e-38, %v2457
  %v2459 = vsel %vm2456, %v2458, %v2454
  %v2460 = vmul.f32 1.0, %v2459
  %v2461 = vadd.f32 %v2418, %v1815
  %v2462 = vmul.f32 %v2440, %v2461
  %v2463 = vadd.f32 %v2380, %v2462
  %v2464 = vtanh.pop %v2463
  %v2465 = vsub.f32 1.0, %v2460
  %v2466 = vmul.f32 %v2465, %v2464
  %v2467 = vmul.f32 %v2460, %v2376
  %v2468 = vadd.f32 %v2466, %v2467
  %2469 = vst [vmem:[%s1276] sm:$0xff] %v2468
  %v2470 = vld [vmem:[#allocation3] ss:$8 sm:$0xf]
  %v2471 = vld [vmem:[#allocation3] ss:$8 sm:$0xf0]
  %v2472 = vor.u32 %v2470, %v2471
  %v2473 = vpack.c.bf16 %v2472, %v2472
  %2474 = vst [vmem:[%s10] sm:$0xf] %v2473
  %s2475 = scalar_lea.vmem [#allocation3], 1
  %v2476 = vld [vmem:[%s2475] ss:$8 sm:$0xf]
  %v2477 = vld [vmem:[%s2475] ss:$8 sm:$0xf0]
  %v2478 = vor.u32 %v2476, %v2477
  %v2479 = vpack.c.bf16 %v2478, %v2478
  %s2480 = scalar_lea.vmem %s10, 4
  %2481 = vst [vmem:[%s2480] sm:$0xf] %v2479
  %s2482 = scalar_lea.vmem [#allocation3], 2
  %v2483 = vld [vmem:[%s2482] ss:$8 sm:$0xf]
  %v2484 = vld [vmem:[%s2482] ss:$8 sm:$0xf0]
  %v2485 = vor.u32 %v2483, %v2484
  %v2486 = vpack.c.bf16 %v2485, %v2485
  %s2487 = scalar_lea.vmem %s10, 8
  %2488 = vst [vmem:[%s2487] sm:$0xf] %v2486
  %s2489 = scalar_lea.vmem [#allocation3], 3
  %v2490 = vld [vmem:[%s2489] ss:$8 sm:$0xf]
  %v2491 = vld [vmem:[%s2489] ss:$8 sm:$0xf0]
  %v2492 = vor.u32 %v2490, %v2491
  %v2493 = vpack.c.bf16 %v2492, %v2492
  %s2494 = scalar_lea.vmem %s10, 12
  %2495 = vst [vmem:[%s2494] sm:$0xf] %v2493
  %s2496 = scalar_lea.vmem [#allocation3], 4
  %v2497 = vld [vmem:[%s2496] ss:$8 sm:$0xf]
  %v2498 = vld [vmem:[%s2496] ss:$8 sm:$0xf0]
  %v2499 = vor.u32 %v2497, %v2498
  %v2500 = vpack.c.bf16 %v2499, %v2499
  %s2501 = scalar_lea.vmem %s10, 16
  %2502 = vst [vmem:[%s2501] sm:$0xf] %v2500
  %s2503 = scalar_lea.vmem [#allocation3], 5
  %v2504 = vld [vmem:[%s2503] ss:$8 sm:$0xf]
  %v2505 = vld [vmem:[%s2503] ss:$8 sm:$0xf0]
  %v2506 = vor.u32 %v2504, %v2505
  %v2507 = vpack.c.bf16 %v2506, %v2506
  %s2508 = scalar_lea.vmem %s10, 20
  %2509 = vst [vmem:[%s2508] sm:$0xf] %v2507
  %s2510 = scalar_lea.vmem [#allocation3], 6
  %v2511 = vld [vmem:[%s2510] ss:$8 sm:$0xf]
  %v2512 = vld [vmem:[%s2510] ss:$8 sm:$0xf0]
  %v2513 = vor.u32 %v2511, %v2512
  %v2514 = vpack.c.bf16 %v2513, %v2513
  %s2515 = scalar_lea.vmem %s10, 24
  %2516 = vst [vmem:[%s2515] sm:$0xf] %v2514
  %s2517 = scalar_lea.vmem [#allocation3], 7
  %v2518 = vld [vmem:[%s2517] ss:$8 sm:$0xf]
  %v2519 = vld [vmem:[%s2517] ss:$8 sm:$0xf0]
  %v2520 = vor.u32 %v2518, %v2519
  %v2521 = vpack.c.bf16 %v2520, %v2520
  %s2522 = scalar_lea.vmem %s10, 28
  %2523 = vst [vmem:[%s2522] sm:$0xf] %v2521
  // Predicated region
  $region42: #{lstm_decoder_forward.2} parent=0 // pred_check
    _
  $region43: #{lstm_decoder_forward.2} parent=0 // pred_check_branch
    %2525 = sbr.rel (0) target = $region45
  $region44: #{lstm_decoder_forward.2} parent=0 // pred_region
    _
  $region45: #{lstm_decoder_forward.2} parent=0 // pred_fallthru
    _
  // Predicated region
  $region46: #{lstm_decoder_forward.2} parent=0 // pred_check
    _
  $region47: #{lstm_decoder_forward.2} parent=0 // pred_check_branch
    %2527 = sbr.rel (0) target = $region49
  $region48: #{lstm_decoder_forward.2} parent=0 // pred_region
    _
  $region49: #{lstm_decoder_forward.2} parent=0 // pred_fallthru
    _

</llo_original>
